<compile_context>
chip_gen: v5e
topology: v5e:2x2
jax: 0.10.0
libtpu: 0.0.40
codegen_flags: <defaults>
</compile_context>

<pallas_src>
import functools

import jax
import jax.numpy as jnp
from jax import lax
from jax.experimental import pallas as pl
from jax.experimental.pallas import tpu as pltpu


def _relu6(x):
    return jnp.minimum(jnp.maximum(x, 0.0), 6.0)


def _pick_row_chunk(H, W):
    """Largest divisor of H whose flattened chunk width is modest, preferring
    lane-aligned (multiple of 128) chunk widths."""
    best = 1
    for c in range(H, 0, -1):
        if H % c or c * W > 512:
            continue
        if (c * W) % 128 == 0:
            return c
        best = max(best, c)
    return best


# --------------------------------------------------------------------------
# Fused MobileBottleneck kernel (one batch element per grid step)
# --------------------------------------------------------------------------
def _mb_kernel(x_ref, w1_ref, b1_ref, wdw_ref, bdw_ref, w2t_ref, b2_ref,
               o_ref, xe_ref, *, H, W, Ho, Wo, stride, add, row_chunk):
    """
    x_ref  : (Cin, H*W)      NCHW input (batch squeezed), row-major spatial
    w1_ref : (Cin, E)  bf16  expand 1x1 weight  (BN scale folded in)
    b1_ref : (1, E)    f32   expand bias        (BN folded)
    wdw_ref: (9, E)    f32   depthwise 3x3 taps (BN scale folded in)
    bdw_ref: (1, E)    f32   depthwise bias     (BN folded)
    w2t_ref: (Cout, E) bf16  project 1x1 weight, transposed (BN folded)
    b2_ref : (Cout, 1) f32   project bias       (BN folded)
    o_ref  : (Cout, Ho*Wo)   output tile (lane-dense minor dim)
    xe_ref : (H+2, W+2, E)   VMEM scratch: zero-padded expanded activation
    """
    E = w1_ref.shape[-1]

    # ---- zero ONLY the 1-px halo border (interior is fully overwritten) ----
    # Re-zeroed every step: each TensorCore owns its own scratch instance
    # under "parallel" semantics, so a one-time init is not safe.
    xe_ref[0:1, :, :] = jnp.zeros((1, W + 2, E), jnp.float32)
    xe_ref[H + 1:H + 2, :, :] = jnp.zeros((1, W + 2, E), jnp.float32)
    xe_ref[1:H + 1, 0:1, :] = jnp.zeros((H, 1, E), jnp.float32)
    xe_ref[1:H + 1, W + 1:W + 2, :] = jnp.zeros((H, 1, E), jnp.float32)

    # ---- expand 1x1 (+ folded BN) + ReLU6, row-chunked into scratch --------
    w1 = w1_ref[...]                               # (Cin, E) bf16, read once
    b1 = b1_ref[...]                               # (1, E)   f32
    for r in range(0, H, row_chunk):               # static offsets
        cols = r * W
        xc = x_ref[:, cols:cols + row_chunk * W]   # (Cin, CH*W) f32
        e = jnp.dot(xc.T.astype(jnp.bfloat16), w1,
                    preferred_element_type=jnp.float32)       # (CH*W, E)
        e = _relu6(e + b1)
        xe_ref[1 + r:1 + r + row_chunk, 1:W + 1, :] = e.reshape(row_chunk, W, E)

    # ---- depthwise 3x3 (+ folded BN) + ReLU6, direct stride ----------------
    w = wdw_ref[...]                               # (9, E), read once

    def tap(dy, dx):
        if stride == 1:
            v = xe_ref[dy:dy + Ho, dx:dx + Wo, :]
        else:
            # TODO(synk): W-axis strided sublane reads per tap; consolidate the
            # subsample to one pass if the Mosaic dump shows them binding.
            v = xe_ref[pl.ds(dy, Ho, stride=stride),
                       pl.ds(dx, Wo, stride=stride), :]
        return v * w[3 * dy + dx][None, None, :]

    acc = tap(0, 0)                                # init from first tap
    for k in range(1, 9):
        acc = acc + tap(k // 3, k % 3)
    acc = _relu6(acc + bdw_ref[...][None, :, :])   # (Ho, Wo, E) f32

    # ---- project 1x1 (+ folded BN), channels-major (lane-dense) output -----
    acc2 = acc.reshape(Ho * Wo, E).astype(jnp.bfloat16)
    out = lax.dot_general(w2t_ref[...], acc2,      # (Cout,E) x (Ho*Wo,E)^T
                          (((1,), (1,)), ((), ())),
                          preferred_element_type=jnp.float32)  # (Cout, Ho*Wo)
    out = out + b2_ref[...]
    if add:
        out = out + x_ref[...]                     # residual: reuse input block
    o_ref[...] = out


# --------------------------------------------------------------------------
# Wrapper (NCHW in / NCHW out, no wrapper-side transposes)
# --------------------------------------------------------------------------
def mobile_bottleneck(x_nchw, params, *, stride=1, add=True):
    """MobileBottleneck forward. x_nchw: (N, Cin, H, W) -> (N, Cout, Ho, Wo).
    Note: the residual add is only applied when stride == 1 (matches module)."""
    x = x_nchw.astype(jnp.float32)
    N, Cin, H, W = x.shape
    E = params["w1"].shape[1]
    Cout = params["w2"].shape[1]
    Ho = (H - 1) // stride + 1          # k=3, pad=1 output size
    Wo = (W - 1) // stride + 1
    do_add = bool(add and stride == 1)
    if do_add:
        assert Cin == Cout, "residual add requires contract_filters == in_channels"

    x2 = x.reshape(N, Cin, H * W)                      # free reshape
    w1 = params["w1"].astype(jnp.bfloat16)             # (Cin, E)
    w2t = params["w2"].T.astype(jnp.bfloat16)          # (Cout, E), tiny
    b2 = params["b2"].reshape(Cout, 1)                 # broadcast along lanes

    row_chunk = _pick_row_chunk(H, W)
    kernel = functools.partial(_mb_kernel, H=H, W=W, Ho=Ho, Wo=Wo,
                               stride=stride, add=do_add, row_chunk=row_chunk)

    # explicit scoped-VMEM budget: scratch + double-buffered blocks + temps
    f32 = 4
    est = ((H + 2) * (W + 2) * E * f32                        # padded scratch
           + 2 * Cin * H * W * f32 + 2 * Cout * Ho * Wo * f32  # dbl-buf I/O
           + 2 * (Cin * E + Cout * E) * 2                      # bf16 weights
           + 2 * (11 * E + Cout) * f32                         # biases + taps
           + (row_chunk * W * E + 3 * Ho * Wo * E) * f32)      # live temps
    vmem_limit = int(min(max(2 * est + (2 << 20), 16 << 20), 64 << 20))

    out = pl.pallas_call(
        kernel,
        out_shape=jax.ShapeDtypeStruct((N, Cout, Ho * Wo), jnp.float32),
        grid=(N,),
        in_specs=[
            pl.BlockSpec((None, Cin, H * W), lambda n: (n, 0, 0)),
            pl.BlockSpec((Cin, E), lambda n: (0, 0)),
            pl.BlockSpec((1, E), lambda n: (0, 0)),
            pl.BlockSpec((9, E), lambda n: (0, 0)),
            pl.BlockSpec((1, E), lambda n: (0, 0)),
            pl.BlockSpec((Cout, E), lambda n: (0, 0)),
            pl.BlockSpec((Cout, 1), lambda n: (0, 0)),
        ],
        out_specs=pl.BlockSpec((None, Cout, Ho * Wo), lambda n: (n, 0, 0)),
        scratch_shapes=[pltpu.VMEM((H + 2, W + 2, E), jnp.float32)],
        compiler_params=pltpu.CompilerParams(
            dimension_semantics=("parallel",),
            vmem_limit_bytes=vmem_limit),
    )(x2, w1, params["b1"], params["wdw"], params["bdw"], w2t, b2)
    return out.reshape(N, Cout, Ho, Wo)                # free reshape -> NCHW


# --------------------------------------------------------------------------
# Deterministic synthetic parameters with BN folded into the weights
# --------------------------------------------------------------------------
def _fold_bn(key, w, bias, cout):
    kg, kb, km, kv = jax.random.split(key, 4)
    gamma = 1.0 + 0.1 * jax.random.normal(kg, (cout,), jnp.float32)
    beta = 0.1 * jax.random.normal(kb, (cout,), jnp.float32)
    mean = 0.1 * jax.random.normal(km, (cout,), jnp.float32)
    var = 1.0 + jnp.abs(0.1 * jax.random.normal(kv, (cout,), jnp.float32))
    scale = gamma * jax.lax.rsqrt(var + 1e-5)
    w_folded = w * scale[None, :]               # fold BN scale into out-channels
    b_folded = (bias - mean) * scale + beta
    return w_folded, b_folded


def make_mb_params(key, cin, expand, contract):
    ks = jax.random.split(key, 9)
    nrm = lambda k, shape: 0.1 * jax.random.normal(k, shape, jnp.float32)
    w1, b1 = _fold_bn(ks[2], nrm(ks[0], (cin, expand)), nrm(ks[1], (expand,)), expand)
    wdw, bdw = _fold_bn(ks[5], nrm(ks[3], (9, expand)), nrm(ks[4], (expand,)), expand)
    w2, b2 = _fold_bn(ks[8], nrm(ks[6], (expand, contract)), nrm(ks[7], (contract,)), contract)
    return {
        "w1": w1, "b1": b1.reshape(1, expand),
        "wdw": wdw, "bdw": bdw.reshape(1, expand),
        "w2": w2, "b2": b2.reshape(1, contract),
    }


# --------------------------------------------------------------------------
# Pure-JAX reference (for correctness check)
# --------------------------------------------------------------------------
def mobile_bottleneck_reference(x_nchw, params, *, stride=1, add=True):
    x = jnp.transpose(x_nchw, (0, 2, 3, 1)).astype(jnp.float32)
    N, H, W, Cin = x.shape
    E = params["w1"].shape[1]
    Cout = params["w2"].shape[1]
    Ho = (H - 1) // stride + 1
    Wo = (W - 1) // stride + 1

    e = jnp.einsum("nhwc,ce->nhwe", x, params["w1"]) + params["b1"].reshape(1, 1, 1, E)
    e = jnp.clip(e, 0.0, 6.0)
    ep = jnp.pad(e, ((0, 0), (1, 1), (1, 1), (0, 0)))
    acc = jnp.zeros((N, Ho, Wo, E), jnp.float32)
    for dy in range(3):
        for dx in range(3):
            sl = ep[:, dy:dy + stride * (Ho - 1) + 1:stride,
                    dx:dx + stride * (Wo - 1) + 1:stride, :]
            acc = acc + sl * params["wdw"][3 * dy + dx].reshape(1, 1, 1, E)
    acc = jnp.clip(acc + params["bdw"].reshape(1, 1, 1, E), 0.0, 6.0)
    out = jnp.einsum("nhwe,ec->nhwc", acc, params["w2"]) + params["b2"].reshape(1, 1, 1, Cout)
    if add and stride == 1:
        out = out + x
    return jnp.transpose(out, (0, 3, 1, 2))


# --------------------------------------------------------------------------
if __name__ == "__main__":
    key = jax.random.PRNGKey(0)
    kp, kx = jax.random.split(key)
    in_channels, expand_filters, contract_filters = 32, 144, 32
    params = make_mb_params(kp, in_channels, expand_filters, contract_filters)
    x = jax.random.normal(kx, (2, in_channels, 16, 16), dtype=jnp.float32)  # NCHW

    # stride=1, add=True (residual path)
    fwd1 = jax.jit(functools.partial(mobile_bottleneck, params=params,
                                     stride=1, add=True))
    y1 = fwd1(x)
    jax.block_until_ready(y1)
    assert y1.shape == (2, contract_filters, 16, 16), y1.shape
    assert bool(jnp.all(jnp.isfinite(y1)))
    r1 = mobile_bottleneck_reference(x, params, stride=1, add=True)
    assert jnp.allclose(y1, r1, atol=5e-2, rtol=5e-2), float(jnp.max(jnp.abs(y1 - r1)))

    # stride=2 (downsampling path, no residual)
    fwd2 = jax.jit(functools.partial(mobile_bottleneck, params=params,
                                     stride=2, add=True))
    y2 = fwd2(x)
    jax.block_until_ready(y2)
    assert y2.shape == (2, contract_filters, 8, 8), y2.shape
    assert bool(jnp.all(jnp.isfinite(y2)))
    r2 = mobile_bottleneck_reference(x, params, stride=2, add=True)
    assert jnp.allclose(y2, r2, atol=5e-2, rtol=5e-2), float(jnp.max(jnp.abs(y2 - r2)))

    print("KERNEL_OK")
</pallas_src>

<mosaic_0001>
module attributes {stable_mosaic.version = 11 : i64} {
  func.func @_mb_kernel(%arg0: i32, %arg1: memref<1x32x256xf32, #tpu.memory_space<vmem>>, %arg2: memref<32x144xbf16, #tpu.memory_space<vmem>>, %arg3: memref<1x144xf32, #tpu.memory_space<vmem>>, %arg4: memref<9x144xf32, #tpu.memory_space<vmem>>, %arg5: memref<1x144xf32, #tpu.memory_space<vmem>>, %arg6: memref<32x144xbf16, #tpu.memory_space<vmem>>, %arg7: memref<32x1xf32, #tpu.memory_space<vmem>>, %arg8: memref<1x32x256xf32, #tpu.memory_space<vmem>>, %arg9: memref<18x18x144xf32, #tpu.memory_space<vmem>>) attributes {dimension_semantics = [#tpu.dimension_semantics<parallel>], iteration_bounds = array<i64: 2>, scalar_prefetch = 0 : i64, scratch_operands = 1 : i64, tpu.core_type = #tpu.core_type<tc>, window_params = [{transform_indices = @transform_0, window_bounds = array<i64: 1, 32, 256>}, {pipeline_mode = #tpu.pipeline_mode<synchronous>, transform_indices = @transform_1, window_bounds = array<i64: 32, 144>}, {pipeline_mode = #tpu.pipeline_mode<synchronous>, transform_indices = @transform_2, window_bounds = array<i64: 1, 144>}, {pipeline_mode = #tpu.pipeline_mode<synchronous>, transform_indices = @transform_3, window_bounds = array<i64: 9, 144>}, {pipeline_mode = #tpu.pipeline_mode<synchronous>, transform_indices = @transform_4, window_bounds = array<i64: 1, 144>}, {pipeline_mode = #tpu.pipeline_mode<synchronous>, transform_indices = @transform_5, window_bounds = array<i64: 32, 144>}, {pipeline_mode = #tpu.pipeline_mode<synchronous>, transform_indices = @transform_6, window_bounds = array<i64: 32, 1>}, {transform_indices = @transform_7, window_bounds = array<i64: 1, 32, 256>}]} {
    %cst = arith.constant 0.000000e+00 : f32
    %0 = vector.broadcast %cst : f32 to vector<1x18x144xf32>
    %c0 = arith.constant 0 : index
    %c0_0 = arith.constant 0 : index
    %c0_1 = arith.constant 0 : index
    %1 = vector.load %arg9[%c0, %c0_0, %c0_1] : memref<18x18x144xf32, #tpu.memory_space<vmem>>, vector<1x18x144xf32>
    tpu.vector_store %arg9[%c0, %c0_0, %c0_1], %0 {strides = array<i32>} : memref<18x18x144xf32, #tpu.memory_space<vmem>>, vector<1x18x144xf32>,
    %cst_2 = arith.constant 0.000000e+00 : f32
    %2 = vector.broadcast %cst_2 : f32 to vector<1x18x144xf32>
    %c17 = arith.constant 17 : index
    %c0_3 = arith.constant 0 : index
    %c0_4 = arith.constant 0 : index
    %3 = vector.load %arg9[%c17, %c0_3, %c0_4] : memref<18x18x144xf32, #tpu.memory_space<vmem>>, vector<1x18x144xf32>
    tpu.vector_store %arg9[%c17, %c0_3, %c0_4], %2 {strides = array<i32>} : memref<18x18x144xf32, #tpu.memory_space<vmem>>, vector<1x18x144xf32>,
    %cst_5 = arith.constant 0.000000e+00 : f32
    %4 = vector.broadcast %cst_5 : f32 to vector<16x1x144xf32>
    %c1 = arith.constant 1 : index
    %c0_6 = arith.constant 0 : index
    %c0_7 = arith.constant 0 : index
    %5 = vector.load %arg9[%c1, %c0_6, %c0_7] : memref<18x18x144xf32, #tpu.memory_space<vmem>>, vector<16x1x144xf32>
    tpu.vector_store %arg9[%c1, %c0_6, %c0_7], %4 {strides = array<i32>} : memref<18x18x144xf32, #tpu.memory_space<vmem>>, vector<16x1x144xf32>,
    %cst_8 = arith.constant 0.000000e+00 : f32
    %6 = vector.broadcast %cst_8 : f32 to vector<16x1x144xf32>
    %c1_9 = arith.constant 1 : index
    %c17_10 = arith.constant 17 : index
    %c0_11 = arith.constant 0 : index
    %7 = vector.load %arg9[%c1_9, %c17_10, %c0_11] : memref<18x18x144xf32, #tpu.memory_space<vmem>>, vector<16x1x144xf32>
    tpu.vector_store %arg9[%c1_9, %c17_10, %c0_11], %6 {strides = array<i32>} : memref<18x18x144xf32, #tpu.memory_space<vmem>>, vector<16x1x144xf32>,
    %c0_12 = arith.constant 0 : index
    %c0_13 = arith.constant 0 : index
    %8 = vector.load %arg2[%c0_12, %c0_13] : memref<32x144xbf16, #tpu.memory_space<vmem>>, vector<32x144xbf16>
    %c0_14 = arith.constant 0 : index
    %c0_15 = arith.constant 0 : index
    %9 = vector.load %arg3[%c0_14, %c0_15] : memref<1x144xf32, #tpu.memory_space<vmem>>, vector<1x144xf32>
    %c0_16 = arith.constant 0 : index
    %c0_17 = arith.constant 0 : index
    %c0_18 = arith.constant 0 : index
    %10 = vector.load %arg1[%c0_16, %c0_17, %c0_18] : memref<1x32x256xf32, #tpu.memory_space<vmem>>, vector<1x32x256xf32>
    %11 = vector.shape_cast %10 : vector<1x32x256xf32> to vector<32x256xf32>
    %12 = tpu.transpose %11, [1, 0] : vector<32x256xf32> -> vector<256x32xf32>
    %13 = arith.truncf %12 : vector<256x32xf32> to vector<256x32xbf16>
    %cst_19 = arith.constant dense<0.000000e+00> : vector<256x144xf32>
    %14 = tpu.matmul %13, %8, %cst_19 {dimension_numbers = #tpu.dot_dimension_numbers<[1], [0], [0], [1], [0, 0, 1, 1], [], []>} : vector<256x32xbf16>, vector<32x144xbf16>, vector<256x144xf32> -> vector<256x144xf32>
    %15 = vector.broadcast %9 : vector<1x144xf32> to vector<256x144xf32>
    %16 = arith.addf %14, %15 : vector<256x144xf32>
    %cst_20 = arith.constant 0.000000e+00 : f32
    %17 = vector.broadcast %cst_20 : f32 to vector<256x144xf32>
    %18 = arith.maximumf %16, %17 : vector<256x144xf32>
    %cst_21 = arith.constant 6.000000e+00 : f32
    %19 = vector.broadcast %cst_21 : f32 to vector<256x144xf32>
    %20 = arith.minimumf %18, %19 : vector<256x144xf32>
    %21 = vector.shape_cast %20 : vector<256x144xf32> to vector<16x16x144xf32>
    %c1_22 = arith.constant 1 : index
    %c1_23 = arith.constant 1 : index
    %c0_24 = arith.constant 0 : index
    %22 = vector.load %arg9[%c1_22, %c1_23, %c0_24] : memref<18x18x144xf32, #tpu.memory_space<vmem>>, vector<16x16x144xf32>
    tpu.vector_store %arg9[%c1_22, %c1_23, %c0_24], %21 {strides = array<i32>} : memref<18x18x144xf32, #tpu.memory_space<vmem>>, vector<16x16x144xf32>,
    %c0_25 = arith.constant 0 : index
    %c0_26 = arith.constant 0 : index
    %23 = vector.load %arg4[%c0_25, %c0_26] : memref<9x144xf32, #tpu.memory_space<vmem>>, vector<9x144xf32>
    %c0_27 = arith.constant 0 : index
    %c0_28 = arith.constant 0 : index
    %c0_29 = arith.constant 0 : index
    %24 = vector.load %arg9[%c0_27, %c0_28, %c0_29] : memref<18x18x144xf32, #tpu.memory_space<vmem>>, vector<16x16x144xf32>
    %25 = vector.extract_strided_slice %23 {offsets = [0, 0], sizes = [1, 144], strides = [1, 1]} : vector<9x144xf32> to vector<1x144xf32>
    %26 = vector.shape_cast %25 : vector<1x144xf32> to vector<144xf32>
    %27 = vector.shape_cast %26 : vector<144xf32> to vector<1x1x144xf32>
    %28 = vector.broadcast %27 : vector<1x1x144xf32> to vector<16x16x144xf32>
    %29 = arith.mulf %24, %28 : vector<16x16x144xf32>
    %c0_30 = arith.constant 0 : index
    %c1_31 = arith.constant 1 : index
    %c0_32 = arith.constant 0 : index
    %30 = vector.load %arg9[%c0_30, %c1_31, %c0_32] : memref<18x18x144xf32, #tpu.memory_space<vmem>>, vector<16x16x144xf32>
    %31 = vector.extract_strided_slice %23 {offsets = [1, 0], sizes = [1, 144], strides = [1, 1]} : vector<9x144xf32> to vector<1x144xf32>
    %32 = vector.shape_cast %31 : vector<1x144xf32> to vector<144xf32>
    %33 = vector.shape_cast %32 : vector<144xf32> to vector<1x1x144xf32>
    %34 = vector.broadcast %33 : vector<1x1x144xf32> to vector<16x16x144xf32>
    %35 = arith.mulf %30, %34 : vector<16x16x144xf32>
    %36 = arith.addf %29, %35 : vector<16x16x144xf32>
    %c0_33 = arith.constant 0 : index
    %c2 = arith.constant 2 : index
    %c0_34 = arith.constant 0 : index
    %37 = vector.load %arg9[%c0_33, %c2, %c0_34] : memref<18x18x144xf32, #tpu.memory_space<vmem>>, vector<16x16x144xf32>
    %38 = vector.extract_strided_slice %23 {offsets = [2, 0], sizes = [1, 144], strides = [1, 1]} : vector<9x144xf32> to vector<1x144xf32>
    %39 = vector.shape_cast %38 : vector<1x144xf32> to vector<144xf32>
    %40 = vector.shape_cast %39 : vector<144xf32> to vector<1x1x144xf32>
    %41 = vector.broadcast %40 : vector<1x1x144xf32> to vector<16x16x144xf32>
    %42 = arith.mulf %37, %41 : vector<16x16x144xf32>
    %43 = arith.addf %36, %42 : vector<16x16x144xf32>
    %c1_35 = arith.constant 1 : index
    %c0_36 = arith.constant 0 : index
    %c0_37 = arith.constant 0 : index
    %44 = vector.load %arg9[%c1_35, %c0_36, %c0_37] : memref<18x18x144xf32, #tpu.memory_space<vmem>>, vector<16x16x144xf32>
    %45 = vector.extract_strided_slice %23 {offsets = [3, 0], sizes = [1, 144], strides = [1, 1]} : vector<9x144xf32> to vector<1x144xf32>
    %46 = vector.shape_cast %45 : vector<1x144xf32> to vector<144xf32>
    %47 = vector.shape_cast %46 : vector<144xf32> to vector<1x1x144xf32>
    %48 = vector.broadcast %47 : vector<1x1x144xf32> to vector<16x16x144xf32>
    %49 = arith.mulf %44, %48 : vector<16x16x144xf32>
    %50 = arith.addf %43, %49 : vector<16x16x144xf32>
    %c1_38 = arith.constant 1 : index
    %c1_39 = arith.constant 1 : index
    %c0_40 = arith.constant 0 : index
    %51 = vector.load %arg9[%c1_38, %c1_39, %c0_40] : memref<18x18x144xf32, #tpu.memory_space<vmem>>, vector<16x16x144xf32>
    %52 = vector.extract_strided_slice %23 {offsets = [4, 0], sizes = [1, 144], strides = [1, 1]} : vector<9x144xf32> to vector<1x144xf32>
    %53 = vector.shape_cast %52 : vector<1x144xf32> to vector<144xf32>
    %54 = vector.shape_cast %53 : vector<144xf32> to vector<1x1x144xf32>
    %55 = vector.broadcast %54 : vector<1x1x144xf32> to vector<16x16x144xf32>
    %56 = arith.mulf %51, %55 : vector<16x16x144xf32>
    %57 = arith.addf %50, %56 : vector<16x16x144xf32>
    %c1_41 = arith.constant 1 : index
    %c2_42 = arith.constant 2 : index
    %c0_43 = arith.constant 0 : index
    %58 = vector.load %arg9[%c1_41, %c2_42, %c0_43] : memref<18x18x144xf32, #tpu.memory_space<vmem>>, vector<16x16x144xf32>
    %59 = vector.extract_strided_slice %23 {offsets = [5, 0], sizes = [1, 144], strides = [1, 1]} : vector<9x144xf32> to vector<1x144xf32>
    %60 = vector.shape_cast %59 : vector<1x144xf32> to vector<144xf32>
    %61 = vector.shape_cast %60 : vector<144xf32> to vector<1x1x144xf32>
    %62 = vector.broadcast %61 : vector<1x1x144xf32> to vector<16x16x144xf32>
    %63 = arith.mulf %58, %62 : vector<16x16x144xf32>
    %64 = arith.addf %57, %63 : vector<16x16x144xf32>
    %c2_44 = arith.constant 2 : index
    %c0_45 = arith.constant 0 : index
    %c0_46 = arith.constant 0 : index
    %65 = vector.load %arg9[%c2_44, %c0_45, %c0_46] : memref<18x18x144xf32, #tpu.memory_space<vmem>>, vector<16x16x144xf32>
    %66 = vector.extract_strided_slice %23 {offsets = [6, 0], sizes = [1, 144], strides = [1, 1]} : vector<9x144xf32> to vector<1x144xf32>
    %67 = vector.shape_cast %66 : vector<1x144xf32> to vector<144xf32>
    %68 = vector.shape_cast %67 : vector<144xf32> to vector<1x1x144xf32>
    %69 = vector.broadcast %68 : vector<1x1x144xf32> to vector<16x16x144xf32>
    %70 = arith.mulf %65, %69 : vector<16x16x144xf32>
    %71 = arith.addf %64, %70 : vector<16x16x144xf32>
    %c2_47 = arith.constant 2 : index
    %c1_48 = arith.constant 1 : index
    %c0_49 = arith.constant 0 : index
    %72 = vector.load %arg9[%c2_47, %c1_48, %c0_49] : memref<18x18x144xf32, #tpu.memory_space<vmem>>, vector<16x16x144xf32>
    %73 = vector.extract_strided_slice %23 {offsets = [7, 0], sizes = [1, 144], strides = [1, 1]} : vector<9x144xf32> to vector<1x144xf32>
    %74 = vector.shape_cast %73 : vector<1x144xf32> to vector<144xf32>
    %75 = vector.shape_cast %74 : vector<144xf32> to vector<1x1x144xf32>
    %76 = vector.broadcast %75 : vector<1x1x144xf32> to vector<16x16x144xf32>
    %77 = arith.mulf %72, %76 : vector<16x16x144xf32>
    %78 = arith.addf %71, %77 : vector<16x16x144xf32>
    %c2_50 = arith.constant 2 : index
    %c2_51 = arith.constant 2 : index
    %c0_52 = arith.constant 0 : index
    %79 = vector.load %arg9[%c2_50, %c2_51, %c0_52] : memref<18x18x144xf32, #tpu.memory_space<vmem>>, vector<16x16x144xf32>
    %80 = vector.extract_strided_slice %23 {offsets = [8, 0], sizes = [1, 144], strides = [1, 1]} : vector<9x144xf32> to vector<1x144xf32>
    %81 = vector.shape_cast %80 : vector<1x144xf32> to vector<144xf32>
    %82 = vector.shape_cast %81 : vector<144xf32> to vector<1x1x144xf32>
    %83 = vector.broadcast %82 : vector<1x1x144xf32> to vector<16x16x144xf32>
    %84 = arith.mulf %79, %83 : vector<16x16x144xf32>
    %85 = arith.addf %78, %84 : vector<16x16x144xf32>
    %c0_53 = arith.constant 0 : index
    %c0_54 = arith.constant 0 : index
    %86 = vector.load %arg5[%c0_53, %c0_54] : memref<1x144xf32, #tpu.memory_space<vmem>>, vector<1x144xf32>
    %87 = vector.shape_cast %86 : vector<1x144xf32> to vector<1x1x144xf32>
    %88 = vector.broadcast %87 : vector<1x1x144xf32> to vector<16x16x144xf32>
    %89 = arith.addf %85, %88 : vector<16x16x144xf32>
    %cst_55 = arith.constant 0.000000e+00 : f32
    %90 = vector.broadcast %cst_55 : f32 to vector<16x16x144xf32>
    %91 = arith.maximumf %89, %90 : vector<16x16x144xf32>
    %cst_56 = arith.constant 6.000000e+00 : f32
    %92 = vector.broadcast %cst_56 : f32 to vector<16x16x144xf32>
    %93 = arith.minimumf %91, %92 : vector<16x16x144xf32>
    %94 = vector.shape_cast %93 : vector<16x16x144xf32> to vector<256x144xf32>
    %95 = arith.truncf %94 : vector<256x144xf32> to vector<256x144xbf16>
    %c0_57 = arith.constant 0 : index
    %c0_58 = arith.constant 0 : index
    %96 = vector.load %arg6[%c0_57, %c0_58] : memref<32x144xbf16, #tpu.memory_space<vmem>>, vector<32x144xbf16>
    %cst_59 = arith.constant dense<0.000000e+00> : vector<32x256xf32>
    %97 = tpu.matmul %96, %95, %cst_59 {dimension_numbers = #tpu.dot_dimension_numbers<[1], [1], [0], [0], [0, 0, 1, 0], [], []>} : vector<32x144xbf16>, vector<256x144xbf16>, vector<32x256xf32> -> vector<32x256xf32>
    %c0_60 = arith.constant 0 : index
    %c0_61 = arith.constant 0 : index
    %98 = vector.load %arg7[%c0_60, %c0_61] : memref<32x1xf32, #tpu.memory_space<vmem>>, vector<32x1xf32>
    %99 = vector.broadcast %98 : vector<32x1xf32> to vector<32x256xf32>
    %100 = arith.addf %97, %99 : vector<32x256xf32>
    %c0_62 = arith.constant 0 : index
    %c0_63 = arith.constant 0 : index
    %c0_64 = arith.constant 0 : index
    %101 = vector.load %arg1[%c0_62, %c0_63, %c0_64] : memref<1x32x256xf32, #tpu.memory_space<vmem>>, vector<1x32x256xf32>
    %102 = vector.shape_cast %101 : vector<1x32x256xf32> to vector<32x256xf32>
    %103 = arith.addf %100, %102 : vector<32x256xf32>
    %c0_65 = arith.constant 0 : index
    %c0_66 = arith.constant 0 : index
    %c0_67 = arith.constant 0 : index
    %104 = vector.load %arg8[%c0_65, %c0_66, %c0_67] : memref<1x32x256xf32, #tpu.memory_space<vmem>>, vector<1x32x256xf32>
    %105 = vector.shape_cast %104 : vector<1x32x256xf32> to vector<32x256xf32>
    %106 = vector.shape_cast %103 : vector<32x256xf32> to vector<1x32x256xf32>
    tpu.vector_store %arg8[%c0_65, %c0_66, %c0_67], %106 {strides = array<i32>} : memref<1x32x256xf32, #tpu.memory_space<vmem>>, vector<1x32x256xf32>,
    return
  }
  func.func @transform_0(%arg0: i32) -> (i32, i32, i32) {
    %c0_i32 = arith.constant 0 : i32
    %c0_i32_0 = arith.constant 0 : i32
    %c0_i32_1 = arith.constant 0 : i32
    return %arg0, %c0_i32, %c0_i32_0 : i32, i32, i32
  }
  func.func @transform_1(%arg0: i32) -> (i32, i32) {
    %c0_i32 = arith.constant 0 : i32
    %c0_i32_0 = arith.constant 0 : i32
    %c0_i32_1 = arith.constant 0 : i32
    return %c0_i32, %c0_i32_0 : i32, i32
  }
  func.func @transform_2(%arg0: i32) -> (i32, i32) {
    %c0_i32 = arith.constant 0 : i32
    %c0_i32_0 = arith.constant 0 : i32
    %c0_i32_1 = arith.constant 0 : i32
    return %c0_i32, %c0_i32_0 : i32, i32
  }
  func.func @transform_3(%arg0: i32) -> (i32, i32) {
    %c0_i32 = arith.constant 0 : i32
    %c0_i32_0 = arith.constant 0 : i32
    %c0_i32_1 = arith.constant 0 : i32
    return %c0_i32, %c0_i32_0 : i32, i32
  }
  func.func @transform_4(%arg0: i32) -> (i32, i32) {
    %c0_i32 = arith.constant 0 : i32
    %c0_i32_0 = arith.constant 0 : i32
    %c0_i32_1 = arith.constant 0 : i32
    return %c0_i32, %c0_i32_0 : i32, i32
  }
  func.func @transform_5(%arg0: i32) -> (i32, i32) {
    %c0_i32 = arith.constant 0 : i32
    %c0_i32_0 = arith.constant 0 : i32
    %c0_i32_1 = arith.constant 0 : i32
    return %c0_i32, %c0_i32_0 : i32, i32
  }
  func.func @transform_6(%arg0: i32) -> (i32, i32) {
    %c0_i32 = arith.constant 0 : i32
    %c0_i32_0 = arith.constant 0 : i32
    %c0_i32_1 = arith.constant 0 : i32
    return %c0_i32, %c0_i32_0 : i32, i32
  }
  func.func @transform_7(%arg0: i32) -> (i32, i32, i32) {
    %c0_i32 = arith.constant 0 : i32
    %c0_i32_0 = arith.constant 0 : i32
    %c0_i32_1 = arith.constant 0 : i32
    return %arg0, %c0_i32, %c0_i32_0 : i32, i32, i32
  }
}

</mosaic_0001>

<llo_original>
// kernel: mobile_bottleneck.1
$region0: #{mobile_bottleneck.1}
  #allocation0 [shape = 'u32[]', space=smem, size = 0x4, offset = 0x4, fixed_abs, tag = 'smem constant byte address 0x4 - core index']
  #allocation1 [shape = 'u32[72,128]{1,0:T(1,128)}', space=vmem, size = 0x9000, scoped, tag = 'internal scratch']
  #allocation2 [shape = 'f32[18,18,144]{2,1,0:T(8,128)}', space=vmem, size = 0x6c000, scoped, tag = 'scratch operand']
  %s0 = inlined_call_operand.vmem [shape: f32[2,32,256], index: 0, kind: input, shape index: {}]
  %s1 = inlined_call_operand.vmem [shape: bf16[32,144], index: 1, kind: input, shape index: {}]
  %s2 = inlined_call_operand.vmem [shape: f32[1,144], index: 2, kind: input, shape index: {}]
  %s3 = inlined_call_operand.vmem [shape: f32[9,144], index: 3, kind: input, shape index: {}]
  %s4 = inlined_call_operand.vmem [shape: f32[1,144], index: 4, kind: input, shape index: {}]
  %s5 = inlined_call_operand.vmem [shape: bf16[32,144], index: 5, kind: input, shape index: {}]
  %s6 = inlined_call_operand.vmem [shape: f32[32,1], index: 6, kind: input, shape index: {}]
  %s7 = inlined_call_operand.vmem [shape: f32[2,32,256], index: 7, kind: output, shape index: {}]
  %s8 = sld [smem:[#allocation0]]
  $region61: #{mobile_bottleneck.1} parent=0
    _
  %s10 = ssub.s32 1, %s8
  %s11 = scalar_select 0, %s10, %s8
  loop: start=0, step=1, limit=4
  $region2: #{mobile_bottleneck.1} parent=0 // loop_pre_header
    _
  $region3: #{mobile_bottleneck.1} parent=0 // loop_header
    %s13 = sphi 0, %s17
    %p14 = scmp.ge.s32.totalorder %s13, 4
    %s23 = sphi 0, %s25
    %s26 = sphi 0, %s23
    %s27 = sphi 0, %s26
    %s43 = sphi 0, %s27
    %s47 = sphi 0, %s47
    %s49 = sphi 0, %s47
    %s50 = sphi 0, %s49
    %s64 = sphi 0, %s50
    %s68 = sphi 0, %s68
    %s70 = sphi 0, %s68
    %s71 = sphi 0, %s70
    %s85 = sphi 0, %s71
    %s89 = sphi 0, %s89
    %s91 = sphi 0, %s89
    %s92 = sphi 0, %s91
    %s106 = sphi 0, %s92
    %s110 = sphi 0, %s110
    %s112 = sphi 0, %s110
    %s113 = sphi 0, %s112
    %s127 = sphi 0, %s113
    %s131 = sphi 0, %s131
    %s133 = sphi 0, %s131
    %s134 = sphi 0, %s133
    %s148 = sphi 0, %s134
    %s152 = sphi 0, %s152
    %s154 = sphi 0, %s152
    %s155 = sphi 0, %s154
    %s169 = sphi 0, %s155
    %s175 = sphi 0, %s177
    %s178 = sphi 0, %s175
    %s179 = sphi 0, %s178
    %s195 = sphi 0, %s179
  $region4: #{mobile_bottleneck.1} parent=0 // loop_header_branch
    %16 = sbr.rel (%p14) target = $region8
  $region5: #{mobile_bottleneck.1} parent=0 // loop_body
    %s18 = ssub.s32 %s13, 1
    %s19 = ssub.s32 %s13, 2
    %s20 = sadd.s32 %s13, 1
    %s21 = ssub.s32 %s13, %s20
    %p22 = scmp.eq.s32.totalorder %s21, 0
    %s24 = sadd.s32 %s23, 1
    %s25 = scalar_select %p22, %s23, %s24
    %p28 = pneg %p22
    %p29 = scmp.eq.s32.totalorder %s13, 1
    %p30 = por %p28, %p29
    %p31 = scmp.ne.s32.totalorder %s23, %s26
    %p32 = scmp.eq.s32.totalorder %s13, 0
    %p33 = por %p31, %p32
    %p34 = scmp.ne.s32.totalorder %s23, %s26
    %p35 = scmp.eq.s32.totalorder %s18, 1
    %p36 = por %p34, %p35
    %p37 = scmp.ne.s32.totalorder %s26, %s27
    %p38 = scmp.eq.s32.totalorder %s18, 0
    %p39 = por %p37, %p38
    %p40 = scmp.ne.s32.totalorder %s26, %s27
    %p41 = scmp.eq.s32.totalorder %s19, 1
    %p42 = por %p40, %p41
    %p44 = scmp.ne.s32.totalorder %s27, %s43
    %p45 = scmp.eq.s32.totalorder %s19, 0
    %p46 = por %p44, %p45
    %s48 = sadd.s32 %s47, 1
    %p51 = scmp.eq.s32.totalorder %s13, 1
    %p52 = scmp.ne.s32.totalorder %s47, %s49
    %p53 = scmp.eq.s32.totalorder %s13, 0
    %p54 = por %p52, %p53
    %p55 = scmp.ne.s32.totalorder %s47, %s49
    %p56 = scmp.eq.s32.totalorder %s18, 1
    %p57 = por %p55, %p56
    %p58 = scmp.ne.s32.totalorder %s49, %s50
    %p59 = scmp.eq.s32.totalorder %s18, 0
    %p60 = por %p58, %p59
    %p61 = scmp.ne.s32.totalorder %s49, %s50
    %p62 = scmp.eq.s32.totalorder %s19, 1
    %p63 = por %p61, %p62
    %p65 = scmp.ne.s32.totalorder %s50, %s64
    %p66 = scmp.eq.s32.totalorder %s19, 0
    %p67 = por %p65, %p66
    %s69 = sadd.s32 %s68, 1
    %p72 = scmp.eq.s32.totalorder %s13, 1
    %p73 = scmp.ne.s32.totalorder %s68, %s70
    %p74 = scmp.eq.s32.totalorder %s13, 0
    %p75 = por %p73, %p74
    %p76 = scmp.ne.s32.totalorder %s68, %s70
    %p77 = scmp.eq.s32.totalorder %s18, 1
    %p78 = por %p76, %p77
    %p79 = scmp.ne.s32.totalorder %s70, %s71
    %p80 = scmp.eq.s32.totalorder %s18, 0
    %p81 = por %p79, %p80
    %p82 = scmp.ne.s32.totalorder %s70, %s71
    %p83 = scmp.eq.s32.totalorder %s19, 1
    %p84 = por %p82, %p83
    %p86 = scmp.ne.s32.totalorder %s71, %s85
    %p87 = scmp.eq.s32.totalorder %s19, 0
    %p88 = por %p86, %p87
    %s90 = sadd.s32 %s89, 1
    %p93 = scmp.eq.s32.totalorder %s13, 1
    %p94 = scmp.ne.s32.totalorder %s89, %s91
    %p95 = scmp.eq.s32.totalorder %s13, 0
    %p96 = por %p94, %p95
    %p97 = scmp.ne.s32.totalorder %s89, %s91
    %p98 = scmp.eq.s32.totalorder %s18, 1
    %p99 = por %p97, %p98
    %p100 = scmp.ne.s32.totalorder %s91, %s92
    %p101 = scmp.eq.s32.totalorder %s18, 0
    %p102 = por %p100, %p101
    %p103 = scmp.ne.s32.totalorder %s91, %s92
    %p104 = scmp.eq.s32.totalorder %s19, 1
    %p105 = por %p103, %p104
    %p107 = scmp.ne.s32.totalorder %s92, %s106
    %p108 = scmp.eq.s32.totalorder %s19, 0
    %p109 = por %p107, %p108
    %s111 = sadd.s32 %s110, 1
    %p114 = scmp.eq.s32.totalorder %s13, 1
    %p115 = scmp.ne.s32.totalorder %s110, %s112
    %p116 = scmp.eq.s32.totalorder %s13, 0
    %p117 = por %p115, %p116
    %p118 = scmp.ne.s32.totalorder %s110, %s112
    %p119 = scmp.eq.s32.totalorder %s18, 1
    %p120 = por %p118, %p119
    %p121 = scmp.ne.s32.totalorder %s112, %s113
    %p122 = scmp.eq.s32.totalorder %s18, 0
    %p123 = por %p121, %p122
    %p124 = scmp.ne.s32.totalorder %s112, %s113
    %p125 = scmp.eq.s32.totalorder %s19, 1
    %p126 = por %p124, %p125
    %p128 = scmp.ne.s32.totalorder %s113, %s127
    %p129 = scmp.eq.s32.totalorder %s19, 0
    %p130 = por %p128, %p129
    %s132 = sadd.s32 %s131, 1
    %p135 = scmp.eq.s32.totalorder %s13, 1
    %p136 = scmp.ne.s32.totalorder %s131, %s133
    %p137 = scmp.eq.s32.totalorder %s13, 0
    %p138 = por %p136, %p137
    %p139 = scmp.ne.s32.totalorder %s131, %s133
    %p140 = scmp.eq.s32.totalorder %s18, 1
    %p141 = por %p139, %p140
    %p142 = scmp.ne.s32.totalorder %s133, %s134
    %p143 = scmp.eq.s32.totalorder %s18, 0
    %p144 = por %p142, %p143
    %p145 = scmp.ne.s32.totalorder %s133, %s134
    %p146 = scmp.eq.s32.totalorder %s19, 1
    %p147 = por %p145, %p146
    %p149 = scmp.ne.s32.totalorder %s134, %s148
    %p150 = scmp.eq.s32.totalorder %s19, 0
    %p151 = por %p149, %p150
    %s153 = sadd.s32 %s152, 1
    %p156 = scmp.eq.s32.totalorder %s13, 1
    %p157 = scmp.ne.s32.totalorder %s152, %s154
    %p158 = scmp.eq.s32.totalorder %s13, 0
    %p159 = por %p157, %p158
    %p160 = scmp.ne.s32.totalorder %s152, %s154
    %p161 = scmp.eq.s32.totalorder %s18, 1
    %p162 = por %p160, %p161
    %p163 = scmp.ne.s32.totalorder %s154, %s155
    %p164 = scmp.eq.s32.totalorder %s18, 0
    %p165 = por %p163, %p164
    %p166 = scmp.ne.s32.totalorder %s154, %s155
    %p167 = scmp.eq.s32.totalorder %s19, 1
    %p168 = por %p166, %p167
    %p170 = scmp.ne.s32.totalorder %s155, %s169
    %p171 = scmp.eq.s32.totalorder %s19, 0
    %p172 = por %p170, %p171
    %s173 = ssub.s32 %s13, %s20
    %p174 = scmp.eq.s32.totalorder %s173, 0
    %s176 = sadd.s32 %s175, 1
    %s177 = scalar_select %p174, %s175, %s176
    %p180 = pneg %p174
    %p181 = scmp.eq.s32.totalorder %s13, 1
    %p182 = por %p180, %p181
    %p183 = scmp.ne.s32.totalorder %s175, %s178
    %p184 = scmp.eq.s32.totalorder %s13, 0
    %p185 = por %p183, %p184
    %p186 = scmp.ne.s32.totalorder %s175, %s178
    %p187 = scmp.eq.s32.totalorder %s18, 1
    %p188 = por %p186, %p187
    %p189 = scmp.ne.s32.totalorder %s178, %s179
    %p190 = scmp.eq.s32.totalorder %s18, 0
    %p191 = por %p189, %p190
    %p192 = scmp.ne.s32.totalorder %s178, %s179
    %p193 = scmp.eq.s32.totalorder %s19, 1
    %p194 = por %p192, %p193
    %p196 = scmp.ne.s32.totalorder %s179, %s195
    %p197 = scmp.eq.s32.totalorder %s19, 0
    %p198 = por %p196, %p197
    %p199 = scmp.le.s32.totalorder 1, %s13
    %p200 = scmp.lt.s32.totalorder %s13, 3
    %p201 = pnand %p199, %p200
    %p202 = pneg %p201
    // Predicated region
    $region9: #{mobile_bottleneck.1} parent=5 // pred_check
      _
    $region10: #{mobile_bottleneck.1} parent=5 // pred_check_branch
      %204 = sbr.rel (%p201) target = $region12
    $region11: #{mobile_bottleneck.1} parent=5 // pred_region
      %s205 = ssub.s32 %s13, 1
      // Predicated region
      $region13: #{mobile_bottleneck.1} parent=11 // pred_check
        %p206 = pneg %p60
      $region14: #{mobile_bottleneck.1} parent=11 // pred_check_branch
        %208 = sbr.rel (%p206) target = $region16
      $region15: #{mobile_bottleneck.1} parent=11 // pred_region
        _
      $region16: #{mobile_bottleneck.1} parent=11 // pred_fallthru
        _
      // Predicated region
      $region17: #{mobile_bottleneck.1} parent=11 // pred_check
        %p209 = pneg %p81
      $region18: #{mobile_bottleneck.1} parent=11 // pred_check_branch
        %211 = sbr.rel (%p209) target = $region20
      $region19: #{mobile_bottleneck.1} parent=11 // pred_region
        _
      $region20: #{mobile_bottleneck.1} parent=11 // pred_fallthru
        _
      // Predicated region
      $region21: #{mobile_bottleneck.1} parent=11 // pred_check
        %p212 = pneg %p102
      $region22: #{mobile_bottleneck.1} parent=11 // pred_check_branch
        %214 = sbr.rel (%p212) target = $region24
      $region23: #{mobile_bottleneck.1} parent=11 // pred_region
        _
      $region24: #{mobile_bottleneck.1} parent=11 // pred_fallthru
        _
      // Predicated region
      $region25: #{mobile_bottleneck.1} parent=11 // pred_check
        %p215 = pneg %p123
      $region26: #{mobile_bottleneck.1} parent=11 // pred_check_branch
        %217 = sbr.rel (%p215) target = $region28
      $region27: #{mobile_bottleneck.1} parent=11 // pred_region
        _
      $region28: #{mobile_bottleneck.1} parent=11 // pred_fallthru
        _
      // Predicated region
      $region29: #{mobile_bottleneck.1} parent=11 // pred_check
        %p218 = pneg %p144
      $region30: #{mobile_bottleneck.1} parent=11 // pred_check_branch
        %220 = sbr.rel (%p218) target = $region32
      $region31: #{mobile_bottleneck.1} parent=11 // pred_region
        _
      $region32: #{mobile_bottleneck.1} parent=11 // pred_fallthru
        _
      // Predicated region
      $region33: #{mobile_bottleneck.1} parent=11 // pred_check
        %p221 = pneg %p165
      $region34: #{mobile_bottleneck.1} parent=11 // pred_check_branch
        %223 = sbr.rel (%p221) target = $region36
      $region35: #{mobile_bottleneck.1} parent=11 // pred_region
        _
      $region36: #{mobile_bottleneck.1} parent=11 // pred_fallthru
        _
    $region12: #{mobile_bottleneck.1} parent=5 // pred_fallthru
      _
    %p224 = scmp.lt.s32.totalorder %s13, 2
    // Predicated region
    $region37: #{mobile_bottleneck.1} parent=5 // pred_check
      %p225 = pneg %p224
    $region38: #{mobile_bottleneck.1} parent=5 // pred_check_branch
      %227 = sbr.rel (%p225) target = $region40
    $region39: #{mobile_bottleneck.1} parent=5 // pred_region
      // Predicated region
      $region41: #{mobile_bottleneck.1} parent=39 // pred_check
        %p228 = pneg %p33
      $region42: #{mobile_bottleneck.1} parent=39 // pred_check_branch
        %230 = sbr.rel (%p228) target = $region44
      $region43: #{mobile_bottleneck.1} parent=39 // pred_region
        %p231 = scmp.lt.s32.totalorder %s13, 1
        %s232 = scalar_select %p231, %s13, 1
        %s233 = smul.addr %s232, 8
        %s234 = smul.addr %s233, 8
        %s235 = scalar_lea.vmem %s0, %s234
      $region44: #{mobile_bottleneck.1} parent=39 // pred_fallthru
        _
    $region40: #{mobile_bottleneck.1} parent=5 // pred_fallthru
      _
    %p236 = scmp.le.s32.totalorder 1, %s13
    %p237 = scmp.lt.s32.totalorder %s13, 3
    %p238 = pnand %p236, %p237
    %p239 = pneg %p238
    // Predicated region
    $region45: #{mobile_bottleneck.1} parent=5 // pred_check
      _
    $region46: #{mobile_bottleneck.1} parent=5 // pred_check_branch
      %241 = sbr.rel (%p238) target = $region48
    $region47: #{mobile_bottleneck.1} parent=5 // pred_region
      %s242 = ssub.s32 %s13, 1
      %p243 = scmp.lt.s32.totalorder %s18, 1
      %s244 = scalar_select %p243, %s18, 1
      %s245 = smul.addr %s244, 8
      %s246 = smul.addr %s245, 8
      %s247 = scalar_lea.vmem %s0, %s246
      %p248 = pneg %p39
      %p249 = pneg %p36
      %p250 = pneg %p60
      %p251 = pneg %p57
      %p252 = pneg %p81
      %p253 = pneg %p78
      %p254 = pneg %p102
      %p255 = pneg %p99
      %p256 = pneg %p123
      %p257 = pneg %p120
      %p258 = pneg %p144
      %p259 = pneg %p141
      %p260 = pneg %p165
      %p261 = pneg %p162
      %p262 = pneg %p191
      %p263 = pneg %p188
      %p264 = scmp.lt.s32.totalorder %s18, 1
      %s265 = scalar_select %p264, %s18, 1
      %s266 = smul.addr %s265, 8
      %s267 = smul.addr %s266, 8
      %s268 = scalar_lea.vmem %s7, %s267
      %p269 = scmp.lt.s32.totalorder %s18, 1
      %s270 = scalar_select %p269, %s18, 1
      %s271 = smul.addr %s270, 8
      %s272 = smul.addr %s271, 8
      %s273 = scalar_lea.vmem %s0, %s272
      %p274 = scmp.lt.s32.totalorder %s18, 1
      %s275 = scalar_select %p274, %s18, 1
      %s276 = smul.addr %s275, 8
      %s277 = smul.addr %s276, 8
      %s278 = scalar_lea.vmem %s7, %s277
      %280 = vst [vmem:[#allocation2] sm:$0xff] 0.0
      %vm281 = vcmask 130048
      %282 = vst.msk [vmem:[#allocation2 + $0x8] sm:$0xff] %vm281, 0.0
      %283 = vst [vmem:[#allocation2 + $0x10] sm:$0xff] 0.0
      %284 = vst.msk [vmem:[#allocation2 + $0x18] sm:$0xff] %vm281, 0.0
      %285 = vst [vmem:[#allocation2 + $0x20] sm:$0x3] 0.0
      %vm286 = vcmask 123904
      %287 = vst.msk [vmem:[#allocation2 + $0x28] sm:$0x3] %vm286, 0.0
      %s288 = scalar_lea.vmem [#allocation2], 816
      %289 = vst [vmem:[%s288] sm:$0xff] 0.0
      %290 = vst.msk [vmem:[%s288 + $0x8] sm:$0xff] %vm281, 0.0
      %291 = vst [vmem:[%s288 + $0x10] sm:$0xff] 0.0
      %292 = vst.msk [vmem:[%s288 + $0x18] sm:$0xff] %vm281, 0.0
      %293 = vst [vmem:[%s288 + $0x20] sm:$0x3] 0.0
      %294 = vst.msk [vmem:[%s288 + $0x28] sm:$0x3] %vm286, 0.0
      %s295 = scalar_lea.vmem [#allocation2], 48
      %v296 = vlaneseq
      %vm297 = vcmp.ge.s32.totalorder %v296, 0
      %vm298 = vcmp.lt.s32.totalorder %v296, 144
      %vm299 = vmand %vm297, %vm298
      %300 = vst.msk [vmem:[%s295] ss:$8 sm:$0x3] %vm299, 0.0
      %301 = vst.msk [vmem:[%s295] ss:$8 sm:$0x0] %vm299, 0.0
      %s302 = scalar_lea.vmem %s295, 48 [#allocation2]
      %303 = vst.msk [vmem:[%s302] ss:$8 sm:$0x3] %vm299, 0.0
      %304 = vst.msk [vmem:[%s302] ss:$8 sm:$0x0] %vm299, 0.0
      %s305 = scalar_lea.vmem %s295, 96 [#allocation2]
      %306 = vst.msk [vmem:[%s305] ss:$8 sm:$0x3] %vm299, 0.0
      %307 = vst.msk [vmem:[%s305] ss:$8 sm:$0x0] %vm299, 0.0
      %s308 = scalar_lea.vmem %s295, 144 [#allocation2]
      %309 = vst.msk [vmem:[%s308] ss:$8 sm:$0x3] %vm299, 0.0
      %310 = vst.msk [vmem:[%s308] ss:$8 sm:$0x0] %vm299, 0.0
      %s311 = scalar_lea.vmem %s295, 192 [#allocation2]
      %312 = vst.msk [vmem:[%s311] ss:$8 sm:$0x3] %vm299, 0.0
      %313 = vst.msk [vmem:[%s311] ss:$8 sm:$0x0] %vm299, 0.0
      %s314 = scalar_lea.vmem %s295, 240 [#allocation2]
      %315 = vst.msk [vmem:[%s314] ss:$8 sm:$0x3] %vm299, 0.0
      %316 = vst.msk [vmem:[%s314] ss:$8 sm:$0x0] %vm299, 0.0
      %s317 = scalar_lea.vmem %s295, 288 [#allocation2]
      %318 = vst.msk [vmem:[%s317] ss:$8 sm:$0x3] %vm299, 0.0
      %319 = vst.msk [vmem:[%s317] ss:$8 sm:$0x0] %vm299, 0.0
      %s320 = scalar_lea.vmem %s295, 336 [#allocation2]
      %321 = vst.msk [vmem:[%s320] ss:$8 sm:$0x3] %vm299, 0.0
      %322 = vst.msk [vmem:[%s320] ss:$8 sm:$0x0] %vm299, 0.0
      %s323 = scalar_lea.vmem %s295, 384 [#allocation2]
      %324 = vst.msk [vmem:[%s323] ss:$8 sm:$0x3] %vm299, 0.0
      %325 = vst.msk [vmem:[%s323] ss:$8 sm:$0x0] %vm299, 0.0
      %s326 = scalar_lea.vmem %s295, 432 [#allocation2]
      %327 = vst.msk [vmem:[%s326] ss:$8 sm:$0x3] %vm299, 0.0
      %328 = vst.msk [vmem:[%s326] ss:$8 sm:$0x0] %vm299, 0.0
      %s329 = scalar_lea.vmem %s295, 480 [#allocation2]
      %330 = vst.msk [vmem:[%s329] ss:$8 sm:$0x3] %vm299, 0.0
      %331 = vst.msk [vmem:[%s329] ss:$8 sm:$0x0] %vm299, 0.0
      %s332 = scalar_lea.vmem %s295, 528 [#allocation2]
      %333 = vst.msk [vmem:[%s332] ss:$8 sm:$0x3] %vm299, 0.0
      %334 = vst.msk [vmem:[%s332] ss:$8 sm:$0x0] %vm299, 0.0
      %s335 = scalar_lea.vmem %s295, 576 [#allocation2]
      %336 = vst.msk [vmem:[%s335] ss:$8 sm:$0x3] %vm299, 0.0
      %337 = vst.msk [vmem:[%s335] ss:$8 sm:$0x0] %vm299, 0.0
      %s338 = scalar_lea.vmem %s295, 624 [#allocation2]
      %339 = vst.msk [vmem:[%s338] ss:$8 sm:$0x3] %vm299, 0.0
      %340 = vst.msk [vmem:[%s338] ss:$8 sm:$0x0] %vm299, 0.0
      %s341 = scalar_lea.vmem %s295, 672 [#allocation2]
      %342 = vst.msk [vmem:[%s341] ss:$8 sm:$0x3] %vm299, 0.0
      %343 = vst.msk [vmem:[%s341] ss:$8 sm:$0x0] %vm299, 0.0
      %s344 = scalar_lea.vmem %s295, 720 [#allocation2]
      %345 = vst.msk [vmem:[%s344] ss:$8 sm:$0x3] %vm299, 0.0
      %346 = vst.msk [vmem:[%s344] ss:$8 sm:$0x0] %vm299, 0.0
      %s347 = scalar_lea.vmem %s295, 33 [#allocation2]
      %348 = vst.msk [vmem:[%s347] ss:$8 sm:$0x3] %vm299, 0.0
      %349 = vst.msk [vmem:[%s347] ss:$8 sm:$0x0] %vm299, 0.0
      %s350 = scalar_lea.vmem %s295, 81 [#allocation2]
      %351 = vst.msk [vmem:[%s350] ss:$8 sm:$0x3] %vm299, 0.0
      %352 = vst.msk [vmem:[%s350] ss:$8 sm:$0x0] %vm299, 0.0
      %s353 = scalar_lea.vmem %s295, 129 [#allocation2]
      %354 = vst.msk [vmem:[%s353] ss:$8 sm:$0x3] %vm299, 0.0
      %355 = vst.msk [vmem:[%s353] ss:$8 sm:$0x0] %vm299, 0.0
      %s356 = scalar_lea.vmem %s295, 177 [#allocation2]
      %357 = vst.msk [vmem:[%s356] ss:$8 sm:$0x3] %vm299, 0.0
      %358 = vst.msk [vmem:[%s356] ss:$8 sm:$0x0] %vm299, 0.0
      %s359 = scalar_lea.vmem %s295, 225 [#allocation2]
      %360 = vst.msk [vmem:[%s359] ss:$8 sm:$0x3] %vm299, 0.0
      %361 = vst.msk [vmem:[%s359] ss:$8 sm:$0x0] %vm299, 0.0
      %s362 = scalar_lea.vmem %s295, 273 [#allocation2]
      %363 = vst.msk [vmem:[%s362] ss:$8 sm:$0x3] %vm299, 0.0
      %364 = vst.msk [vmem:[%s362] ss:$8 sm:$0x0] %vm299, 0.0
      %s365 = scalar_lea.vmem %s295, 321 [#allocation2]
      %366 = vst.msk [vmem:[%s365] ss:$8 sm:$0x3] %vm299, 0.0
      %367 = vst.msk [vmem:[%s365] ss:$8 sm:$0x0] %vm299, 0.0
      %s368 = scalar_lea.vmem %s295, 369 [#allocation2]
      %369 = vst.msk [vmem:[%s368] ss:$8 sm:$0x3] %vm299, 0.0
      %370 = vst.msk [vmem:[%s368] ss:$8 sm:$0x0] %vm299, 0.0
      %s371 = scalar_lea.vmem %s295, 417 [#allocation2]
      %372 = vst.msk [vmem:[%s371] ss:$8 sm:$0x3] %vm299, 0.0
      %373 = vst.msk [vmem:[%s371] ss:$8 sm:$0x0] %vm299, 0.0
      %s374 = scalar_lea.vmem %s295, 465 [#allocation2]
      %375 = vst.msk [vmem:[%s374] ss:$8 sm:$0x3] %vm299, 0.0
      %376 = vst.msk [vmem:[%s374] ss:$8 sm:$0x0] %vm299, 0.0
      %s377 = scalar_lea.vmem %s295, 513 [#allocation2]
      %378 = vst.msk [vmem:[%s377] ss:$8 sm:$0x3] %vm299, 0.0
      %379 = vst.msk [vmem:[%s377] ss:$8 sm:$0x0] %vm299, 0.0
      %s380 = scalar_lea.vmem %s295, 561 [#allocation2]
      %381 = vst.msk [vmem:[%s380] ss:$8 sm:$0x3] %vm299, 0.0
      %382 = vst.msk [vmem:[%s380] ss:$8 sm:$0x0] %vm299, 0.0
      %s383 = scalar_lea.vmem %s295, 609 [#allocation2]
      %384 = vst.msk [vmem:[%s383] ss:$8 sm:$0x3] %vm299, 0.0
      %385 = vst.msk [vmem:[%s383] ss:$8 sm:$0x0] %vm299, 0.0
      %s386 = scalar_lea.vmem %s295, 657 [#allocation2]
      %387 = vst.msk [vmem:[%s386] ss:$8 sm:$0x3] %vm299, 0.0
      %388 = vst.msk [vmem:[%s386] ss:$8 sm:$0x0] %vm299, 0.0
      %s389 = scalar_lea.vmem %s295, 705 [#allocation2]
      %390 = vst.msk [vmem:[%s389] ss:$8 sm:$0x3] %vm299, 0.0
      %391 = vst.msk [vmem:[%s389] ss:$8 sm:$0x0] %vm299, 0.0
      %s392 = scalar_lea.vmem %s295, 753 [#allocation2]
      %393 = vst.msk [vmem:[%s392] ss:$8 sm:$0x3] %vm299, 0.0
      %394 = vst.msk [vmem:[%s392] ss:$8 sm:$0x0] %vm299, 0.0
      %v395 = vld [vmem:[%s1] sm:$0xff]
      %v396 = vld [vmem:[%s1 + $0x8] sm:$0xff]
      %v397 = vld [vmem:[%s1 + $0x10] sm:$0xff]
      %v398 = vld [vmem:[%s1 + $0x18] sm:$0xff]
      %v399 = vld [vmem:[%s2] sm:$0x3]
      %v400 = vld [vmem:[%s273] sm:$0xff]
      %v401 = vld [vmem:[%s273 + $0x8] sm:$0xff]
      %v402 = vld [vmem:[%s273 + $0x10] sm:$0xff]
      %v403 = vld [vmem:[%s273 + $0x18] sm:$0xff]
      %v404 = vld [vmem:[%s273 + $0x20] sm:$0xff]
      %v405 = vld [vmem:[%s273 + $0x28] sm:$0xff]
      %v406 = vld [vmem:[%s273 + $0x30] sm:$0xff]
      %v407 = vld [vmem:[%s273 + $0x38] sm:$0xff]
      %408 = vxpose.xlu0.b32.start [1/16] %v400, 128
      %409 = vxpose.xlu0.b32.cont [2/16] %v402, 128
      %410 = vxpose.xlu0.b32.cont [3/16] %v404, 128
      %411 = vxpose.xlu0.b32.cont [4/16] %v406, 128
      %412 = vxpose.xlu0.b32.cont [5/16] 0.0, 128
      %413 = vxpose.xlu0.b32.cont [6/16] 0.0, 128
      %414 = vxpose.xlu0.b32.cont [7/16] 0.0, 128
      %415 = vxpose.xlu0.b32.cont [8/16] 0.0, 128
      %416 = vxpose.xlu0.b32.cont [9/16] 0.0, 128
      %417 = vxpose.xlu0.b32.cont [10/16] 0.0, 128
      %418 = vxpose.xlu0.b32.cont [11/16] 0.0, 128
      %419 = vxpose.xlu0.b32.cont [12/16] 0.0, 128
      %420 = vxpose.xlu0.b32.cont [13/16] 0.0, 128
      %421 = vxpose.xlu0.b32.cont [14/16] 0.0, 128
      %422 = vxpose.xlu0.b32.cont [15/16] 0.0, 128
      %423 = vxpose.xlu0.b32.end [16/16] 0.0, 128
      %v424 = vpop.trf.xlu0
      %v425 = vpop.trf.xlu0
      %v426 = vpop.trf.xlu0
      %v427 = vpop.trf.xlu0
      %v428 = vpop.trf.xlu0
      %v429 = vpop.trf.xlu0
      %v430 = vpop.trf.xlu0
      %v431 = vpop.trf.xlu0
      %v432 = vpop.trf.xlu0
      %v433 = vpop.trf.xlu0
      %v434 = vpop.trf.xlu0
      %v435 = vpop.trf.xlu0
      %v436 = vpop.trf.xlu0
      %v437 = vpop.trf.xlu0
      %v438 = vpop.trf.xlu0
      %v439 = vpop.trf.xlu0
      %440 = vxpose.xlu0.b32.start [1/16] %v401, 128
      %441 = vxpose.xlu0.b32.cont [2/16] %v403, 128
      %442 = vxpose.xlu0.b32.cont [3/16] %v405, 128
      %443 = vxpose.xlu0.b32.cont [4/16] %v407, 128
      %444 = vxpose.xlu0.b32.cont [5/16] 0.0, 128
      %445 = vxpose.xlu0.b32.cont [6/16] 0.0, 128
      %446 = vxpose.xlu0.b32.cont [7/16] 0.0, 128
      %447 = vxpose.xlu0.b32.cont [8/16] 0.0, 128
      %448 = vxpose.xlu0.b32.cont [9/16] 0.0, 128
      %449 = vxpose.xlu0.b32.cont [10/16] 0.0, 128
      %450 = vxpose.xlu0.b32.cont [11/16] 0.0, 128
      %451 = vxpose.xlu0.b32.cont [12/16] 0.0, 128
      %452 = vxpose.xlu0.b32.cont [13/16] 0.0, 128
      %453 = vxpose.xlu0.b32.cont [14/16] 0.0, 128
      %454 = vxpose.xlu0.b32.cont [15/16] 0.0, 128
      %455 = vxpose.xlu0.b32.end [16/16] 0.0, 128
      %v456 = vpop.trf.xlu0
      %v457 = vpop.trf.xlu0
      %v458 = vpop.trf.xlu0
      %v459 = vpop.trf.xlu0
      %v460 = vpop.trf.xlu0
      %v461 = vpop.trf.xlu0
      %v462 = vpop.trf.xlu0
      %v463 = vpop.trf.xlu0
      %v464 = vpop.trf.xlu0
      %v465 = vpop.trf.xlu0
      %v466 = vpop.trf.xlu0
      %v467 = vpop.trf.xlu0
      %v468 = vpop.trf.xlu0
      %v469 = vpop.trf.xlu0
      %v470 = vpop.trf.xlu0
      %v471 = vpop.trf.xlu0
      %v472 = vpack.c.bf16 %v425, %v424
      %v473 = vpack.c.bf16 %v427, %v426
      %v474 = vpack.c.bf16 %v429, %v428
      %v475 = vpack.c.bf16 %v431, %v430
      %v476 = vpack.c.bf16 %v433, %v432
      %v477 = vpack.c.bf16 %v435, %v434
      %v478 = vpack.c.bf16 %v437, %v436
      %v479 = vpack.c.bf16 %v439, %v438
      %v480 = vpack.c.bf16 %v457, %v456
      %v481 = vpack.c.bf16 %v459, %v458
      %v482 = vpack.c.bf16 %v461, %v460
      %v483 = vpack.c.bf16 %v463, %v462
      %v484 = vpack.c.bf16 %v465, %v464
      %v485 = vpack.c.bf16 %v467, %v466
      %v486 = vpack.c.bf16 %v469, %v468
      %v487 = vpack.c.bf16 %v471, %v470
      %v489 = vperm.slane %v399, 0
      %v490 = vperm.slane %v399, 1
      %v497 = vunpack.c.l.b16 %v395
      %v498 = vunpack.c.h.b16 %v395
      %v499 = vunpack.c.l.b16 %v396
      %v500 = vunpack.c.h.b16 %v396
      %v501 = vunpack.c.l.b16 %v397
      %v502 = vunpack.c.h.b16 %v397
      %v503 = vunpack.c.l.b16 %v398
      %v504 = vunpack.c.h.b16 %v398
      %v505 = vpack.c.b16 %v499, %v497
      %v506 = vpack.c.b16 %v500, %v498
      %v507 = vpack.c.b16 %v503, %v501
      %v508 = vpack.c.b16 %v504, %v502
      %vm513 = vcmask 261120
      %v515 = vsel %vm513, %v472, 0
      %v518 = vsel %vm513, %v473, 0
      %v521 = vsel %vm513, %v474, 0
      %v524 = vsel %vm513, %v475, 0
      %v527 = vsel %vm513, %v476, 0
      %v530 = vsel %vm513, %v477, 0
      %v533 = vsel %vm513, %v478, 0
      %v536 = vsel %vm513, %v479, 0
      %v539 = vsel %vm513, %v480, 0
      %v542 = vsel %vm513, %v481, 0
      %v545 = vsel %vm513, %v482, 0
      %v548 = vsel %vm513, %v483, 0
      %v551 = vsel %vm513, %v484, 0
      %v554 = vsel %vm513, %v485, 0
      %v557 = vsel %vm513, %v486, 0
      %v560 = vsel %vm513, %v487, 0
      %562 = vmatpush.bf16.msra.mxu0 0
      %563 = vmatpush.bf16.msra.mxu0 0
      %564 = vmatpush.bf16.msra.mxu0 0
      %565 = vmatpush.bf16.msra.mxu0 0
      %566 = vmatpush.bf16.msra.mxu0 0
      %567 = vmatpush.bf16.msra.mxu0 0
      %568 = vmatpush.bf16.msra.mxu0 %v507
      %569 = vmatpush.bf16.msra.mxu0 %v505
      %570 = vmatmul.bf16.gmra.mxu0 %v515
      %v571 = vpop.f32.mrf.mxu0
      %v572 = vadd.f32 %v489, %v571
      %v573 = vpop.f32.mrf.mxu0
      %v574 = vadd.f32 %v489, %v573
      %575 = vmatmul.bf16.gmra.mxu0 %v518
      %v576 = vpop.f32.mrf.mxu0
      %v577 = vadd.f32 %v489, %v576
      %v578 = vpop.f32.mrf.mxu0
      %v579 = vadd.f32 %v489, %v578
      %580 = vmatmul.bf16.gmra.mxu0 %v521
      %v581 = vpop.f32.mrf.mxu0
      %v582 = vadd.f32 %v489, %v581
      %v583 = vpop.f32.mrf.mxu0
      %v584 = vadd.f32 %v489, %v583
      %585 = vmatmul.bf16.gmra.mxu0 %v524
      %v586 = vpop.f32.mrf.mxu0
      %v587 = vadd.f32 %v489, %v586
      %v588 = vpop.f32.mrf.mxu0
      %v589 = vadd.f32 %v489, %v588
      %590 = vmatmul.bf16.gmra.mxu0 %v527
      %v591 = vpop.f32.mrf.mxu0
      %v592 = vadd.f32 %v489, %v591
      %v593 = vpop.f32.mrf.mxu0
      %v594 = vadd.f32 %v489, %v593
      %595 = vmatmul.bf16.gmra.mxu0 %v530
      %v596 = vpop.f32.mrf.mxu0
      %v597 = vadd.f32 %v489, %v596
      %v598 = vpop.f32.mrf.mxu0
      %v599 = vadd.f32 %v489, %v598
      %600 = vmatmul.bf16.gmra.mxu0 %v533
      %v601 = vpop.f32.mrf.mxu0
      %v602 = vadd.f32 %v489, %v601
      %v603 = vpop.f32.mrf.mxu0
      %v604 = vadd.f32 %v489, %v603
      %605 = vmatmul.bf16.gmra.mxu0 %v536
      %v606 = vpop.f32.mrf.mxu0
      %v607 = vadd.f32 %v489, %v606
      %v608 = vpop.f32.mrf.mxu0
      %v609 = vadd.f32 %v489, %v608
      %610 = vmatmul.bf16.gmra.mxu0 %v539
      %v611 = vpop.f32.mrf.mxu0
      %v612 = vadd.f32 %v489, %v611
      %v613 = vpop.f32.mrf.mxu0
      %v614 = vadd.f32 %v489, %v613
      %615 = vmatmul.bf16.gmra.mxu0 %v542
      %v616 = vpop.f32.mrf.mxu0
      %v617 = vadd.f32 %v489, %v616
      %v618 = vpop.f32.mrf.mxu0
      %v619 = vadd.f32 %v489, %v618
      %620 = vmatmul.bf16.gmra.mxu0 %v545
      %v621 = vpop.f32.mrf.mxu0
      %v622 = vadd.f32 %v489, %v621
      %v623 = vpop.f32.mrf.mxu0
      %v624 = vadd.f32 %v489, %v623
      %625 = vmatmul.bf16.gmra.mxu0 %v548
      %v626 = vpop.f32.mrf.mxu0
      %v627 = vadd.f32 %v489, %v626
      %v628 = vpop.f32.mrf.mxu0
      %v629 = vadd.f32 %v489, %v628
      %630 = vmatmul.bf16.gmra.mxu0 %v551
      %v631 = vpop.f32.mrf.mxu0
      %v632 = vadd.f32 %v489, %v631
      %v633 = vpop.f32.mrf.mxu0
      %v634 = vadd.f32 %v489, %v633
      %635 = vmatmul.bf16.gmra.mxu0 %v554
      %v636 = vpop.f32.mrf.mxu0
      %v637 = vadd.f32 %v489, %v636
      %v638 = vpop.f32.mrf.mxu0
      %v639 = vadd.f32 %v489, %v638
      %640 = vmatmul.bf16.gmra.mxu0 %v557
      %v641 = vpop.f32.mrf.mxu0
      %v642 = vadd.f32 %v489, %v641
      %v643 = vpop.f32.mrf.mxu0
      %v644 = vadd.f32 %v489, %v643
      %645 = vmatmul.bf16.gmra.mxu0 %v560
      %v646 = vpop.f32.mrf.mxu0
      %v647 = vadd.f32 %v489, %v646
      %v648 = vpop.f32.mrf.mxu0
      %v649 = vadd.f32 %v489, %v648
      %650 = vdwg.mxu0
      %651 = vmatpush.bf16.msra.mxu0 0
      %652 = vmatpush.bf16.msra.mxu0 0
      %653 = vmatpush.bf16.msra.mxu0 0
      %654 = vmatpush.bf16.msra.mxu0 0
      %655 = vmatpush.bf16.msra.mxu0 0
      %656 = vmatpush.bf16.msra.mxu0 0
      %657 = vmatpush.bf16.msra.mxu0 %v508
      %658 = vmatpush.bf16.msra.mxu0 %v506
      %659 = vmatmul.bf16.gmra.mxu0 %v515
      %v660 = vpop.f32.mrf.mxu0
      %v661 = vadd.f32 %v490, %v660
      %v662 = vpop.f32.mrf.mxu0
      %v663 = vadd.f32 %v490, %v662
      %664 = vmatmul.bf16.gmra.mxu0 %v518
      %v665 = vpop.f32.mrf.mxu0
      %v666 = vadd.f32 %v490, %v665
      %v667 = vpop.f32.mrf.mxu0
      %v668 = vadd.f32 %v490, %v667
      %669 = vmatmul.bf16.gmra.mxu0 %v521
      %v670 = vpop.f32.mrf.mxu0
      %v671 = vadd.f32 %v490, %v670
      %v672 = vpop.f32.mrf.mxu0
      %v673 = vadd.f32 %v490, %v672
      %674 = vmatmul.bf16.gmra.mxu0 %v524
      %v675 = vpop.f32.mrf.mxu0
      %v676 = vadd.f32 %v490, %v675
      %v677 = vpop.f32.mrf.mxu0
      %v678 = vadd.f32 %v490, %v677
      %679 = vmatmul.bf16.gmra.mxu0 %v527
      %v680 = vpop.f32.mrf.mxu0
      %v681 = vadd.f32 %v490, %v680
      %v682 = vpop.f32.mrf.mxu0
      %v683 = vadd.f32 %v490, %v682
      %684 = vmatmul.bf16.gmra.mxu0 %v530
      %v685 = vpop.f32.mrf.mxu0
      %v686 = vadd.f32 %v490, %v685
      %v687 = vpop.f32.mrf.mxu0
      %v688 = vadd.f32 %v490, %v687
      %689 = vmatmul.bf16.gmra.mxu0 %v533
      %v690 = vpop.f32.mrf.mxu0
      %v691 = vadd.f32 %v490, %v690
      %v692 = vpop.f32.mrf.mxu0
      %v693 = vadd.f32 %v490, %v692
      %694 = vmatmul.bf16.gmra.mxu0 %v536
      %v695 = vpop.f32.mrf.mxu0
      %v696 = vadd.f32 %v490, %v695
      %v697 = vpop.f32.mrf.mxu0
      %v698 = vadd.f32 %v490, %v697
      %699 = vmatmul.bf16.gmra.mxu0 %v539
      %v700 = vpop.f32.mrf.mxu0
      %v701 = vadd.f32 %v490, %v700
      %v702 = vpop.f32.mrf.mxu0
      %v703 = vadd.f32 %v490, %v702
      %704 = vmatmul.bf16.gmra.mxu0 %v542
      %v705 = vpop.f32.mrf.mxu0
      %v706 = vadd.f32 %v490, %v705
      %v707 = vpop.f32.mrf.mxu0
      %v708 = vadd.f32 %v490, %v707
      %709 = vmatmul.bf16.gmra.mxu0 %v545
      %v710 = vpop.f32.mrf.mxu0
      %v711 = vadd.f32 %v490, %v710
      %v712 = vpop.f32.mrf.mxu0
      %v713 = vadd.f32 %v490, %v712
      %714 = vmatmul.bf16.gmra.mxu0 %v548
      %v715 = vpop.f32.mrf.mxu0
      %v716 = vadd.f32 %v490, %v715
      %v717 = vpop.f32.mrf.mxu0
      %v718 = vadd.f32 %v490, %v717
      %719 = vmatmul.bf16.gmra.mxu0 %v551
      %v720 = vpop.f32.mrf.mxu0
      %v721 = vadd.f32 %v490, %v720
      %v722 = vpop.f32.mrf.mxu0
      %v723 = vadd.f32 %v490, %v722
      %724 = vmatmul.bf16.gmra.mxu0 %v554
      %v725 = vpop.f32.mrf.mxu0
      %v726 = vadd.f32 %v490, %v725
      %v727 = vpop.f32.mrf.mxu0
      %v728 = vadd.f32 %v490, %v727
      %729 = vmatmul.bf16.gmra.mxu0 %v557
      %v730 = vpop.f32.mrf.mxu0
      %v731 = vadd.f32 %v490, %v730
      %v732 = vpop.f32.mrf.mxu0
      %v733 = vadd.f32 %v490, %v732
      %734 = vmatmul.bf16.gmra.mxu0 %v560
      %v735 = vpop.f32.mrf.mxu0
      %v736 = vadd.f32 %v490, %v735
      %v737 = vpop.f32.mrf.mxu0
      %v738 = vadd.f32 %v490, %v737
      %739 = vdwg.mxu0
      %v740 = vmax.f32 %v572, 0.0
      %v741 = vmax.f32 %v661, 0.0
      %v742 = vmax.f32 %v574, 0.0
      %v743 = vmax.f32 %v663, 0.0
      %v744 = vmax.f32 %v577, 0.0
      %v745 = vmax.f32 %v666, 0.0
      %v746 = vmax.f32 %v579, 0.0
      %v747 = vmax.f32 %v668, 0.0
      %v748 = vmax.f32 %v582, 0.0
      %v749 = vmax.f32 %v671, 0.0
      %v750 = vmax.f32 %v584, 0.0
      %v751 = vmax.f32 %v673, 0.0
      %v752 = vmax.f32 %v587, 0.0
      %v753 = vmax.f32 %v676, 0.0
      %v754 = vmax.f32 %v589, 0.0
      %v755 = vmax.f32 %v678, 0.0
      %v756 = vmax.f32 %v592, 0.0
      %v757 = vmax.f32 %v681, 0.0
      %v758 = vmax.f32 %v594, 0.0
      %v759 = vmax.f32 %v683, 0.0
      %v760 = vmax.f32 %v597, 0.0
      %v761 = vmax.f32 %v686, 0.0
      %v762 = vmax.f32 %v599, 0.0
      %v763 = vmax.f32 %v688, 0.0
      %v764 = vmax.f32 %v602, 0.0
      %v765 = vmax.f32 %v691, 0.0
      %v766 = vmax.f32 %v604, 0.0
      %v767 = vmax.f32 %v693, 0.0
      %v768 = vmax.f32 %v607, 0.0
      %v769 = vmax.f32 %v696, 0.0
      %v770 = vmax.f32 %v609, 0.0
      %v771 = vmax.f32 %v698, 0.0
      %v772 = vmax.f32 %v612, 0.0
      %v773 = vmax.f32 %v701, 0.0
      %v774 = vmax.f32 %v614, 0.0
      %v775 = vmax.f32 %v703, 0.0
      %v776 = vmax.f32 %v617, 0.0
      %v777 = vmax.f32 %v706, 0.0
      %v778 = vmax.f32 %v619, 0.0
      %v779 = vmax.f32 %v708, 0.0
      %v780 = vmax.f32 %v622, 0.0
      %v781 = vmax.f32 %v711, 0.0
      %v782 = vmax.f32 %v624, 0.0
      %v783 = vmax.f32 %v713, 0.0
      %v784 = vmax.f32 %v627, 0.0
      %v785 = vmax.f32 %v716, 0.0
      %v786 = vmax.f32 %v629, 0.0
      %v787 = vmax.f32 %v718, 0.0
      %v788 = vmax.f32 %v632, 0.0
      %v789 = vmax.f32 %v721, 0.0
      %v790 = vmax.f32 %v634, 0.0
      %v791 = vmax.f32 %v723, 0.0
      %v792 = vmax.f32 %v637, 0.0
      %v793 = vmax.f32 %v726, 0.0
      %v794 = vmax.f32 %v639, 0.0
      %v795 = vmax.f32 %v728, 0.0
      %v796 = vmax.f32 %v642, 0.0
      %v797 = vmax.f32 %v731, 0.0
      %v798 = vmax.f32 %v644, 0.0
      %v799 = vmax.f32 %v733, 0.0
      %v800 = vmax.f32 %v647, 0.0
      %v801 = vmax.f32 %v736, 0.0
      %v802 = vmax.f32 %v649, 0.0
      %v803 = vmax.f32 %v738, 0.0
      %v804 = vmin.f32 %v740, 6.0
      %v805 = vmin.f32 %v741, 6.0
      %v806 = vmin.f32 %v742, 6.0
      %v807 = vmin.f32 %v743, 6.0
      %v808 = vmin.f32 %v744, 6.0
      %v809 = vmin.f32 %v745, 6.0
      %v810 = vmin.f32 %v746, 6.0
      %v811 = vmin.f32 %v747, 6.0
      %v812 = vmin.f32 %v748, 6.0
      %v813 = vmin.f32 %v749, 6.0
      %v814 = vmin.f32 %v750, 6.0
      %v815 = vmin.f32 %v751, 6.0
      %v816 = vmin.f32 %v752, 6.0
      %v817 = vmin.f32 %v753, 6.0
      %v818 = vmin.f32 %v754, 6.0
      %v819 = vmin.f32 %v755, 6.0
      %v820 = vmin.f32 %v756, 6.0
      %v821 = vmin.f32 %v757, 6.0
      %v822 = vmin.f32 %v758, 6.0
      %v823 = vmin.f32 %v759, 6.0
      %v824 = vmin.f32 %v760, 6.0
      %v825 = vmin.f32 %v761, 6.0
      %v826 = vmin.f32 %v762, 6.0
      %v827 = vmin.f32 %v763, 6.0
      %v828 = vmin.f32 %v764, 6.0
      %v829 = vmin.f32 %v765, 6.0
      %v830 = vmin.f32 %v766, 6.0
      %v831 = vmin.f32 %v767, 6.0
      %v832 = vmin.f32 %v768, 6.0
      %v833 = vmin.f32 %v769, 6.0
      %v834 = vmin.f32 %v770, 6.0
      %v835 = vmin.f32 %v771, 6.0
      %v836 = vmin.f32 %v772, 6.0
      %v837 = vmin.f32 %v773, 6.0
      %v838 = vmin.f32 %v774, 6.0
      %v839 = vmin.f32 %v775, 6.0
      %v840 = vmin.f32 %v776, 6.0
      %v841 = vmin.f32 %v777, 6.0
      %v842 = vmin.f32 %v778, 6.0
      %v843 = vmin.f32 %v779, 6.0
      %v844 = vmin.f32 %v780, 6.0
      %v845 = vmin.f32 %v781, 6.0
      %v846 = vmin.f32 %v782, 6.0
      %v847 = vmin.f32 %v783, 6.0
      %v848 = vmin.f32 %v784, 6.0
      %v849 = vmin.f32 %v785, 6.0
      %v850 = vmin.f32 %v786, 6.0
      %v851 = vmin.f32 %v787, 6.0
      %v852 = vmin.f32 %v788, 6.0
      %v853 = vmin.f32 %v789, 6.0
      %v854 = vmin.f32 %v790, 6.0
      %v855 = vmin.f32 %v791, 6.0
      %v856 = vmin.f32 %v792, 6.0
      %v857 = vmin.f32 %v793, 6.0
      %v858 = vmin.f32 %v794, 6.0
      %v859 = vmin.f32 %v795, 6.0
      %v860 = vmin.f32 %v796, 6.0
      %v861 = vmin.f32 %v797, 6.0
      %v862 = vmin.f32 %v798, 6.0
      %v863 = vmin.f32 %v799, 6.0
      %v864 = vmin.f32 %v800, 6.0
      %v865 = vmin.f32 %v801, 6.0
      %v866 = vmin.f32 %v802, 6.0
      %v867 = vmin.f32 %v803, 6.0
      %vm932 = vcmask 1040384
      %v933 = vrot.slane %v804, 7
      %v934 = vrot.slane %v805, 7
      %v935 = vrot.slane %v806, 7
      %v936 = vsel %vm932, %v933, %v935
      %v937 = vrot.slane %v807, 7
      %v938 = vsel %vm932, %v934, %v937
      %v939 = vrot.slane %v808, 7
      %v940 = vrot.slane %v809, 7
      %v941 = vrot.slane %v810, 7
      %v942 = vsel %vm932, %v939, %v941
      %v943 = vrot.slane %v811, 7
      %v944 = vsel %vm932, %v940, %v943
      %v945 = vrot.slane %v812, 7
      %v946 = vrot.slane %v813, 7
      %v947 = vrot.slane %v814, 7
      %v948 = vsel %vm932, %v945, %v947
      %v949 = vrot.slane %v815, 7
      %v950 = vsel %vm932, %v946, %v949
      %v951 = vrot.slane %v816, 7
      %v952 = vrot.slane %v817, 7
      %v953 = vrot.slane %v818, 7
      %v954 = vsel %vm932, %v951, %v953
      %v955 = vrot.slane %v819, 7
      %v956 = vsel %vm932, %v952, %v955
      %v957 = vrot.slane %v820, 7
      %v958 = vrot.slane %v821, 7
      %v959 = vrot.slane %v822, 7
      %v960 = vsel %vm932, %v957, %v959
      %v961 = vrot.slane %v823, 7
      %v962 = vsel %vm932, %v958, %v961
      %v963 = vrot.slane %v824, 7
      %v964 = vrot.slane %v825, 7
      %v965 = vrot.slane %v826, 7
      %v966 = vsel %vm932, %v963, %v965
      %v967 = vrot.slane %v827, 7
      %v968 = vsel %vm932, %v964, %v967
      %v969 = vrot.slane %v828, 7
      %v970 = vrot.slane %v829, 7
      %v971 = vrot.slane %v830, 7
      %v972 = vsel %vm932, %v969, %v971
      %v973 = vrot.slane %v831, 7
      %v974 = vsel %vm932, %v970, %v973
      %v975 = vrot.slane %v832, 7
      %v976 = vrot.slane %v833, 7
      %v977 = vrot.slane %v834, 7
      %v978 = vsel %vm932, %v975, %v977
      %v979 = vrot.slane %v835, 7
      %v980 = vsel %vm932, %v976, %v979
      %v981 = vrot.slane %v836, 7
      %v982 = vrot.slane %v837, 7
      %v983 = vrot.slane %v838, 7
      %v984 = vsel %vm932, %v981, %v983
      %v985 = vrot.slane %v839, 7
      %v986 = vsel %vm932, %v982, %v985
      %v987 = vrot.slane %v840, 7
      %v988 = vrot.slane %v841, 7
      %v989 = vrot.slane %v842, 7
      %v990 = vsel %vm932, %v987, %v989
      %v991 = vrot.slane %v843, 7
      %v992 = vsel %vm932, %v988, %v991
      %v993 = vrot.slane %v844, 7
      %v994 = vrot.slane %v845, 7
      %v995 = vrot.slane %v846, 7
      %v996 = vsel %vm932, %v993, %v995
      %v997 = vrot.slane %v847, 7
      %v998 = vsel %vm932, %v994, %v997
      %v999 = vrot.slane %v848, 7
      %v1000 = vrot.slane %v849, 7
      %v1001 = vrot.slane %v850, 7
      %v1002 = vsel %vm932, %v999, %v1001
      %v1003 = vrot.slane %v851, 7
      %v1004 = vsel %vm932, %v1000, %v1003
      %v1005 = vrot.slane %v852, 7
      %v1006 = vrot.slane %v853, 7
      %v1007 = vrot.slane %v854, 7
      %v1008 = vsel %vm932, %v1005, %v1007
      %v1009 = vrot.slane %v855, 7
      %v1010 = vsel %vm932, %v1006, %v1009
      %v1011 = vrot.slane %v856, 7
      %v1012 = vrot.slane %v857, 7
      %v1013 = vrot.slane %v858, 7
      %v1014 = vsel %vm932, %v1011, %v1013
      %v1015 = vrot.slane %v859, 7
      %v1016 = vsel %vm932, %v1012, %v1015
      %v1017 = vrot.slane %v860, 7
      %v1018 = vrot.slane %v861, 7
      %v1019 = vrot.slane %v862, 7
      %v1020 = vsel %vm932, %v1017, %v1019
      %v1021 = vrot.slane %v863, 7
      %v1022 = vsel %vm932, %v1018, %v1021
      %v1023 = vrot.slane %v864, 7
      %v1024 = vrot.slane %v865, 7
      %v1025 = vrot.slane %v866, 7
      %v1026 = vsel %vm932, %v1023, %v1025
      %v1027 = vrot.slane %v867, 7
      %v1028 = vsel %vm932, %v1024, %v1027
      %1125 = vst [vmem:[%s295] sm:$0xfe] %v933
      %vm1126 = vcmask 130049
      %1127 = vst.msk [vmem:[%s295 + $0x8] sm:$0xfe] %vm1126, %v934
      %1128 = vst [vmem:[%s295 + $0x10] sm:$0xff] %v936
      %1129 = vst.msk [vmem:[%s295 + $0x18] sm:$0xff] %vm281, %v938
      %1130 = vst [vmem:[%s295 + $0x20] sm:$0x1] %v935
      %vm1131 = vcmask 122880
      %1132 = vst.msk [vmem:[%s295 + $0x28] sm:$0x1] %vm1131, %v937
      %1133 = vst [vmem:[%s295 + $0x30] sm:$0xfe] %v939
      %1134 = vst.msk [vmem:[%s295 + $0x38] sm:$0xfe] %vm1126, %v940
      %1135 = vst [vmem:[%s295 + $0x40] sm:$0xff] %v942
      %1136 = vst.msk [vmem:[%s295 + $0x48] sm:$0xff] %vm281, %v944
      %1137 = vst [vmem:[%s295 + $0x50] sm:$0x1] %v941
      %1138 = vst.msk [vmem:[%s295 + $0x58] sm:$0x1] %vm1131, %v943
      %1139 = vst [vmem:[%s295 + $0x60] sm:$0xfe] %v945
      %1140 = vst.msk [vmem:[%s295 + $0x68] sm:$0xfe] %vm1126, %v946
      %1141 = vst [vmem:[%s295 + $0x70] sm:$0xff] %v948
      %1142 = vst.msk [vmem:[%s295 + $0x78] sm:$0xff] %vm281, %v950
      %1143 = vst [vmem:[%s295 + $0x80] sm:$0x1] %v947
      %1144 = vst.msk [vmem:[%s295 + $0x88] sm:$0x1] %vm1131, %v949
      %1145 = vst [vmem:[%s295 + $0x90] sm:$0xfe] %v951
      %1146 = vst.msk [vmem:[%s295 + $0x98] sm:$0xfe] %vm1126, %v952
      %1147 = vst [vmem:[%s295 + $0xa0] sm:$0xff] %v954
      %1148 = vst.msk [vmem:[%s295 + $0xa8] sm:$0xff] %vm281, %v956
      %1149 = vst [vmem:[%s295 + $0xb0] sm:$0x1] %v953
      %1150 = vst.msk [vmem:[%s295 + $0xb8] sm:$0x1] %vm1131, %v955
      %1151 = vst [vmem:[%s295 + $0xc0] sm:$0xfe] %v957
      %1152 = vst.msk [vmem:[%s295 + $0xc8] sm:$0xfe] %vm1126, %v958
      %1153 = vst [vmem:[%s295 + $0xd0] sm:$0xff] %v960
      %1154 = vst.msk [vmem:[%s295 + $0xd8] sm:$0xff] %vm281, %v962
      %1155 = vst [vmem:[%s295 + $0xe0] sm:$0x1] %v959
      %1156 = vst.msk [vmem:[%s295 + $0xe8] sm:$0x1] %vm1131, %v961
      %1157 = vst [vmem:[%s295 + $0xf0] sm:$0xfe] %v963
      %1158 = vst.msk [vmem:[%s295 + $0xf8] sm:$0xfe] %vm1126, %v964
      %1159 = vst [vmem:[%s295 + $0x100] sm:$0xff] %v966
      %1160 = vst.msk [vmem:[%s295 + $0x108] sm:$0xff] %vm281, %v968
      %1161 = vst [vmem:[%s295 + $0x110] sm:$0x1] %v965
      %1162 = vst.msk [vmem:[%s295 + $0x118] sm:$0x1] %vm1131, %v967
      %1163 = vst [vmem:[%s295 + $0x120] sm:$0xfe] %v969
      %1164 = vst.msk [vmem:[%s295 + $0x128] sm:$0xfe] %vm1126, %v970
      %1165 = vst [vmem:[%s295 + $0x130] sm:$0xff] %v972
      %1166 = vst.msk [vmem:[%s295 + $0x138] sm:$0xff] %vm281, %v974
      %1167 = vst [vmem:[%s295 + $0x140] sm:$0x1] %v971
      %1168 = vst.msk [vmem:[%s295 + $0x148] sm:$0x1] %vm1131, %v973
      %1169 = vst [vmem:[%s295 + $0x150] sm:$0xfe] %v975
      %1170 = vst.msk [vmem:[%s295 + $0x158] sm:$0xfe] %vm1126, %v976
      %1171 = vst [vmem:[%s295 + $0x160] sm:$0xff] %v978
      %1172 = vst.msk [vmem:[%s295 + $0x168] sm:$0xff] %vm281, %v980
      %1173 = vst [vmem:[%s295 + $0x170] sm:$0x1] %v977
      %1174 = vst.msk [vmem:[%s295 + $0x178] sm:$0x1] %vm1131, %v979
      %1175 = vst [vmem:[%s295 + $0x180] sm:$0xfe] %v981
      %1176 = vst.msk [vmem:[%s295 + $0x188] sm:$0xfe] %vm1126, %v982
      %1177 = vst [vmem:[%s295 + $0x190] sm:$0xff] %v984
      %1178 = vst.msk [vmem:[%s295 + $0x198] sm:$0xff] %vm281, %v986
      %1179 = vst [vmem:[%s295 + $0x1a0] sm:$0x1] %v983
      %1180 = vst.msk [vmem:[%s295 + $0x1a8] sm:$0x1] %vm1131, %v985
      %1181 = vst [vmem:[%s295 + $0x1b0] sm:$0xfe] %v987
      %1182 = vst.msk [vmem:[%s295 + $0x1b8] sm:$0xfe] %vm1126, %v988
      %1183 = vst [vmem:[%s295 + $0x1c0] sm:$0xff] %v990
      %1184 = vst.msk [vmem:[%s295 + $0x1c8] sm:$0xff] %vm281, %v992
      %1185 = vst [vmem:[%s295 + $0x1d0] sm:$0x1] %v989
      %1186 = vst.msk [vmem:[%s295 + $0x1d8] sm:$0x1] %vm1131, %v991
      %1187 = vst [vmem:[%s295 + $0x1e0] sm:$0xfe] %v993
      %1188 = vst.msk [vmem:[%s295 + $0x1e8] sm:$0xfe] %vm1126, %v994
      %1189 = vst [vmem:[%s295 + $0x1f0] sm:$0xff] %v996
      %1190 = vst.msk [vmem:[%s295 + $0x1f8] sm:$0xff] %vm281, %v998
      %1191 = vst [vmem:[%s295 + $0x200] sm:$0x1] %v995
      %1192 = vst.msk [vmem:[%s295 + $0x208] sm:$0x1] %vm1131, %v997
      %1193 = vst [vmem:[%s295 + $0x210] sm:$0xfe] %v999
      %1194 = vst.msk [vmem:[%s295 + $0x218] sm:$0xfe] %vm1126, %v1000
      %1195 = vst [vmem:[%s295 + $0x220] sm:$0xff] %v1002
      %1196 = vst.msk [vmem:[%s295 + $0x228] sm:$0xff] %vm281, %v1004
      %1197 = vst [vmem:[%s295 + $0x230] sm:$0x1] %v1001
      %1198 = vst.msk [vmem:[%s295 + $0x238] sm:$0x1] %vm1131, %v1003
      %1199 = vst [vmem:[%s295 + $0x240] sm:$0xfe] %v1005
      %1200 = vst.msk [vmem:[%s295 + $0x248] sm:$0xfe] %vm1126, %v1006
      %1201 = vst [vmem:[%s295 + $0x250] sm:$0xff] %v1008
      %1202 = vst.msk [vmem:[%s295 + $0x258] sm:$0xff] %vm281, %v1010
      %1203 = vst [vmem:[%s295 + $0x260] sm:$0x1] %v1007
      %1204 = vst.msk [vmem:[%s295 + $0x268] sm:$0x1] %vm1131, %v1009
      %1205 = vst [vmem:[%s295 + $0x270] sm:$0xfe] %v1011
      %1206 = vst.msk [vmem:[%s295 + $0x278] sm:$0xfe] %vm1126, %v1012
      %1207 = vst [vmem:[%s295 + $0x280] sm:$0xff] %v1014
      %1208 = vst.msk [vmem:[%s295 + $0x288] sm:$0xff] %vm281, %v1016
      %1209 = vst [vmem:[%s295 + $0x290] sm:$0x1] %v1013
      %1210 = vst.msk [vmem:[%s295 + $0x298] sm:$0x1] %vm1131, %v1015
      %1211 = vst [vmem:[%s295 + $0x2a0] sm:$0xfe] %v1017
      %1212 = vst.msk [vmem:[%s295 + $0x2a8] sm:$0xfe] %vm1126, %v1018
      %1213 = vst [vmem:[%s295 + $0x2b0] sm:$0xff] %v1020
      %1214 = vst.msk [vmem:[%s295 + $0x2b8] sm:$0xff] %vm281, %v1022
      %1215 = vst [vmem:[%s295 + $0x2c0] sm:$0x1] %v1019
      %1216 = vst.msk [vmem:[%s295 + $0x2c8] sm:$0x1] %vm1131, %v1021
      %1217 = vst [vmem:[%s295 + $0x2d0] sm:$0xfe] %v1023
      %1218 = vst.msk [vmem:[%s295 + $0x2d8] sm:$0xfe] %vm1126, %v1024
      %1219 = vst [vmem:[%s295 + $0x2e0] sm:$0xff] %v1026
      %1220 = vst.msk [vmem:[%s295 + $0x2e8] sm:$0xff] %vm281, %v1028
      %1221 = vst [vmem:[%s295 + $0x2f0] sm:$0x1] %v1025
      %1222 = vst.msk [vmem:[%s295 + $0x2f8] sm:$0x1] %vm1131, %v1027
      %v1223 = vld [vmem:[%s3] sm:$0xff]
      %v1224 = vld [vmem:[%s3 + $0x8] sm:$0xff]
      %v1225 = vld [vmem:[%s3 + $0x10] sm:$0x1]
      %v1226 = vld [vmem:[%s3 + $0x18] sm:$0x1]
      %v1227 = vld [vmem:[#allocation2] sm:$0xff]
      %v1228 = vld [vmem:[#allocation2 + $0x8] sm:$0xff]
      %v1229 = vld [vmem:[#allocation2 + $0x10] sm:$0xff]
      %v1230 = vld [vmem:[#allocation2 + $0x18] sm:$0xff]
      %v1231 = vld [vmem:[#allocation2 + $0x30] sm:$0xff]
      %v1232 = vld [vmem:[#allocation2 + $0x38] sm:$0xff]
      %v1233 = vld [vmem:[#allocation2 + $0x40] sm:$0xff]
      %v1234 = vld [vmem:[#allocation2 + $0x48] sm:$0xff]
      %v1235 = vld [vmem:[#allocation2 + $0x60] sm:$0xff]
      %v1236 = vld [vmem:[#allocation2 + $0x68] sm:$0xff]
      %v1237 = vld [vmem:[#allocation2 + $0x70] sm:$0xff]
      %v1238 = vld [vmem:[#allocation2 + $0x78] sm:$0xff]
      %v1239 = vld [vmem:[#allocation2 + $0x90] sm:$0xff]
      %v1240 = vld [vmem:[#allocation2 + $0x98] sm:$0xff]
      %v1241 = vld [vmem:[#allocation2 + $0xa0] sm:$0xff]
      %v1242 = vld [vmem:[#allocation2 + $0xa8] sm:$0xff]
      %v1243 = vld [vmem:[#allocation2 + $0xc0] sm:$0xff]
      %v1244 = vld [vmem:[#allocation2 + $0xc8] sm:$0xff]
      %v1245 = vld [vmem:[#allocation2 + $0xd0] sm:$0xff]
      %v1246 = vld [vmem:[#allocation2 + $0xd8] sm:$0xff]
      %v1247 = vld [vmem:[#allocation2 + $0xf0] sm:$0xff]
      %v1248 = vld [vmem:[#allocation2 + $0xf8] sm:$0xff]
      %v1249 = vld [vmem:[#allocation2 + $0x100] sm:$0xff]
      %v1250 = vld [vmem:[#allocation2 + $0x108] sm:$0xff]
      %v1251 = vld [vmem:[#allocation2 + $0x120] sm:$0xff]
      %v1252 = vld [vmem:[#allocation2 + $0x128] sm:$0xff]
      %v1253 = vld [vmem:[#allocation2 + $0x130] sm:$0xff]
      %v1254 = vld [vmem:[#allocation2 + $0x138] sm:$0xff]
      %v1255 = vld [vmem:[#allocation2 + $0x150] sm:$0xff]
      %v1256 = vld [vmem:[#allocation2 + $0x158] sm:$0xff]
      %v1257 = vld [vmem:[#allocation2 + $0x160] sm:$0xff]
      %v1258 = vld [vmem:[#allocation2 + $0x168] sm:$0xff]
      %v1259 = vld [vmem:[#allocation2 + $0x180] sm:$0xff]
      %v1260 = vld [vmem:[#allocation2 + $0x188] sm:$0xff]
      %v1261 = vld [vmem:[#allocation2 + $0x190] sm:$0xff]
      %v1262 = vld [vmem:[#allocation2 + $0x198] sm:$0xff]
      %v1263 = vld [vmem:[#allocation2 + $0x1b0] sm:$0xff]
      %v1264 = vld [vmem:[#allocation2 + $0x1b8] sm:$0xff]
      %v1265 = vld [vmem:[#allocation2 + $0x1c0] sm:$0xff]
      %v1266 = vld [vmem:[#allocation2 + $0x1c8] sm:$0xff]
      %v1267 = vld [vmem:[#allocation2 + $0x1e0] sm:$0xff]
      %v1268 = vld [vmem:[#allocation2 + $0x1e8] sm:$0xff]
      %v1269 = vld [vmem:[#allocation2 + $0x1f0] sm:$0xff]
      %v1270 = vld [vmem:[#allocation2 + $0x1f8] sm:$0xff]
      %v1271 = vld [vmem:[#allocation2 + $0x210] sm:$0xff]
      %v1272 = vld [vmem:[#allocation2 + $0x218] sm:$0xff]
      %v1273 = vld [vmem:[#allocation2 + $0x220] sm:$0xff]
      %v1274 = vld [vmem:[#allocation2 + $0x228] sm:$0xff]
      %v1275 = vld [vmem:[#allocation2 + $0x240] sm:$0xff]
      %v1276 = vld [vmem:[#allocation2 + $0x248] sm:$0xff]
      %v1277 = vld [vmem:[#allocation2 + $0x250] sm:$0xff]
      %v1278 = vld [vmem:[#allocation2 + $0x258] sm:$0xff]
      %v1279 = vld [vmem:[#allocation2 + $0x270] sm:$0xff]
      %v1280 = vld [vmem:[#allocation2 + $0x278] sm:$0xff]
      %v1281 = vld [vmem:[#allocation2 + $0x280] sm:$0xff]
      %v1282 = vld [vmem:[#allocation2 + $0x288] sm:$0xff]
      %v1283 = vld [vmem:[#allocation2 + $0x2a0] sm:$0xff]
      %v1284 = vld [vmem:[#allocation2 + $0x2a8] sm:$0xff]
      %v1285 = vld [vmem:[#allocation2 + $0x2b0] sm:$0xff]
      %v1286 = vld [vmem:[#allocation2 + $0x2b8] sm:$0xff]
      %v1287 = vld [vmem:[#allocation2 + $0x2d0] sm:$0xff]
      %v1288 = vld [vmem:[#allocation2 + $0x2d8] sm:$0xff]
      %v1289 = vld [vmem:[#allocation2 + $0x2e0] sm:$0xff]
      %v1290 = vld [vmem:[#allocation2 + $0x2e8] sm:$0xff]
      %v1291 = vperm.slane %v1223, 0
      %v1292 = vperm.slane %v1224, 0
      %v1293 = vmul.f32 %v1227, %v1291
      %v1294 = vmul.f32 %v1228, %v1292
      %v1295 = vmul.f32 %v1229, %v1291
      %v1296 = vmul.f32 %v1230, %v1292
      %v1297 = vmul.f32 %v1231, %v1291
      %v1298 = vmul.f32 %v1232, %v1292
      %v1299 = vmul.f32 %v1233, %v1291
      %v1300 = vmul.f32 %v1234, %v1292
      %v1301 = vmul.f32 %v1235, %v1291
      %v1302 = vmul.f32 %v1236, %v1292
      %v1303 = vmul.f32 %v1237, %v1291
      %v1304 = vmul.f32 %v1238, %v1292
      %v1305 = vmul.f32 %v1239, %v1291
      %v1306 = vmul.f32 %v1240, %v1292
      %v1307 = vmul.f32 %v1241, %v1291
      %v1308 = vmul.f32 %v1242, %v1292
      %v1309 = vmul.f32 %v1243, %v1291
      %v1310 = vmul.f32 %v1244, %v1292
      %v1311 = vmul.f32 %v1245, %v1291
      %v1312 = vmul.f32 %v1246, %v1292
      %v1313 = vmul.f32 %v1247, %v1291
      %v1314 = vmul.f32 %v1248, %v1292
      %v1315 = vmul.f32 %v1249, %v1291
      %v1316 = vmul.f32 %v1250, %v1292
      %v1317 = vmul.f32 %v1251, %v1291
      %v1318 = vmul.f32 %v1252, %v1292
      %v1319 = vmul.f32 %v1253, %v1291
      %v1320 = vmul.f32 %v1254, %v1292
      %v1321 = vmul.f32 %v1255, %v1291
      %v1322 = vmul.f32 %v1256, %v1292
      %v1323 = vmul.f32 %v1257, %v1291
      %v1324 = vmul.f32 %v1258, %v1292
      %v1325 = vmul.f32 %v1259, %v1291
      %v1326 = vmul.f32 %v1260, %v1292
      %v1327 = vmul.f32 %v1261, %v1291
      %v1328 = vmul.f32 %v1262, %v1292
      %v1329 = vmul.f32 %v1263, %v1291
      %v1330 = vmul.f32 %v1264, %v1292
      %v1331 = vmul.f32 %v1265, %v1291
      %v1332 = vmul.f32 %v1266, %v1292
      %v1333 = vmul.f32 %v1267, %v1291
      %v1334 = vmul.f32 %v1268, %v1292
      %v1335 = vmul.f32 %v1269, %v1291
      %v1336 = vmul.f32 %v1270, %v1292
      %v1337 = vmul.f32 %v1271, %v1291
      %v1338 = vmul.f32 %v1272, %v1292
      %v1339 = vmul.f32 %v1273, %v1291
      %v1340 = vmul.f32 %v1274, %v1292
      %v1341 = vmul.f32 %v1275, %v1291
      %v1342 = vmul.f32 %v1276, %v1292
      %v1343 = vmul.f32 %v1277, %v1291
      %v1344 = vmul.f32 %v1278, %v1292
      %v1345 = vmul.f32 %v1279, %v1291
      %v1346 = vmul.f32 %v1280, %v1292
      %v1347 = vmul.f32 %v1281, %v1291
      %v1348 = vmul.f32 %v1282, %v1292
      %v1349 = vmul.f32 %v1283, %v1291
      %v1350 = vmul.f32 %v1284, %v1292
      %v1351 = vmul.f32 %v1285, %v1291
      %v1352 = vmul.f32 %v1286, %v1292
      %v1353 = vmul.f32 %v1287, %v1291
      %v1354 = vmul.f32 %v1288, %v1292
      %v1355 = vmul.f32 %v1289, %v1291
      %v1356 = vmul.f32 %v1290, %v1292
      %v1357 = vld [vmem:[#allocation2] sm:$0xfe]
      %v1358 = vld [vmem:[#allocation2 + $0x8] sm:$0xfe]
      %v1359 = vld [vmem:[#allocation2 + $0x20] sm:$0x1]
      %v1360 = vld [vmem:[#allocation2 + $0x28] sm:$0x1]
      %v1361 = vld [vmem:[#allocation2 + $0x30] sm:$0xfe]
      %v1362 = vld [vmem:[#allocation2 + $0x38] sm:$0xfe]
      %v1363 = vld [vmem:[#allocation2 + $0x50] sm:$0x1]
      %v1364 = vld [vmem:[#allocation2 + $0x58] sm:$0x1]
      %v1365 = vld [vmem:[#allocation2 + $0x60] sm:$0xfe]
      %v1366 = vld [vmem:[#allocation2 + $0x68] sm:$0xfe]
      %v1367 = vld [vmem:[#allocation2 + $0x80] sm:$0x1]
      %v1368 = vld [vmem:[#allocation2 + $0x88] sm:$0x1]
      %v1369 = vld [vmem:[#allocation2 + $0x90] sm:$0xfe]
      %v1370 = vld [vmem:[#allocation2 + $0x98] sm:$0xfe]
      %v1371 = vld [vmem:[#allocation2 + $0xb0] sm:$0x1]
      %v1372 = vld [vmem:[#allocation2 + $0xb8] sm:$0x1]
      %v1373 = vld [vmem:[#allocation2 + $0xc0] sm:$0xfe]
      %v1374 = vld [vmem:[#allocation2 + $0xc8] sm:$0xfe]
      %v1375 = vld [vmem:[#allocation2 + $0xe0] sm:$0x1]
      %v1376 = vld [vmem:[#allocation2 + $0xe8] sm:$0x1]
      %v1377 = vld [vmem:[#allocation2 + $0xf0] sm:$0xfe]
      %v1378 = vld [vmem:[#allocation2 + $0xf8] sm:$0xfe]
      %v1379 = vld [vmem:[#allocation2 + $0x110] sm:$0x1]
      %v1380 = vld [vmem:[#allocation2 + $0x118] sm:$0x1]
      %v1381 = vld [vmem:[#allocation2 + $0x120] sm:$0xfe]
      %v1382 = vld [vmem:[#allocation2 + $0x128] sm:$0xfe]
      %v1383 = vld [vmem:[#allocation2 + $0x140] sm:$0x1]
      %v1384 = vld [vmem:[#allocation2 + $0x148] sm:$0x1]
      %v1385 = vld [vmem:[#allocation2 + $0x150] sm:$0xfe]
      %v1386 = vld [vmem:[#allocation2 + $0x158] sm:$0xfe]
      %v1387 = vld [vmem:[#allocation2 + $0x170] sm:$0x1]
      %v1388 = vld [vmem:[#allocation2 + $0x178] sm:$0x1]
      %v1389 = vld [vmem:[#allocation2 + $0x180] sm:$0xfe]
      %v1390 = vld [vmem:[#allocation2 + $0x188] sm:$0xfe]
      %v1391 = vld [vmem:[#allocation2 + $0x1a0] sm:$0x1]
      %v1392 = vld [vmem:[#allocation2 + $0x1a8] sm:$0x1]
      %v1393 = vld [vmem:[#allocation2 + $0x1b0] sm:$0xfe]
      %v1394 = vld [vmem:[#allocation2 + $0x1b8] sm:$0xfe]
      %v1395 = vld [vmem:[#allocation2 + $0x1d0] sm:$0x1]
      %v1396 = vld [vmem:[#allocation2 + $0x1d8] sm:$0x1]
      %v1397 = vld [vmem:[#allocation2 + $0x1e0] sm:$0xfe]
      %v1398 = vld [vmem:[#allocation2 + $0x1e8] sm:$0xfe]
      %v1399 = vld [vmem:[#allocation2 + $0x200] sm:$0x1]
      %v1400 = vld [vmem:[#allocation2 + $0x208] sm:$0x1]
      %v1401 = vld [vmem:[#allocation2 + $0x210] sm:$0xfe]
      %v1402 = vld [vmem:[#allocation2 + $0x218] sm:$0xfe]
      %v1403 = vld [vmem:[#allocation2 + $0x230] sm:$0x1]
      %v1404 = vld [vmem:[#allocation2 + $0x238] sm:$0x1]
      %v1405 = vld [vmem:[#allocation2 + $0x240] sm:$0xfe]
      %v1406 = vld [vmem:[#allocation2 + $0x248] sm:$0xfe]
      %v1407 = vld [vmem:[#allocation2 + $0x260] sm:$0x1]
      %v1408 = vld [vmem:[#allocation2 + $0x268] sm:$0x1]
      %v1409 = vld [vmem:[#allocation2 + $0x270] sm:$0xfe]
      %v1410 = vld [vmem:[#allocation2 + $0x278] sm:$0xfe]
      %v1411 = vld [vmem:[#allocation2 + $0x290] sm:$0x1]
      %v1412 = vld [vmem:[#allocation2 + $0x298] sm:$0x1]
      %v1413 = vld [vmem:[#allocation2 + $0x2a0] sm:$0xfe]
      %v1414 = vld [vmem:[#allocation2 + $0x2a8] sm:$0xfe]
      %v1415 = vld [vmem:[#allocation2 + $0x2c0] sm:$0x1]
      %v1416 = vld [vmem:[#allocation2 + $0x2c8] sm:$0x1]
      %v1417 = vld [vmem:[#allocation2 + $0x2d0] sm:$0xfe]
      %v1418 = vld [vmem:[#allocation2 + $0x2d8] sm:$0xfe]
      %v1419 = vld [vmem:[#allocation2 + $0x2f0] sm:$0x1]
      %v1420 = vld [vmem:[#allocation2 + $0x2f8] sm:$0x1]
      %v1421 = vperm.slane %v1223, 1
      %v1422 = vperm.slane %v1224, 1
      %v1423 = vmul.f32 %v1357, %v1421
      %v1424 = vmul.f32 %v1358, %v1422
      %v1425 = vmul.f32 %v1229, %v1421
      %v1426 = vmul.f32 %v1230, %v1422
      %v1427 = vmul.f32 %v1359, %v1421
      %v1428 = vmul.f32 %v1360, %v1422
      %v1429 = vmul.f32 %v1361, %v1421
      %v1430 = vmul.f32 %v1362, %v1422
      %v1431 = vmul.f32 %v1233, %v1421
      %v1432 = vmul.f32 %v1234, %v1422
      %v1433 = vmul.f32 %v1363, %v1421
      %v1434 = vmul.f32 %v1364, %v1422
      %v1435 = vmul.f32 %v1365, %v1421
      %v1436 = vmul.f32 %v1366, %v1422
      %v1437 = vmul.f32 %v1237, %v1421
      %v1438 = vmul.f32 %v1238, %v1422
      %v1439 = vmul.f32 %v1367, %v1421
      %v1440 = vmul.f32 %v1368, %v1422
      %v1441 = vmul.f32 %v1369, %v1421
      %v1442 = vmul.f32 %v1370, %v1422
      %v1443 = vmul.f32 %v1241, %v1421
      %v1444 = vmul.f32 %v1242, %v1422
      %v1445 = vmul.f32 %v1371, %v1421
      %v1446 = vmul.f32 %v1372, %v1422
      %v1447 = vmul.f32 %v1373, %v1421
      %v1448 = vmul.f32 %v1374, %v1422
      %v1449 = vmul.f32 %v1245, %v1421
      %v1450 = vmul.f32 %v1246, %v1422
      %v1451 = vmul.f32 %v1375, %v1421
      %v1452 = vmul.f32 %v1376, %v1422
      %v1453 = vmul.f32 %v1377, %v1421
      %v1454 = vmul.f32 %v1378, %v1422
      %v1455 = vmul.f32 %v1249, %v1421
      %v1456 = vmul.f32 %v1250, %v1422
      %v1457 = vmul.f32 %v1379, %v1421
      %v1458 = vmul.f32 %v1380, %v1422
      %v1459 = vmul.f32 %v1381, %v1421
      %v1460 = vmul.f32 %v1382, %v1422
      %v1461 = vmul.f32 %v1253, %v1421
      %v1462 = vmul.f32 %v1254, %v1422
      %v1463 = vmul.f32 %v1383, %v1421
      %v1464 = vmul.f32 %v1384, %v1422
      %v1465 = vmul.f32 %v1385, %v1421
      %v1466 = vmul.f32 %v1386, %v1422
      %v1467 = vmul.f32 %v1257, %v1421
      %v1468 = vmul.f32 %v1258, %v1422
      %v1469 = vmul.f32 %v1387, %v1421
      %v1470 = vmul.f32 %v1388, %v1422
      %v1471 = vmul.f32 %v1389, %v1421
      %v1472 = vmul.f32 %v1390, %v1422
      %v1473 = vmul.f32 %v1261, %v1421
      %v1474 = vmul.f32 %v1262, %v1422
      %v1475 = vmul.f32 %v1391, %v1421
      %v1476 = vmul.f32 %v1392, %v1422
      %v1477 = vmul.f32 %v1393, %v1421
      %v1478 = vmul.f32 %v1394, %v1422
      %v1479 = vmul.f32 %v1265, %v1421
      %v1480 = vmul.f32 %v1266, %v1422
      %v1481 = vmul.f32 %v1395, %v1421
      %v1482 = vmul.f32 %v1396, %v1422
      %v1483 = vmul.f32 %v1397, %v1421
      %v1484 = vmul.f32 %v1398, %v1422
      %v1485 = vmul.f32 %v1269, %v1421
      %v1486 = vmul.f32 %v1270, %v1422
      %v1487 = vmul.f32 %v1399, %v1421
      %v1488 = vmul.f32 %v1400, %v1422
      %v1489 = vmul.f32 %v1401, %v1421
      %v1490 = vmul.f32 %v1402, %v1422
      %v1491 = vmul.f32 %v1273, %v1421
      %v1492 = vmul.f32 %v1274, %v1422
      %v1493 = vmul.f32 %v1403, %v1421
      %v1494 = vmul.f32 %v1404, %v1422
      %v1495 = vmul.f32 %v1405, %v1421
      %v1496 = vmul.f32 %v1406, %v1422
      %v1497 = vmul.f32 %v1277, %v1421
      %v1498 = vmul.f32 %v1278, %v1422
      %v1499 = vmul.f32 %v1407, %v1421
      %v1500 = vmul.f32 %v1408, %v1422
      %v1501 = vmul.f32 %v1409, %v1421
      %v1502 = vmul.f32 %v1410, %v1422
      %v1503 = vmul.f32 %v1281, %v1421
      %v1504 = vmul.f32 %v1282, %v1422
      %v1505 = vmul.f32 %v1411, %v1421
      %v1506 = vmul.f32 %v1412, %v1422
      %v1507 = vmul.f32 %v1413, %v1421
      %v1508 = vmul.f32 %v1414, %v1422
      %v1509 = vmul.f32 %v1285, %v1421
      %v1510 = vmul.f32 %v1286, %v1422
      %v1511 = vmul.f32 %v1415, %v1421
      %v1512 = vmul.f32 %v1416, %v1422
      %v1513 = vmul.f32 %v1417, %v1421
      %v1514 = vmul.f32 %v1418, %v1422
      %v1515 = vmul.f32 %v1289, %v1421
      %v1516 = vmul.f32 %v1290, %v1422
      %v1517 = vmul.f32 %v1419, %v1421
      %v1518 = vmul.f32 %v1420, %v1422
      %vm1615 = vcmask 1046528
      %v1616 = vrot.slane %v1423, 1
      %v1617 = vrot.slane %v1425, 1
      %v1618 = vsel %vm1615, %v1616, %v1617
      %v1619 = vrot.slane %v1424, 1
      %v1620 = vrot.slane %v1426, 1
      %v1621 = vsel %vm1615, %v1619, %v1620
      %v1622 = vrot.slane %v1427, 1
      %v1623 = vsel %vm1615, %v1617, %v1622
      %v1624 = vrot.slane %v1428, 1
      %v1625 = vsel %vm1615, %v1620, %v1624
      %v1626 = vrot.slane %v1429, 1
      %v1627 = vrot.slane %v1431, 1
      %v1628 = vsel %vm1615, %v1626, %v1627
      %v1629 = vrot.slane %v1430, 1
      %v1630 = vrot.slane %v1432, 1
      %v1631 = vsel %vm1615, %v1629, %v1630
      %v1632 = vrot.slane %v1433, 1
      %v1633 = vsel %vm1615, %v1627, %v1632
      %v1634 = vrot.slane %v1434, 1
      %v1635 = vsel %vm1615, %v1630, %v1634
      %v1636 = vrot.slane %v1435, 1
      %v1637 = vrot.slane %v1437, 1
      %v1638 = vsel %vm1615, %v1636, %v1637
      %v1639 = vrot.slane %v1436, 1
      %v1640 = vrot.slane %v1438, 1
      %v1641 = vsel %vm1615, %v1639, %v1640
      %v1642 = vrot.slane %v1439, 1
      %v1643 = vsel %vm1615, %v1637, %v1642
      %v1644 = vrot.slane %v1440, 1
      %v1645 = vsel %vm1615, %v1640, %v1644
      %v1646 = vrot.slane %v1441, 1
      %v1647 = vrot.slane %v1443, 1
      %v1648 = vsel %vm1615, %v1646, %v1647
      %v1649 = vrot.slane %v1442, 1
      %v1650 = vrot.slane %v1444, 1
      %v1651 = vsel %vm1615, %v1649, %v1650
      %v1652 = vrot.slane %v1445, 1
      %v1653 = vsel %vm1615, %v1647, %v1652
      %v1654 = vrot.slane %v1446, 1
      %v1655 = vsel %vm1615, %v1650, %v1654
      %v1656 = vrot.slane %v1447, 1
      %v1657 = vrot.slane %v1449, 1
      %v1658 = vsel %vm1615, %v1656, %v1657
      %v1659 = vrot.slane %v1448, 1
      %v1660 = vrot.slane %v1450, 1
      %v1661 = vsel %vm1615, %v1659, %v1660
      %v1662 = vrot.slane %v1451, 1
      %v1663 = vsel %vm1615, %v1657, %v1662
      %v1664 = vrot.slane %v1452, 1
      %v1665 = vsel %vm1615, %v1660, %v1664
      %v1666 = vrot.slane %v1453, 1
      %v1667 = vrot.slane %v1455, 1
      %v1668 = vsel %vm1615, %v1666, %v1667
      %v1669 = vrot.slane %v1454, 1
      %v1670 = vrot.slane %v1456, 1
      %v1671 = vsel %vm1615, %v1669, %v1670
      %v1672 = vrot.slane %v1457, 1
      %v1673 = vsel %vm1615, %v1667, %v1672
      %v1674 = vrot.slane %v1458, 1
      %v1675 = vsel %vm1615, %v1670, %v1674
      %v1676 = vrot.slane %v1459, 1
      %v1677 = vrot.slane %v1461, 1
      %v1678 = vsel %vm1615, %v1676, %v1677
      %v1679 = vrot.slane %v1460, 1
      %v1680 = vrot.slane %v1462, 1
      %v1681 = vsel %vm1615, %v1679, %v1680
      %v1682 = vrot.slane %v1463, 1
      %v1683 = vsel %vm1615, %v1677, %v1682
      %v1684 = vrot.slane %v1464, 1
      %v1685 = vsel %vm1615, %v1680, %v1684
      %v1686 = vrot.slane %v1465, 1
      %v1687 = vrot.slane %v1467, 1
      %v1688 = vsel %vm1615, %v1686, %v1687
      %v1689 = vrot.slane %v1466, 1
      %v1690 = vrot.slane %v1468, 1
      %v1691 = vsel %vm1615, %v1689, %v1690
      %v1692 = vrot.slane %v1469, 1
      %v1693 = vsel %vm1615, %v1687, %v1692
      %v1694 = vrot.slane %v1470, 1
      %v1695 = vsel %vm1615, %v1690, %v1694
      %v1696 = vrot.slane %v1471, 1
      %v1697 = vrot.slane %v1473, 1
      %v1698 = vsel %vm1615, %v1696, %v1697
      %v1699 = vrot.slane %v1472, 1
      %v1700 = vrot.slane %v1474, 1
      %v1701 = vsel %vm1615, %v1699, %v1700
      %v1702 = vrot.slane %v1475, 1
      %v1703 = vsel %vm1615, %v1697, %v1702
      %v1704 = vrot.slane %v1476, 1
      %v1705 = vsel %vm1615, %v1700, %v1704
      %v1706 = vrot.slane %v1477, 1
      %v1707 = vrot.slane %v1479, 1
      %v1708 = vsel %vm1615, %v1706, %v1707
      %v1709 = vrot.slane %v1478, 1
      %v1710 = vrot.slane %v1480, 1
      %v1711 = vsel %vm1615, %v1709, %v1710
      %v1712 = vrot.slane %v1481, 1
      %v1713 = vsel %vm1615, %v1707, %v1712
      %v1714 = vrot.slane %v1482, 1
      %v1715 = vsel %vm1615, %v1710, %v1714
      %v1716 = vrot.slane %v1483, 1
      %v1717 = vrot.slane %v1485, 1
      %v1718 = vsel %vm1615, %v1716, %v1717
      %v1719 = vrot.slane %v1484, 1
      %v1720 = vrot.slane %v1486, 1
      %v1721 = vsel %vm1615, %v1719, %v1720
      %v1722 = vrot.slane %v1487, 1
      %v1723 = vsel %vm1615, %v1717, %v1722
      %v1724 = vrot.slane %v1488, 1
      %v1725 = vsel %vm1615, %v1720, %v1724
      %v1726 = vrot.slane %v1489, 1
      %v1727 = vrot.slane %v1491, 1
      %v1728 = vsel %vm1615, %v1726, %v1727
      %v1729 = vrot.slane %v1490, 1
      %v1730 = vrot.slane %v1492, 1
      %v1731 = vsel %vm1615, %v1729, %v1730
      %v1732 = vrot.slane %v1493, 1
      %v1733 = vsel %vm1615, %v1727, %v1732
      %v1734 = vrot.slane %v1494, 1
      %v1735 = vsel %vm1615, %v1730, %v1734
      %v1736 = vrot.slane %v1495, 1
      %v1737 = vrot.slane %v1497, 1
      %v1738 = vsel %vm1615, %v1736, %v1737
      %v1739 = vrot.slane %v1496, 1
      %v1740 = vrot.slane %v1498, 1
      %v1741 = vsel %vm1615, %v1739, %v1740
      %v1742 = vrot.slane %v1499, 1
      %v1743 = vsel %vm1615, %v1737, %v1742
      %v1744 = vrot.slane %v1500, 1
      %v1745 = vsel %vm1615, %v1740, %v1744
      %v1746 = vrot.slane %v1501, 1
      %v1747 = vrot.slane %v1503, 1
      %v1748 = vsel %vm1615, %v1746, %v1747
      %v1749 = vrot.slane %v1502, 1
      %v1750 = vrot.slane %v1504, 1
      %v1751 = vsel %vm1615, %v1749, %v1750
      %v1752 = vrot.slane %v1505, 1
      %v1753 = vsel %vm1615, %v1747, %v1752
      %v1754 = vrot.slane %v1506, 1
      %v1755 = vsel %vm1615, %v1750, %v1754
      %v1756 = vrot.slane %v1507, 1
      %v1757 = vrot.slane %v1509, 1
      %v1758 = vsel %vm1615, %v1756, %v1757
      %v1759 = vrot.slane %v1508, 1
      %v1760 = vrot.slane %v1510, 1
      %v1761 = vsel %vm1615, %v1759, %v1760
      %v1762 = vrot.slane %v1511, 1
      %v1763 = vsel %vm1615, %v1757, %v1762
      %v1764 = vrot.slane %v1512, 1
      %v1765 = vsel %vm1615, %v1760, %v1764
      %v1766 = vrot.slane %v1513, 1
      %v1767 = vrot.slane %v1515, 1
      %v1768 = vsel %vm1615, %v1766, %v1767
      %v1769 = vrot.slane %v1514, 1
      %v1770 = vrot.slane %v1516, 1
      %v1771 = vsel %vm1615, %v1769, %v1770
      %v1772 = vrot.slane %v1517, 1
      %v1773 = vsel %vm1615, %v1767, %v1772
      %v1774 = vrot.slane %v1518, 1
      %v1775 = vsel %vm1615, %v1770, %v1774
      %v1840 = vadd.f32 %v1293, %v1618
      %v1841 = vadd.f32 %v1294, %v1621
      %v1842 = vadd.f32 %v1295, %v1623
      %v1843 = vadd.f32 %v1296, %v1625
      %v1844 = vadd.f32 %v1297, %v1628
      %v1845 = vadd.f32 %v1298, %v1631
      %v1846 = vadd.f32 %v1299, %v1633
      %v1847 = vadd.f32 %v1300, %v1635
      %v1848 = vadd.f32 %v1301, %v1638
      %v1849 = vadd.f32 %v1302, %v1641
      %v1850 = vadd.f32 %v1303, %v1643
      %v1851 = vadd.f32 %v1304, %v1645
      %v1852 = vadd.f32 %v1305, %v1648
      %v1853 = vadd.f32 %v1306, %v1651
      %v1854 = vadd.f32 %v1307, %v1653
      %v1855 = vadd.f32 %v1308, %v1655
      %v1856 = vadd.f32 %v1309, %v1658
      %v1857 = vadd.f32 %v1310, %v1661
      %v1858 = vadd.f32 %v1311, %v1663
      %v1859 = vadd.f32 %v1312, %v1665
      %v1860 = vadd.f32 %v1313, %v1668
      %v1861 = vadd.f32 %v1314, %v1671
      %v1862 = vadd.f32 %v1315, %v1673
      %v1863 = vadd.f32 %v1316, %v1675
      %v1864 = vadd.f32 %v1317, %v1678
      %v1865 = vadd.f32 %v1318, %v1681
      %v1866 = vadd.f32 %v1319, %v1683
      %v1867 = vadd.f32 %v1320, %v1685
      %v1868 = vadd.f32 %v1321, %v1688
      %v1869 = vadd.f32 %v1322, %v1691
      %v1870 = vadd.f32 %v1323, %v1693
      %v1871 = vadd.f32 %v1324, %v1695
      %v1872 = vadd.f32 %v1325, %v1698
      %v1873 = vadd.f32 %v1326, %v1701
      %v1874 = vadd.f32 %v1327, %v1703
      %v1875 = vadd.f32 %v1328, %v1705
      %v1876 = vadd.f32 %v1329, %v1708
      %v1877 = vadd.f32 %v1330, %v1711
      %v1878 = vadd.f32 %v1331, %v1713
      %v1879 = vadd.f32 %v1332, %v1715
      %v1880 = vadd.f32 %v1333, %v1718
      %v1881 = vadd.f32 %v1334, %v1721
      %v1882 = vadd.f32 %v1335, %v1723
      %v1883 = vadd.f32 %v1336, %v1725
      %v1884 = vadd.f32 %v1337, %v1728
      %v1885 = vadd.f32 %v1338, %v1731
      %v1886 = vadd.f32 %v1339, %v1733
      %v1887 = vadd.f32 %v1340, %v1735
      %v1888 = vadd.f32 %v1341, %v1738
      %v1889 = vadd.f32 %v1342, %v1741
      %v1890 = vadd.f32 %v1343, %v1743
      %v1891 = vadd.f32 %v1344, %v1745
      %v1892 = vadd.f32 %v1345, %v1748
      %v1893 = vadd.f32 %v1346, %v1751
      %v1894 = vadd.f32 %v1347, %v1753
      %v1895 = vadd.f32 %v1348, %v1755
      %v1896 = vadd.f32 %v1349, %v1758
      %v1897 = vadd.f32 %v1350, %v1761
      %v1898 = vadd.f32 %v1351, %v1763
      %v1899 = vadd.f32 %v1352, %v1765
      %v1900 = vadd.f32 %v1353, %v1768
      %v1901 = vadd.f32 %v1354, %v1771
      %v1902 = vadd.f32 %v1355, %v1773
      %v1903 = vadd.f32 %v1356, %v1775
      %v1904 = vld [vmem:[#allocation2] sm:$0xfc]
      %v1905 = vld [vmem:[#allocation2 + $0x8] sm:$0xfc]
      %v1906 = vld [vmem:[#allocation2 + $0x20] sm:$0x3]
      %v1907 = vld [vmem:[#allocation2 + $0x28] sm:$0x3]
      %v1908 = vld [vmem:[#allocation2 + $0x30] sm:$0xfc]
      %v1909 = vld [vmem:[#allocation2 + $0x38] sm:$0xfc]
      %v1910 = vld [vmem:[#allocation2 + $0x50] sm:$0x3]
      %v1911 = vld [vmem:[#allocation2 + $0x58] sm:$0x3]
      %v1912 = vld [vmem:[#allocation2 + $0x60] sm:$0xfc]
      %v1913 = vld [vmem:[#allocation2 + $0x68] sm:$0xfc]
      %v1914 = vld [vmem:[#allocation2 + $0x80] sm:$0x3]
      %v1915 = vld [vmem:[#allocation2 + $0x88] sm:$0x3]
      %v1916 = vld [vmem:[#allocation2 + $0x90] sm:$0xfc]
      %v1917 = vld [vmem:[#allocation2 + $0x98] sm:$0xfc]
      %v1918 = vld [vmem:[#allocation2 + $0xb0] sm:$0x3]
      %v1919 = vld [vmem:[#allocation2 + $0xb8] sm:$0x3]
      %v1920 = vld [vmem:[#allocation2 + $0xc0] sm:$0xfc]
      %v1921 = vld [vmem:[#allocation2 + $0xc8] sm:$0xfc]
      %v1922 = vld [vmem:[#allocation2 + $0xe0] sm:$0x3]
      %v1923 = vld [vmem:[#allocation2 + $0xe8] sm:$0x3]
      %v1924 = vld [vmem:[#allocation2 + $0xf0] sm:$0xfc]
      %v1925 = vld [vmem:[#allocation2 + $0xf8] sm:$0xfc]
      %v1926 = vld [vmem:[#allocation2 + $0x110] sm:$0x3]
      %v1927 = vld [vmem:[#allocation2 + $0x118] sm:$0x3]
      %v1928 = vld [vmem:[#allocation2 + $0x120] sm:$0xfc]
      %v1929 = vld [vmem:[#allocation2 + $0x128] sm:$0xfc]
      %v1930 = vld [vmem:[#allocation2 + $0x140] sm:$0x3]
      %v1931 = vld [vmem:[#allocation2 + $0x148] sm:$0x3]
      %v1932 = vld [vmem:[#allocation2 + $0x150] sm:$0xfc]
      %v1933 = vld [vmem:[#allocation2 + $0x158] sm:$0xfc]
      %v1934 = vld [vmem:[#allocation2 + $0x170] sm:$0x3]
      %v1935 = vld [vmem:[#allocation2 + $0x178] sm:$0x3]
      %v1936 = vld [vmem:[#allocation2 + $0x180] sm:$0xfc]
      %v1937 = vld [vmem:[#allocation2 + $0x188] sm:$0xfc]
      %v1938 = vld [vmem:[#allocation2 + $0x1a0] sm:$0x3]
      %v1939 = vld [vmem:[#allocation2 + $0x1a8] sm:$0x3]
      %v1940 = vld [vmem:[#allocation2 + $0x1b0] sm:$0xfc]
      %v1941 = vld [vmem:[#allocation2 + $0x1b8] sm:$0xfc]
      %v1942 = vld [vmem:[#allocation2 + $0x1d0] sm:$0x3]
      %v1943 = vld [vmem:[#allocation2 + $0x1d8] sm:$0x3]
      %v1944 = vld [vmem:[#allocation2 + $0x1e0] sm:$0xfc]
      %v1945 = vld [vmem:[#allocation2 + $0x1e8] sm:$0xfc]
      %v1946 = vld [vmem:[#allocation2 + $0x200] sm:$0x3]
      %v1947 = vld [vmem:[#allocation2 + $0x208] sm:$0x3]
      %v1948 = vld [vmem:[#allocation2 + $0x210] sm:$0xfc]
      %v1949 = vld [vmem:[#allocation2 + $0x218] sm:$0xfc]
      %v1950 = vld [vmem:[#allocation2 + $0x230] sm:$0x3]
      %v1951 = vld [vmem:[#allocation2 + $0x238] sm:$0x3]
      %v1952 = vld [vmem:[#allocation2 + $0x240] sm:$0xfc]
      %v1953 = vld [vmem:[#allocation2 + $0x248] sm:$0xfc]
      %v1954 = vld [vmem:[#allocation2 + $0x260] sm:$0x3]
      %v1955 = vld [vmem:[#allocation2 + $0x268] sm:$0x3]
      %v1956 = vld [vmem:[#allocation2 + $0x270] sm:$0xfc]
      %v1957 = vld [vmem:[#allocation2 + $0x278] sm:$0xfc]
      %v1958 = vld [vmem:[#allocation2 + $0x290] sm:$0x3]
      %v1959 = vld [vmem:[#allocation2 + $0x298] sm:$0x3]
      %v1960 = vld [vmem:[#allocation2 + $0x2a0] sm:$0xfc]
      %v1961 = vld [vmem:[#allocation2 + $0x2a8] sm:$0xfc]
      %v1962 = vld [vmem:[#allocation2 + $0x2c0] sm:$0x3]
      %v1963 = vld [vmem:[#allocation2 + $0x2c8] sm:$0x3]
      %v1964 = vld [vmem:[#allocation2 + $0x2d0] sm:$0xfc]
      %v1965 = vld [vmem:[#allocation2 + $0x2d8] sm:$0xfc]
      %v1966 = vld [vmem:[#allocation2 + $0x2f0] sm:$0x3]
      %v1967 = vld [vmem:[#allocation2 + $0x2f8] sm:$0x3]
      %v1968 = vperm.slane %v1223, 2
      %v1969 = vperm.slane %v1224, 2
      %v1970 = vmul.f32 %v1904, %v1968
      %v1971 = vmul.f32 %v1905, %v1969
      %v1972 = vmul.f32 %v1229, %v1968
      %v1973 = vmul.f32 %v1230, %v1969
      %v1974 = vmul.f32 %v1906, %v1968
      %v1975 = vmul.f32 %v1907, %v1969
      %v1976 = vmul.f32 %v1908, %v1968
      %v1977 = vmul.f32 %v1909, %v1969
      %v1978 = vmul.f32 %v1233, %v1968
      %v1979 = vmul.f32 %v1234, %v1969
      %v1980 = vmul.f32 %v1910, %v1968
      %v1981 = vmul.f32 %v1911, %v1969
      %v1982 = vmul.f32 %v1912, %v1968
      %v1983 = vmul.f32 %v1913, %v1969
      %v1984 = vmul.f32 %v1237, %v1968
      %v1985 = vmul.f32 %v1238, %v1969
      %v1986 = vmul.f32 %v1914, %v1968
      %v1987 = vmul.f32 %v1915, %v1969
      %v1988 = vmul.f32 %v1916, %v1968
      %v1989 = vmul.f32 %v1917, %v1969
      %v1990 = vmul.f32 %v1241, %v1968
      %v1991 = vmul.f32 %v1242, %v1969
      %v1992 = vmul.f32 %v1918, %v1968
      %v1993 = vmul.f32 %v1919, %v1969
      %v1994 = vmul.f32 %v1920, %v1968
      %v1995 = vmul.f32 %v1921, %v1969
      %v1996 = vmul.f32 %v1245, %v1968
      %v1997 = vmul.f32 %v1246, %v1969
      %v1998 = vmul.f32 %v1922, %v1968
      %v1999 = vmul.f32 %v1923, %v1969
      %v2000 = vmul.f32 %v1924, %v1968
      %v2001 = vmul.f32 %v1925, %v1969
      %v2002 = vmul.f32 %v1249, %v1968
      %v2003 = vmul.f32 %v1250, %v1969
      %v2004 = vmul.f32 %v1926, %v1968
      %v2005 = vmul.f32 %v1927, %v1969
      %v2006 = vmul.f32 %v1928, %v1968
      %v2007 = vmul.f32 %v1929, %v1969
      %v2008 = vmul.f32 %v1253, %v1968
      %v2009 = vmul.f32 %v1254, %v1969
      %v2010 = vmul.f32 %v1930, %v1968
      %v2011 = vmul.f32 %v1931, %v1969
      %v2012 = vmul.f32 %v1932, %v1968
      %v2013 = vmul.f32 %v1933, %v1969
      %v2014 = vmul.f32 %v1257, %v1968
      %v2015 = vmul.f32 %v1258, %v1969
      %v2016 = vmul.f32 %v1934, %v1968
      %v2017 = vmul.f32 %v1935, %v1969
      %v2018 = vmul.f32 %v1936, %v1968
      %v2019 = vmul.f32 %v1937, %v1969
      %v2020 = vmul.f32 %v1261, %v1968
      %v2021 = vmul.f32 %v1262, %v1969
      %v2022 = vmul.f32 %v1938, %v1968
      %v2023 = vmul.f32 %v1939, %v1969
      %v2024 = vmul.f32 %v1940, %v1968
      %v2025 = vmul.f32 %v1941, %v1969
      %v2026 = vmul.f32 %v1265, %v1968
      %v2027 = vmul.f32 %v1266, %v1969
      %v2028 = vmul.f32 %v1942, %v1968
      %v2029 = vmul.f32 %v1943, %v1969
      %v2030 = vmul.f32 %v1944, %v1968
      %v2031 = vmul.f32 %v1945, %v1969
      %v2032 = vmul.f32 %v1269, %v1968
      %v2033 = vmul.f32 %v1270, %v1969
      %v2034 = vmul.f32 %v1946, %v1968
      %v2035 = vmul.f32 %v1947, %v1969
      %v2036 = vmul.f32 %v1948, %v1968
      %v2037 = vmul.f32 %v1949, %v1969
      %v2038 = vmul.f32 %v1273, %v1968
      %v2039 = vmul.f32 %v1274, %v1969
      %v2040 = vmul.f32 %v1950, %v1968
      %v2041 = vmul.f32 %v1951, %v1969
      %v2042 = vmul.f32 %v1952, %v1968
      %v2043 = vmul.f32 %v1953, %v1969
      %v2044 = vmul.f32 %v1277, %v1968
      %v2045 = vmul.f32 %v1278, %v1969
      %v2046 = vmul.f32 %v1954, %v1968
      %v2047 = vmul.f32 %v1955, %v1969
      %v2048 = vmul.f32 %v1956, %v1968
      %v2049 = vmul.f32 %v1957, %v1969
      %v2050 = vmul.f32 %v1281, %v1968
      %v2051 = vmul.f32 %v1282, %v1969
      %v2052 = vmul.f32 %v1958, %v1968
      %v2053 = vmul.f32 %v1959, %v1969
      %v2054 = vmul.f32 %v1960, %v1968
      %v2055 = vmul.f32 %v1961, %v1969
      %v2056 = vmul.f32 %v1285, %v1968
      %v2057 = vmul.f32 %v1286, %v1969
      %v2058 = vmul.f32 %v1962, %v1968
      %v2059 = vmul.f32 %v1963, %v1969
      %v2060 = vmul.f32 %v1964, %v1968
      %v2061 = vmul.f32 %v1965, %v1969
      %v2062 = vmul.f32 %v1289, %v1968
      %v2063 = vmul.f32 %v1290, %v1969
      %v2064 = vmul.f32 %v1966, %v1968
      %v2065 = vmul.f32 %v1967, %v1969
      %vm2162 = vcmask 1045504
      %v2163 = vrot.slane %v1970, 2
      %v2164 = vrot.slane %v1972, 2
      %v2165 = vsel %vm2162, %v2163, %v2164
      %v2166 = vrot.slane %v1971, 2
      %v2167 = vrot.slane %v1973, 2
      %v2168 = vsel %vm2162, %v2166, %v2167
      %v2169 = vrot.slane %v1974, 2
      %v2170 = vsel %vm2162, %v2164, %v2169
      %v2171 = vrot.slane %v1975, 2
      %v2172 = vsel %vm2162, %v2167, %v2171
      %v2173 = vrot.slane %v1976, 2
      %v2174 = vrot.slane %v1978, 2
      %v2175 = vsel %vm2162, %v2173, %v2174
      %v2176 = vrot.slane %v1977, 2
      %v2177 = vrot.slane %v1979, 2
      %v2178 = vsel %vm2162, %v2176, %v2177
      %v2179 = vrot.slane %v1980, 2
      %v2180 = vsel %vm2162, %v2174, %v2179
      %v2181 = vrot.slane %v1981, 2
      %v2182 = vsel %vm2162, %v2177, %v2181
      %v2183 = vrot.slane %v1982, 2
      %v2184 = vrot.slane %v1984, 2
      %v2185 = vsel %vm2162, %v2183, %v2184
      %v2186 = vrot.slane %v1983, 2
      %v2187 = vrot.slane %v1985, 2
      %v2188 = vsel %vm2162, %v2186, %v2187
      %v2189 = vrot.slane %v1986, 2
      %v2190 = vsel %vm2162, %v2184, %v2189
      %v2191 = vrot.slane %v1987, 2
      %v2192 = vsel %vm2162, %v2187, %v2191
      %v2193 = vrot.slane %v1988, 2
      %v2194 = vrot.slane %v1990, 2
      %v2195 = vsel %vm2162, %v2193, %v2194
      %v2196 = vrot.slane %v1989, 2
      %v2197 = vrot.slane %v1991, 2
      %v2198 = vsel %vm2162, %v2196, %v2197
      %v2199 = vrot.slane %v1992, 2
      %v2200 = vsel %vm2162, %v2194, %v2199
      %v2201 = vrot.slane %v1993, 2
      %v2202 = vsel %vm2162, %v2197, %v2201
      %v2203 = vrot.slane %v1994, 2
      %v2204 = vrot.slane %v1996, 2
      %v2205 = vsel %vm2162, %v2203, %v2204
      %v2206 = vrot.slane %v1995, 2
      %v2207 = vrot.slane %v1997, 2
      %v2208 = vsel %vm2162, %v2206, %v2207
      %v2209 = vrot.slane %v1998, 2
      %v2210 = vsel %vm2162, %v2204, %v2209
      %v2211 = vrot.slane %v1999, 2
      %v2212 = vsel %vm2162, %v2207, %v2211
      %v2213 = vrot.slane %v2000, 2
      %v2214 = vrot.slane %v2002, 2
      %v2215 = vsel %vm2162, %v2213, %v2214
      %v2216 = vrot.slane %v2001, 2
      %v2217 = vrot.slane %v2003, 2
      %v2218 = vsel %vm2162, %v2216, %v2217
      %v2219 = vrot.slane %v2004, 2
      %v2220 = vsel %vm2162, %v2214, %v2219
      %v2221 = vrot.slane %v2005, 2
      %v2222 = vsel %vm2162, %v2217, %v2221
      %v2223 = vrot.slane %v2006, 2
      %v2224 = vrot.slane %v2008, 2
      %v2225 = vsel %vm2162, %v2223, %v2224
      %v2226 = vrot.slane %v2007, 2
      %v2227 = vrot.slane %v2009, 2
      %v2228 = vsel %vm2162, %v2226, %v2227
      %v2229 = vrot.slane %v2010, 2
      %v2230 = vsel %vm2162, %v2224, %v2229
      %v2231 = vrot.slane %v2011, 2
      %v2232 = vsel %vm2162, %v2227, %v2231
      %v2233 = vrot.slane %v2012, 2
      %v2234 = vrot.slane %v2014, 2
      %v2235 = vsel %vm2162, %v2233, %v2234
      %v2236 = vrot.slane %v2013, 2
      %v2237 = vrot.slane %v2015, 2
      %v2238 = vsel %vm2162, %v2236, %v2237
      %v2239 = vrot.slane %v2016, 2
      %v2240 = vsel %vm2162, %v2234, %v2239
      %v2241 = vrot.slane %v2017, 2
      %v2242 = vsel %vm2162, %v2237, %v2241
      %v2243 = vrot.slane %v2018, 2
      %v2244 = vrot.slane %v2020, 2
      %v2245 = vsel %vm2162, %v2243, %v2244
      %v2246 = vrot.slane %v2019, 2
      %v2247 = vrot.slane %v2021, 2
      %v2248 = vsel %vm2162, %v2246, %v2247
      %v2249 = vrot.slane %v2022, 2
      %v2250 = vsel %vm2162, %v2244, %v2249
      %v2251 = vrot.slane %v2023, 2
      %v2252 = vsel %vm2162, %v2247, %v2251
      %v2253 = vrot.slane %v2024, 2
      %v2254 = vrot.slane %v2026, 2
      %v2255 = vsel %vm2162, %v2253, %v2254
      %v2256 = vrot.slane %v2025, 2
      %v2257 = vrot.slane %v2027, 2
      %v2258 = vsel %vm2162, %v2256, %v2257
      %v2259 = vrot.slane %v2028, 2
      %v2260 = vsel %vm2162, %v2254, %v2259
      %v2261 = vrot.slane %v2029, 2
      %v2262 = vsel %vm2162, %v2257, %v2261
      %v2263 = vrot.slane %v2030, 2
      %v2264 = vrot.slane %v2032, 2
      %v2265 = vsel %vm2162, %v2263, %v2264
      %v2266 = vrot.slane %v2031, 2
      %v2267 = vrot.slane %v2033, 2
      %v2268 = vsel %vm2162, %v2266, %v2267
      %v2269 = vrot.slane %v2034, 2
      %v2270 = vsel %vm2162, %v2264, %v2269
      %v2271 = vrot.slane %v2035, 2
      %v2272 = vsel %vm2162, %v2267, %v2271
      %v2273 = vrot.slane %v2036, 2
      %v2274 = vrot.slane %v2038, 2
      %v2275 = vsel %vm2162, %v2273, %v2274
      %v2276 = vrot.slane %v2037, 2
      %v2277 = vrot.slane %v2039, 2
      %v2278 = vsel %vm2162, %v2276, %v2277
      %v2279 = vrot.slane %v2040, 2
      %v2280 = vsel %vm2162, %v2274, %v2279
      %v2281 = vrot.slane %v2041, 2
      %v2282 = vsel %vm2162, %v2277, %v2281
      %v2283 = vrot.slane %v2042, 2
      %v2284 = vrot.slane %v2044, 2
      %v2285 = vsel %vm2162, %v2283, %v2284
      %v2286 = vrot.slane %v2043, 2
      %v2287 = vrot.slane %v2045, 2
      %v2288 = vsel %vm2162, %v2286, %v2287
      %v2289 = vrot.slane %v2046, 2
      %v2290 = vsel %vm2162, %v2284, %v2289
      %v2291 = vrot.slane %v2047, 2
      %v2292 = vsel %vm2162, %v2287, %v2291
      %v2293 = vrot.slane %v2048, 2
      %v2294 = vrot.slane %v2050, 2
      %v2295 = vsel %vm2162, %v2293, %v2294
      %v2296 = vrot.slane %v2049, 2
      %v2297 = vrot.slane %v2051, 2
      %v2298 = vsel %vm2162, %v2296, %v2297
      %v2299 = vrot.slane %v2052, 2
      %v2300 = vsel %vm2162, %v2294, %v2299
      %v2301 = vrot.slane %v2053, 2
      %v2302 = vsel %vm2162, %v2297, %v2301
      %v2303 = vrot.slane %v2054, 2
      %v2304 = vrot.slane %v2056, 2
      %v2305 = vsel %vm2162, %v2303, %v2304
      %v2306 = vrot.slane %v2055, 2
      %v2307 = vrot.slane %v2057, 2
      %v2308 = vsel %vm2162, %v2306, %v2307
      %v2309 = vrot.slane %v2058, 2
      %v2310 = vsel %vm2162, %v2304, %v2309
      %v2311 = vrot.slane %v2059, 2
      %v2312 = vsel %vm2162, %v2307, %v2311
      %v2313 = vrot.slane %v2060, 2
      %v2314 = vrot.slane %v2062, 2
      %v2315 = vsel %vm2162, %v2313, %v2314
      %v2316 = vrot.slane %v2061, 2
      %v2317 = vrot.slane %v2063, 2
      %v2318 = vsel %vm2162, %v2316, %v2317
      %v2319 = vrot.slane %v2064, 2
      %v2320 = vsel %vm2162, %v2314, %v2319
      %v2321 = vrot.slane %v2065, 2
      %v2322 = vsel %vm2162, %v2317, %v2321
      %v2387 = vadd.f32 %v1840, %v2165
      %v2388 = vadd.f32 %v1841, %v2168
      %v2389 = vadd.f32 %v1842, %v2170
      %v2390 = vadd.f32 %v1843, %v2172
      %v2391 = vadd.f32 %v1844, %v2175
      %v2392 = vadd.f32 %v1845, %v2178
      %v2393 = vadd.f32 %v1846, %v2180
      %v2394 = vadd.f32 %v1847, %v2182
      %v2395 = vadd.f32 %v1848, %v2185
      %v2396 = vadd.f32 %v1849, %v2188
      %v2397 = vadd.f32 %v1850, %v2190
      %v2398 = vadd.f32 %v1851, %v2192
      %v2399 = vadd.f32 %v1852, %v2195
      %v2400 = vadd.f32 %v1853, %v2198
      %v2401 = vadd.f32 %v1854, %v2200
      %v2402 = vadd.f32 %v1855, %v2202
      %v2403 = vadd.f32 %v1856, %v2205
      %v2404 = vadd.f32 %v1857, %v2208
      %v2405 = vadd.f32 %v1858, %v2210
      %v2406 = vadd.f32 %v1859, %v2212
      %v2407 = vadd.f32 %v1860, %v2215
      %v2408 = vadd.f32 %v1861, %v2218
      %v2409 = vadd.f32 %v1862, %v2220
      %v2410 = vadd.f32 %v1863, %v2222
      %v2411 = vadd.f32 %v1864, %v2225
      %v2412 = vadd.f32 %v1865, %v2228
      %v2413 = vadd.f32 %v1866, %v2230
      %v2414 = vadd.f32 %v1867, %v2232
      %v2415 = vadd.f32 %v1868, %v2235
      %v2416 = vadd.f32 %v1869, %v2238
      %v2417 = vadd.f32 %v1870, %v2240
      %v2418 = vadd.f32 %v1871, %v2242
      %v2419 = vadd.f32 %v1872, %v2245
      %v2420 = vadd.f32 %v1873, %v2248
      %v2421 = vadd.f32 %v1874, %v2250
      %v2422 = vadd.f32 %v1875, %v2252
      %v2423 = vadd.f32 %v1876, %v2255
      %v2424 = vadd.f32 %v1877, %v2258
      %v2425 = vadd.f32 %v1878, %v2260
      %v2426 = vadd.f32 %v1879, %v2262
      %v2427 = vadd.f32 %v1880, %v2265
      %v2428 = vadd.f32 %v1881, %v2268
      %v2429 = vadd.f32 %v1882, %v2270
      %v2430 = vadd.f32 %v1883, %v2272
      %v2431 = vadd.f32 %v1884, %v2275
      %v2432 = vadd.f32 %v1885, %v2278
      %v2433 = vadd.f32 %v1886, %v2280
      %v2434 = vadd.f32 %v1887, %v2282
      %v2435 = vadd.f32 %v1888, %v2285
      %v2436 = vadd.f32 %v1889, %v2288
      %v2437 = vadd.f32 %v1890, %v2290
      %v2438 = vadd.f32 %v1891, %v2292
      %v2439 = vadd.f32 %v1892, %v2295
      %v2440 = vadd.f32 %v1893, %v2298
      %v2441 = vadd.f32 %v1894, %v2300
      %v2442 = vadd.f32 %v1895, %v2302
      %v2443 = vadd.f32 %v1896, %v2305
      %v2444 = vadd.f32 %v1897, %v2308
      %v2445 = vadd.f32 %v1898, %v2310
      %v2446 = vadd.f32 %v1899, %v2312
      %v2447 = vadd.f32 %v1900, %v2315
      %v2448 = vadd.f32 %v1901, %v2318
      %v2449 = vadd.f32 %v1902, %v2320
      %v2450 = vadd.f32 %v1903, %v2322
      %v2451 = vld [vmem:[%s295] sm:$0xff]
      %v2452 = vld [vmem:[%s295 + $0x8] sm:$0xff]
      %v2453 = vld [vmem:[%s295 + $0x10] sm:$0xff]
      %v2454 = vld [vmem:[%s295 + $0x18] sm:$0xff]
      %v2455 = vld [vmem:[%s295 + $0x30] sm:$0xff]
      %v2456 = vld [vmem:[%s295 + $0x38] sm:$0xff]
      %v2457 = vld [vmem:[%s295 + $0x40] sm:$0xff]
      %v2458 = vld [vmem:[%s295 + $0x48] sm:$0xff]
      %v2459 = vld [vmem:[%s295 + $0x60] sm:$0xff]
      %v2460 = vld [vmem:[%s295 + $0x68] sm:$0xff]
      %v2461 = vld [vmem:[%s295 + $0x70] sm:$0xff]
      %v2462 = vld [vmem:[%s295 + $0x78] sm:$0xff]
      %v2463 = vld [vmem:[%s295 + $0x90] sm:$0xff]
      %v2464 = vld [vmem:[%s295 + $0x98] sm:$0xff]
      %v2465 = vld [vmem:[%s295 + $0xa0] sm:$0xff]
      %v2466 = vld [vmem:[%s295 + $0xa8] sm:$0xff]
      %v2467 = vld [vmem:[%s295 + $0xc0] sm:$0xff]
      %v2468 = vld [vmem:[%s295 + $0xc8] sm:$0xff]
      %v2469 = vld [vmem:[%s295 + $0xd0] sm:$0xff]
      %v2470 = vld [vmem:[%s295 + $0xd8] sm:$0xff]
      %v2471 = vld [vmem:[%s295 + $0xf0] sm:$0xff]
      %v2472 = vld [vmem:[%s295 + $0xf8] sm:$0xff]
      %v2473 = vld [vmem:[%s295 + $0x100] sm:$0xff]
      %v2474 = vld [vmem:[%s295 + $0x108] sm:$0xff]
      %v2475 = vld [vmem:[%s295 + $0x120] sm:$0xff]
      %v2476 = vld [vmem:[%s295 + $0x128] sm:$0xff]
      %v2477 = vld [vmem:[%s295 + $0x130] sm:$0xff]
      %v2478 = vld [vmem:[%s295 + $0x138] sm:$0xff]
      %v2479 = vld [vmem:[%s295 + $0x150] sm:$0xff]
      %v2480 = vld [vmem:[%s295 + $0x158] sm:$0xff]
      %v2481 = vld [vmem:[%s295 + $0x160] sm:$0xff]
      %v2482 = vld [vmem:[%s295 + $0x168] sm:$0xff]
      %v2483 = vld [vmem:[%s295 + $0x180] sm:$0xff]
      %v2484 = vld [vmem:[%s295 + $0x188] sm:$0xff]
      %v2485 = vld [vmem:[%s295 + $0x190] sm:$0xff]
      %v2486 = vld [vmem:[%s295 + $0x198] sm:$0xff]
      %v2487 = vld [vmem:[%s295 + $0x1b0] sm:$0xff]
      %v2488 = vld [vmem:[%s295 + $0x1b8] sm:$0xff]
      %v2489 = vld [vmem:[%s295 + $0x1c0] sm:$0xff]
      %v2490 = vld [vmem:[%s295 + $0x1c8] sm:$0xff]
      %v2491 = vld [vmem:[%s295 + $0x1e0] sm:$0xff]
      %v2492 = vld [vmem:[%s295 + $0x1e8] sm:$0xff]
      %v2493 = vld [vmem:[%s295 + $0x1f0] sm:$0xff]
      %v2494 = vld [vmem:[%s295 + $0x1f8] sm:$0xff]
      %v2495 = vld [vmem:[%s295 + $0x210] sm:$0xff]
      %v2496 = vld [vmem:[%s295 + $0x218] sm:$0xff]
      %v2497 = vld [vmem:[%s295 + $0x220] sm:$0xff]
      %v2498 = vld [vmem:[%s295 + $0x228] sm:$0xff]
      %v2499 = vld [vmem:[%s295 + $0x240] sm:$0xff]
      %v2500 = vld [vmem:[%s295 + $0x248] sm:$0xff]
      %v2501 = vld [vmem:[%s295 + $0x250] sm:$0xff]
      %v2502 = vld [vmem:[%s295 + $0x258] sm:$0xff]
      %v2503 = vld [vmem:[%s295 + $0x270] sm:$0xff]
      %v2504 = vld [vmem:[%s295 + $0x278] sm:$0xff]
      %v2505 = vld [vmem:[%s295 + $0x280] sm:$0xff]
      %v2506 = vld [vmem:[%s295 + $0x288] sm:$0xff]
      %v2507 = vld [vmem:[%s295 + $0x2a0] sm:$0xff]
      %v2508 = vld [vmem:[%s295 + $0x2a8] sm:$0xff]
      %v2509 = vld [vmem:[%s295 + $0x2b0] sm:$0xff]
      %v2510 = vld [vmem:[%s295 + $0x2b8] sm:$0xff]
      %v2511 = vld [vmem:[%s295 + $0x2d0] sm:$0xff]
      %v2512 = vld [vmem:[%s295 + $0x2d8] sm:$0xff]
      %v2513 = vld [vmem:[%s295 + $0x2e0] sm:$0xff]
      %v2514 = vld [vmem:[%s295 + $0x2e8] sm:$0xff]
      %v2515 = vperm.slane %v1223, 3
      %v2516 = vperm.slane %v1224, 3
      %v2517 = vmul.f32 %v2451, %v2515
      %v2518 = vmul.f32 %v2452, %v2516
      %v2519 = vmul.f32 %v2453, %v2515
      %v2520 = vmul.f32 %v2454, %v2516
      %v2521 = vmul.f32 %v2455, %v2515
      %v2522 = vmul.f32 %v2456, %v2516
      %v2523 = vmul.f32 %v2457, %v2515
      %v2524 = vmul.f32 %v2458, %v2516
      %v2525 = vmul.f32 %v2459, %v2515
      %v2526 = vmul.f32 %v2460, %v2516
      %v2527 = vmul.f32 %v2461, %v2515
      %v2528 = vmul.f32 %v2462, %v2516
      %v2529 = vmul.f32 %v2463, %v2515
      %v2530 = vmul.f32 %v2464, %v2516
      %v2531 = vmul.f32 %v2465, %v2515
      %v2532 = vmul.f32 %v2466, %v2516
      %v2533 = vmul.f32 %v2467, %v2515
      %v2534 = vmul.f32 %v2468, %v2516
      %v2535 = vmul.f32 %v2469, %v2515
      %v2536 = vmul.f32 %v2470, %v2516
      %v2537 = vmul.f32 %v2471, %v2515
      %v2538 = vmul.f32 %v2472, %v2516
      %v2539 = vmul.f32 %v2473, %v2515
      %v2540 = vmul.f32 %v2474, %v2516
      %v2541 = vmul.f32 %v2475, %v2515
      %v2542 = vmul.f32 %v2476, %v2516
      %v2543 = vmul.f32 %v2477, %v2515
      %v2544 = vmul.f32 %v2478, %v2516
      %v2545 = vmul.f32 %v2479, %v2515
      %v2546 = vmul.f32 %v2480, %v2516
      %v2547 = vmul.f32 %v2481, %v2515
      %v2548 = vmul.f32 %v2482, %v2516
      %v2549 = vmul.f32 %v2483, %v2515
      %v2550 = vmul.f32 %v2484, %v2516
      %v2551 = vmul.f32 %v2485, %v2515
      %v2552 = vmul.f32 %v2486, %v2516
      %v2553 = vmul.f32 %v2487, %v2515
      %v2554 = vmul.f32 %v2488, %v2516
      %v2555 = vmul.f32 %v2489, %v2515
      %v2556 = vmul.f32 %v2490, %v2516
      %v2557 = vmul.f32 %v2491, %v2515
      %v2558 = vmul.f32 %v2492, %v2516
      %v2559 = vmul.f32 %v2493, %v2515
      %v2560 = vmul.f32 %v2494, %v2516
      %v2561 = vmul.f32 %v2495, %v2515
      %v2562 = vmul.f32 %v2496, %v2516
      %v2563 = vmul.f32 %v2497, %v2515
      %v2564 = vmul.f32 %v2498, %v2516
      %v2565 = vmul.f32 %v2499, %v2515
      %v2566 = vmul.f32 %v2500, %v2516
      %v2567 = vmul.f32 %v2501, %v2515
      %v2568 = vmul.f32 %v2502, %v2516
      %v2569 = vmul.f32 %v2503, %v2515
      %v2570 = vmul.f32 %v2504, %v2516
      %v2571 = vmul.f32 %v2505, %v2515
      %v2572 = vmul.f32 %v2506, %v2516
      %v2573 = vmul.f32 %v2507, %v2515
      %v2574 = vmul.f32 %v2508, %v2516
      %v2575 = vmul.f32 %v2509, %v2515
      %v2576 = vmul.f32 %v2510, %v2516
      %v2577 = vmul.f32 %v2511, %v2515
      %v2578 = vmul.f32 %v2512, %v2516
      %v2579 = vmul.f32 %v2513, %v2515
      %v2580 = vmul.f32 %v2514, %v2516
      %v2581 = vadd.f32 %v2387, %v2517
      %v2582 = vadd.f32 %v2388, %v2518
      %v2583 = vadd.f32 %v2389, %v2519
      %v2584 = vadd.f32 %v2390, %v2520
      %v2585 = vadd.f32 %v2391, %v2521
      %v2586 = vadd.f32 %v2392, %v2522
      %v2587 = vadd.f32 %v2393, %v2523
      %v2588 = vadd.f32 %v2394, %v2524
      %v2589 = vadd.f32 %v2395, %v2525
      %v2590 = vadd.f32 %v2396, %v2526
      %v2591 = vadd.f32 %v2397, %v2527
      %v2592 = vadd.f32 %v2398, %v2528
      %v2593 = vadd.f32 %v2399, %v2529
      %v2594 = vadd.f32 %v2400, %v2530
      %v2595 = vadd.f32 %v2401, %v2531
      %v2596 = vadd.f32 %v2402, %v2532
      %v2597 = vadd.f32 %v2403, %v2533
      %v2598 = vadd.f32 %v2404, %v2534
      %v2599 = vadd.f32 %v2405, %v2535
      %v2600 = vadd.f32 %v2406, %v2536
      %v2601 = vadd.f32 %v2407, %v2537
      %v2602 = vadd.f32 %v2408, %v2538
      %v2603 = vadd.f32 %v2409, %v2539
      %v2604 = vadd.f32 %v2410, %v2540
      %v2605 = vadd.f32 %v2411, %v2541
      %v2606 = vadd.f32 %v2412, %v2542
      %v2607 = vadd.f32 %v2413, %v2543
      %v2608 = vadd.f32 %v2414, %v2544
      %v2609 = vadd.f32 %v2415, %v2545
      %v2610 = vadd.f32 %v2416, %v2546
      %v2611 = vadd.f32 %v2417, %v2547
      %v2612 = vadd.f32 %v2418, %v2548
      %v2613 = vadd.f32 %v2419, %v2549
      %v2614 = vadd.f32 %v2420, %v2550
      %v2615 = vadd.f32 %v2421, %v2551
      %v2616 = vadd.f32 %v2422, %v2552
      %v2617 = vadd.f32 %v2423, %v2553
      %v2618 = vadd.f32 %v2424, %v2554
      %v2619 = vadd.f32 %v2425, %v2555
      %v2620 = vadd.f32 %v2426, %v2556
      %v2621 = vadd.f32 %v2427, %v2557
      %v2622 = vadd.f32 %v2428, %v2558
      %v2623 = vadd.f32 %v2429, %v2559
      %v2624 = vadd.f32 %v2430, %v2560
      %v2625 = vadd.f32 %v2431, %v2561
      %v2626 = vadd.f32 %v2432, %v2562
      %v2627 = vadd.f32 %v2433, %v2563
      %v2628 = vadd.f32 %v2434, %v2564
      %v2629 = vadd.f32 %v2435, %v2565
      %v2630 = vadd.f32 %v2436, %v2566
      %v2631 = vadd.f32 %v2437, %v2567
      %v2632 = vadd.f32 %v2438, %v2568
      %v2633 = vadd.f32 %v2439, %v2569
      %v2634 = vadd.f32 %v2440, %v2570
      %v2635 = vadd.f32 %v2441, %v2571
      %v2636 = vadd.f32 %v2442, %v2572
      %v2637 = vadd.f32 %v2443, %v2573
      %v2638 = vadd.f32 %v2444, %v2574
      %v2639 = vadd.f32 %v2445, %v2575
      %v2640 = vadd.f32 %v2446, %v2576
      %v2641 = vadd.f32 %v2447, %v2577
      %v2642 = vadd.f32 %v2448, %v2578
      %v2643 = vadd.f32 %v2449, %v2579
      %v2644 = vadd.f32 %v2450, %v2580
      %v2645 = vld [vmem:[%s295] sm:$0xfe]
      %v2646 = vld [vmem:[%s295 + $0x8] sm:$0xfe]
      %v2647 = vld [vmem:[%s295 + $0x20] sm:$0x1]
      %v2648 = vld [vmem:[%s295 + $0x28] sm:$0x1]
      %v2649 = vld [vmem:[%s295 + $0x30] sm:$0xfe]
      %v2650 = vld [vmem:[%s295 + $0x38] sm:$0xfe]
      %v2651 = vld [vmem:[%s295 + $0x50] sm:$0x1]
      %v2652 = vld [vmem:[%s295 + $0x58] sm:$0x1]
      %v2653 = vld [vmem:[%s295 + $0x60] sm:$0xfe]
      %v2654 = vld [vmem:[%s295 + $0x68] sm:$0xfe]
      %v2655 = vld [vmem:[%s295 + $0x80] sm:$0x1]
      %v2656 = vld [vmem:[%s295 + $0x88] sm:$0x1]
      %v2657 = vld [vmem:[%s295 + $0x90] sm:$0xfe]
      %v2658 = vld [vmem:[%s295 + $0x98] sm:$0xfe]
      %v2659 = vld [vmem:[%s295 + $0xb0] sm:$0x1]
      %v2660 = vld [vmem:[%s295 + $0xb8] sm:$0x1]
      %v2661 = vld [vmem:[%s295 + $0xc0] sm:$0xfe]
      %v2662 = vld [vmem:[%s295 + $0xc8] sm:$0xfe]
      %v2663 = vld [vmem:[%s295 + $0xe0] sm:$0x1]
      %v2664 = vld [vmem:[%s295 + $0xe8] sm:$0x1]
      %v2665 = vld [vmem:[%s295 + $0xf0] sm:$0xfe]
      %v2666 = vld [vmem:[%s295 + $0xf8] sm:$0xfe]
      %v2667 = vld [vmem:[%s295 + $0x110] sm:$0x1]
      %v2668 = vld [vmem:[%s295 + $0x118] sm:$0x1]
      %v2669 = vld [vmem:[%s295 + $0x120] sm:$0xfe]
      %v2670 = vld [vmem:[%s295 + $0x128] sm:$0xfe]
      %v2671 = vld [vmem:[%s295 + $0x140] sm:$0x1]
      %v2672 = vld [vmem:[%s295 + $0x148] sm:$0x1]
      %v2673 = vld [vmem:[%s295 + $0x150] sm:$0xfe]
      %v2674 = vld [vmem:[%s295 + $0x158] sm:$0xfe]
      %v2675 = vld [vmem:[%s295 + $0x170] sm:$0x1]
      %v2676 = vld [vmem:[%s295 + $0x178] sm:$0x1]
      %v2677 = vld [vmem:[%s295 + $0x180] sm:$0xfe]
      %v2678 = vld [vmem:[%s295 + $0x188] sm:$0xfe]
      %v2679 = vld [vmem:[%s295 + $0x1a0] sm:$0x1]
      %v2680 = vld [vmem:[%s295 + $0x1a8] sm:$0x1]
      %v2681 = vld [vmem:[%s295 + $0x1b0] sm:$0xfe]
      %v2682 = vld [vmem:[%s295 + $0x1b8] sm:$0xfe]
      %v2683 = vld [vmem:[%s295 + $0x1d0] sm:$0x1]
      %v2684 = vld [vmem:[%s295 + $0x1d8] sm:$0x1]
      %v2685 = vld [vmem:[%s295 + $0x1e0] sm:$0xfe]
      %v2686 = vld [vmem:[%s295 + $0x1e8] sm:$0xfe]
      %v2687 = vld [vmem:[%s295 + $0x200] sm:$0x1]
      %v2688 = vld [vmem:[%s295 + $0x208] sm:$0x1]
      %v2689 = vld [vmem:[%s295 + $0x210] sm:$0xfe]
      %v2690 = vld [vmem:[%s295 + $0x218] sm:$0xfe]
      %v2691 = vld [vmem:[%s295 + $0x230] sm:$0x1]
      %v2692 = vld [vmem:[%s295 + $0x238] sm:$0x1]
      %v2693 = vld [vmem:[%s295 + $0x240] sm:$0xfe]
      %v2694 = vld [vmem:[%s295 + $0x248] sm:$0xfe]
      %v2695 = vld [vmem:[%s295 + $0x260] sm:$0x1]
      %v2696 = vld [vmem:[%s295 + $0x268] sm:$0x1]
      %v2697 = vld [vmem:[%s295 + $0x270] sm:$0xfe]
      %v2698 = vld [vmem:[%s295 + $0x278] sm:$0xfe]
      %v2699 = vld [vmem:[%s295 + $0x290] sm:$0x1]
      %v2700 = vld [vmem:[%s295 + $0x298] sm:$0x1]
      %v2701 = vld [vmem:[%s295 + $0x2a0] sm:$0xfe]
      %v2702 = vld [vmem:[%s295 + $0x2a8] sm:$0xfe]
      %v2703 = vld [vmem:[%s295 + $0x2c0] sm:$0x1]
      %v2704 = vld [vmem:[%s295 + $0x2c8] sm:$0x1]
      %v2705 = vld [vmem:[%s295 + $0x2d0] sm:$0xfe]
      %v2706 = vld [vmem:[%s295 + $0x2d8] sm:$0xfe]
      %v2707 = vld [vmem:[%s295 + $0x2f0] sm:$0x1]
      %v2708 = vld [vmem:[%s295 + $0x2f8] sm:$0x1]
      %v2709 = vperm.slane %v1223, 4
      %v2710 = vperm.slane %v1224, 4
      %v2711 = vmul.f32 %v2645, %v2709
      %v2712 = vmul.f32 %v2646, %v2710
      %v2713 = vmul.f32 %v2453, %v2709
      %v2714 = vmul.f32 %v2454, %v2710
      %v2715 = vmul.f32 %v2647, %v2709
      %v2716 = vmul.f32 %v2648, %v2710
      %v2717 = vmul.f32 %v2649, %v2709
      %v2718 = vmul.f32 %v2650, %v2710
      %v2719 = vmul.f32 %v2457, %v2709
      %v2720 = vmul.f32 %v2458, %v2710
      %v2721 = vmul.f32 %v2651, %v2709
      %v2722 = vmul.f32 %v2652, %v2710
      %v2723 = vmul.f32 %v2653, %v2709
      %v2724 = vmul.f32 %v2654, %v2710
      %v2725 = vmul.f32 %v2461, %v2709
      %v2726 = vmul.f32 %v2462, %v2710
      %v2727 = vmul.f32 %v2655, %v2709
      %v2728 = vmul.f32 %v2656, %v2710
      %v2729 = vmul.f32 %v2657, %v2709
      %v2730 = vmul.f32 %v2658, %v2710
      %v2731 = vmul.f32 %v2465, %v2709
      %v2732 = vmul.f32 %v2466, %v2710
      %v2733 = vmul.f32 %v2659, %v2709
      %v2734 = vmul.f32 %v2660, %v2710
      %v2735 = vmul.f32 %v2661, %v2709
      %v2736 = vmul.f32 %v2662, %v2710
      %v2737 = vmul.f32 %v2469, %v2709
      %v2738 = vmul.f32 %v2470, %v2710
      %v2739 = vmul.f32 %v2663, %v2709
      %v2740 = vmul.f32 %v2664, %v2710
      %v2741 = vmul.f32 %v2665, %v2709
      %v2742 = vmul.f32 %v2666, %v2710
      %v2743 = vmul.f32 %v2473, %v2709
      %v2744 = vmul.f32 %v2474, %v2710
      %v2745 = vmul.f32 %v2667, %v2709
      %v2746 = vmul.f32 %v2668, %v2710
      %v2747 = vmul.f32 %v2669, %v2709
      %v2748 = vmul.f32 %v2670, %v2710
      %v2749 = vmul.f32 %v2477, %v2709
      %v2750 = vmul.f32 %v2478, %v2710
      %v2751 = vmul.f32 %v2671, %v2709
      %v2752 = vmul.f32 %v2672, %v2710
      %v2753 = vmul.f32 %v2673, %v2709
      %v2754 = vmul.f32 %v2674, %v2710
      %v2755 = vmul.f32 %v2481, %v2709
      %v2756 = vmul.f32 %v2482, %v2710
      %v2757 = vmul.f32 %v2675, %v2709
      %v2758 = vmul.f32 %v2676, %v2710
      %v2759 = vmul.f32 %v2677, %v2709
      %v2760 = vmul.f32 %v2678, %v2710
      %v2761 = vmul.f32 %v2485, %v2709
      %v2762 = vmul.f32 %v2486, %v2710
      %v2763 = vmul.f32 %v2679, %v2709
      %v2764 = vmul.f32 %v2680, %v2710
      %v2765 = vmul.f32 %v2681, %v2709
      %v2766 = vmul.f32 %v2682, %v2710
      %v2767 = vmul.f32 %v2489, %v2709
      %v2768 = vmul.f32 %v2490, %v2710
      %v2769 = vmul.f32 %v2683, %v2709
      %v2770 = vmul.f32 %v2684, %v2710
      %v2771 = vmul.f32 %v2685, %v2709
      %v2772 = vmul.f32 %v2686, %v2710
      %v2773 = vmul.f32 %v2493, %v2709
      %v2774 = vmul.f32 %v2494, %v2710
      %v2775 = vmul.f32 %v2687, %v2709
      %v2776 = vmul.f32 %v2688, %v2710
      %v2777 = vmul.f32 %v2689, %v2709
      %v2778 = vmul.f32 %v2690, %v2710
      %v2779 = vmul.f32 %v2497, %v2709
      %v2780 = vmul.f32 %v2498, %v2710
      %v2781 = vmul.f32 %v2691, %v2709
      %v2782 = vmul.f32 %v2692, %v2710
      %v2783 = vmul.f32 %v2693, %v2709
      %v2784 = vmul.f32 %v2694, %v2710
      %v2785 = vmul.f32 %v2501, %v2709
      %v2786 = vmul.f32 %v2502, %v2710
      %v2787 = vmul.f32 %v2695, %v2709
      %v2788 = vmul.f32 %v2696, %v2710
      %v2789 = vmul.f32 %v2697, %v2709
      %v2790 = vmul.f32 %v2698, %v2710
      %v2791 = vmul.f32 %v2505, %v2709
      %v2792 = vmul.f32 %v2506, %v2710
      %v2793 = vmul.f32 %v2699, %v2709
      %v2794 = vmul.f32 %v2700, %v2710
      %v2795 = vmul.f32 %v2701, %v2709
      %v2796 = vmul.f32 %v2702, %v2710
      %v2797 = vmul.f32 %v2509, %v2709
      %v2798 = vmul.f32 %v2510, %v2710
      %v2799 = vmul.f32 %v2703, %v2709
      %v2800 = vmul.f32 %v2704, %v2710
      %v2801 = vmul.f32 %v2705, %v2709
      %v2802 = vmul.f32 %v2706, %v2710
      %v2803 = vmul.f32 %v2513, %v2709
      %v2804 = vmul.f32 %v2514, %v2710
      %v2805 = vmul.f32 %v2707, %v2709
      %v2806 = vmul.f32 %v2708, %v2710
      %v2903 = vrot.slane %v2711, 1
      %v2904 = vrot.slane %v2713, 1
      %v2905 = vsel %vm1615, %v2903, %v2904
      %v2906 = vrot.slane %v2712, 1
      %v2907 = vrot.slane %v2714, 1
      %v2908 = vsel %vm1615, %v2906, %v2907
      %v2909 = vrot.slane %v2715, 1
      %v2910 = vsel %vm1615, %v2904, %v2909
      %v2911 = vrot.slane %v2716, 1
      %v2912 = vsel %vm1615, %v2907, %v2911
      %v2913 = vrot.slane %v2717, 1
      %v2914 = vrot.slane %v2719, 1
      %v2915 = vsel %vm1615, %v2913, %v2914
      %v2916 = vrot.slane %v2718, 1
      %v2917 = vrot.slane %v2720, 1
      %v2918 = vsel %vm1615, %v2916, %v2917
      %v2919 = vrot.slane %v2721, 1
      %v2920 = vsel %vm1615, %v2914, %v2919
      %v2921 = vrot.slane %v2722, 1
      %v2922 = vsel %vm1615, %v2917, %v2921
      %v2923 = vrot.slane %v2723, 1
      %v2924 = vrot.slane %v2725, 1
      %v2925 = vsel %vm1615, %v2923, %v2924
      %v2926 = vrot.slane %v2724, 1
      %v2927 = vrot.slane %v2726, 1
      %v2928 = vsel %vm1615, %v2926, %v2927
      %v2929 = vrot.slane %v2727, 1
      %v2930 = vsel %vm1615, %v2924, %v2929
      %v2931 = vrot.slane %v2728, 1
      %v2932 = vsel %vm1615, %v2927, %v2931
      %v2933 = vrot.slane %v2729, 1
      %v2934 = vrot.slane %v2731, 1
      %v2935 = vsel %vm1615, %v2933, %v2934
      %v2936 = vrot.slane %v2730, 1
      %v2937 = vrot.slane %v2732, 1
      %v2938 = vsel %vm1615, %v2936, %v2937
      %v2939 = vrot.slane %v2733, 1
      %v2940 = vsel %vm1615, %v2934, %v2939
      %v2941 = vrot.slane %v2734, 1
      %v2942 = vsel %vm1615, %v2937, %v2941
      %v2943 = vrot.slane %v2735, 1
      %v2944 = vrot.slane %v2737, 1
      %v2945 = vsel %vm1615, %v2943, %v2944
      %v2946 = vrot.slane %v2736, 1
      %v2947 = vrot.slane %v2738, 1
      %v2948 = vsel %vm1615, %v2946, %v2947
      %v2949 = vrot.slane %v2739, 1
      %v2950 = vsel %vm1615, %v2944, %v2949
      %v2951 = vrot.slane %v2740, 1
      %v2952 = vsel %vm1615, %v2947, %v2951
      %v2953 = vrot.slane %v2741, 1
      %v2954 = vrot.slane %v2743, 1
      %v2955 = vsel %vm1615, %v2953, %v2954
      %v2956 = vrot.slane %v2742, 1
      %v2957 = vrot.slane %v2744, 1
      %v2958 = vsel %vm1615, %v2956, %v2957
      %v2959 = vrot.slane %v2745, 1
      %v2960 = vsel %vm1615, %v2954, %v2959
      %v2961 = vrot.slane %v2746, 1
      %v2962 = vsel %vm1615, %v2957, %v2961
      %v2963 = vrot.slane %v2747, 1
      %v2964 = vrot.slane %v2749, 1
      %v2965 = vsel %vm1615, %v2963, %v2964
      %v2966 = vrot.slane %v2748, 1
      %v2967 = vrot.slane %v2750, 1
      %v2968 = vsel %vm1615, %v2966, %v2967
      %v2969 = vrot.slane %v2751, 1
      %v2970 = vsel %vm1615, %v2964, %v2969
      %v2971 = vrot.slane %v2752, 1
      %v2972 = vsel %vm1615, %v2967, %v2971
      %v2973 = vrot.slane %v2753, 1
      %v2974 = vrot.slane %v2755, 1
      %v2975 = vsel %vm1615, %v2973, %v2974
      %v2976 = vrot.slane %v2754, 1
      %v2977 = vrot.slane %v2756, 1
      %v2978 = vsel %vm1615, %v2976, %v2977
      %v2979 = vrot.slane %v2757, 1
      %v2980 = vsel %vm1615, %v2974, %v2979
      %v2981 = vrot.slane %v2758, 1
      %v2982 = vsel %vm1615, %v2977, %v2981
      %v2983 = vrot.slane %v2759, 1
      %v2984 = vrot.slane %v2761, 1
      %v2985 = vsel %vm1615, %v2983, %v2984
      %v2986 = vrot.slane %v2760, 1
      %v2987 = vrot.slane %v2762, 1
      %v2988 = vsel %vm1615, %v2986, %v2987
      %v2989 = vrot.slane %v2763, 1
      %v2990 = vsel %vm1615, %v2984, %v2989
      %v2991 = vrot.slane %v2764, 1
      %v2992 = vsel %vm1615, %v2987, %v2991
      %v2993 = vrot.slane %v2765, 1
      %v2994 = vrot.slane %v2767, 1
      %v2995 = vsel %vm1615, %v2993, %v2994
      %v2996 = vrot.slane %v2766, 1
      %v2997 = vrot.slane %v2768, 1
      %v2998 = vsel %vm1615, %v2996, %v2997
      %v2999 = vrot.slane %v2769, 1
      %v3000 = vsel %vm1615, %v2994, %v2999
      %v3001 = vrot.slane %v2770, 1
      %v3002 = vsel %vm1615, %v2997, %v3001
      %v3003 = vrot.slane %v2771, 1
      %v3004 = vrot.slane %v2773, 1
      %v3005 = vsel %vm1615, %v3003, %v3004
      %v3006 = vrot.slane %v2772, 1
      %v3007 = vrot.slane %v2774, 1
      %v3008 = vsel %vm1615, %v3006, %v3007
      %v3009 = vrot.slane %v2775, 1
      %v3010 = vsel %vm1615, %v3004, %v3009
      %v3011 = vrot.slane %v2776, 1
      %v3012 = vsel %vm1615, %v3007, %v3011
      %v3013 = vrot.slane %v2777, 1
      %v3014 = vrot.slane %v2779, 1
      %v3015 = vsel %vm1615, %v3013, %v3014
      %v3016 = vrot.slane %v2778, 1
      %v3017 = vrot.slane %v2780, 1
      %v3018 = vsel %vm1615, %v3016, %v3017
      %v3019 = vrot.slane %v2781, 1
      %v3020 = vsel %vm1615, %v3014, %v3019
      %v3021 = vrot.slane %v2782, 1
      %v3022 = vsel %vm1615, %v3017, %v3021
      %v3023 = vrot.slane %v2783, 1
      %v3024 = vrot.slane %v2785, 1
      %v3025 = vsel %vm1615, %v3023, %v3024
      %v3026 = vrot.slane %v2784, 1
      %v3027 = vrot.slane %v2786, 1
      %v3028 = vsel %vm1615, %v3026, %v3027
      %v3029 = vrot.slane %v2787, 1
      %v3030 = vsel %vm1615, %v3024, %v3029
      %v3031 = vrot.slane %v2788, 1
      %v3032 = vsel %vm1615, %v3027, %v3031
      %v3033 = vrot.slane %v2789, 1
      %v3034 = vrot.slane %v2791, 1
      %v3035 = vsel %vm1615, %v3033, %v3034
      %v3036 = vrot.slane %v2790, 1
      %v3037 = vrot.slane %v2792, 1
      %v3038 = vsel %vm1615, %v3036, %v3037
      %v3039 = vrot.slane %v2793, 1
      %v3040 = vsel %vm1615, %v3034, %v3039
      %v3041 = vrot.slane %v2794, 1
      %v3042 = vsel %vm1615, %v3037, %v3041
      %v3043 = vrot.slane %v2795, 1
      %v3044 = vrot.slane %v2797, 1
      %v3045 = vsel %vm1615, %v3043, %v3044
      %v3046 = vrot.slane %v2796, 1
      %v3047 = vrot.slane %v2798, 1
      %v3048 = vsel %vm1615, %v3046, %v3047
      %v3049 = vrot.slane %v2799, 1
      %v3050 = vsel %vm1615, %v3044, %v3049
      %v3051 = vrot.slane %v2800, 1
      %v3052 = vsel %vm1615, %v3047, %v3051
      %v3053 = vrot.slane %v2801, 1
      %v3054 = vrot.slane %v2803, 1
      %v3055 = vsel %vm1615, %v3053, %v3054
      %v3056 = vrot.slane %v2802, 1
      %v3057 = vrot.slane %v2804, 1
      %v3058 = vsel %vm1615, %v3056, %v3057
      %v3059 = vrot.slane %v2805, 1
      %v3060 = vsel %vm1615, %v3054, %v3059
      %v3061 = vrot.slane %v2806, 1
      %v3062 = vsel %vm1615, %v3057, %v3061
      %v3127 = vadd.f32 %v2581, %v2905
      %v3128 = vadd.f32 %v2582, %v2908
      %v3129 = vadd.f32 %v2583, %v2910
      %v3130 = vadd.f32 %v2584, %v2912
      %v3131 = vadd.f32 %v2585, %v2915
      %v3132 = vadd.f32 %v2586, %v2918
      %v3133 = vadd.f32 %v2587, %v2920
      %v3134 = vadd.f32 %v2588, %v2922
      %v3135 = vadd.f32 %v2589, %v2925
      %v3136 = vadd.f32 %v2590, %v2928
      %v3137 = vadd.f32 %v2591, %v2930
      %v3138 = vadd.f32 %v2592, %v2932
      %v3139 = vadd.f32 %v2593, %v2935
      %v3140 = vadd.f32 %v2594, %v2938
      %v3141 = vadd.f32 %v2595, %v2940
      %v3142 = vadd.f32 %v2596, %v2942
      %v3143 = vadd.f32 %v2597, %v2945
      %v3144 = vadd.f32 %v2598, %v2948
      %v3145 = vadd.f32 %v2599, %v2950
      %v3146 = vadd.f32 %v2600, %v2952
      %v3147 = vadd.f32 %v2601, %v2955
      %v3148 = vadd.f32 %v2602, %v2958
      %v3149 = vadd.f32 %v2603, %v2960
      %v3150 = vadd.f32 %v2604, %v2962
      %v3151 = vadd.f32 %v2605, %v2965
      %v3152 = vadd.f32 %v2606, %v2968
      %v3153 = vadd.f32 %v2607, %v2970
      %v3154 = vadd.f32 %v2608, %v2972
      %v3155 = vadd.f32 %v2609, %v2975
      %v3156 = vadd.f32 %v2610, %v2978
      %v3157 = vadd.f32 %v2611, %v2980
      %v3158 = vadd.f32 %v2612, %v2982
      %v3159 = vadd.f32 %v2613, %v2985
      %v3160 = vadd.f32 %v2614, %v2988
      %v3161 = vadd.f32 %v2615, %v2990
      %v3162 = vadd.f32 %v2616, %v2992
      %v3163 = vadd.f32 %v2617, %v2995
      %v3164 = vadd.f32 %v2618, %v2998
      %v3165 = vadd.f32 %v2619, %v3000
      %v3166 = vadd.f32 %v2620, %v3002
      %v3167 = vadd.f32 %v2621, %v3005
      %v3168 = vadd.f32 %v2622, %v3008
      %v3169 = vadd.f32 %v2623, %v3010
      %v3170 = vadd.f32 %v2624, %v3012
      %v3171 = vadd.f32 %v2625, %v3015
      %v3172 = vadd.f32 %v2626, %v3018
      %v3173 = vadd.f32 %v2627, %v3020
      %v3174 = vadd.f32 %v2628, %v3022
      %v3175 = vadd.f32 %v2629, %v3025
      %v3176 = vadd.f32 %v2630, %v3028
      %v3177 = vadd.f32 %v2631, %v3030
      %v3178 = vadd.f32 %v2632, %v3032
      %v3179 = vadd.f32 %v2633, %v3035
      %v3180 = vadd.f32 %v2634, %v3038
      %v3181 = vadd.f32 %v2635, %v3040
      %v3182 = vadd.f32 %v2636, %v3042
      %v3183 = vadd.f32 %v2637, %v3045
      %v3184 = vadd.f32 %v2638, %v3048
      %v3185 = vadd.f32 %v2639, %v3050
      %v3186 = vadd.f32 %v2640, %v3052
      %v3187 = vadd.f32 %v2641, %v3055
      %v3188 = vadd.f32 %v2642, %v3058
      %v3189 = vadd.f32 %v2643, %v3060
      %v3190 = vadd.f32 %v2644, %v3062
      %v3191 = vld [vmem:[%s295] sm:$0xfc]
      %v3192 = vld [vmem:[%s295 + $0x8] sm:$0xfc]
      %v3193 = vld [vmem:[%s295 + $0x20] sm:$0x3]
      %v3194 = vld [vmem:[%s295 + $0x28] sm:$0x3]
      %v3195 = vld [vmem:[%s295 + $0x30] sm:$0xfc]
      %v3196 = vld [vmem:[%s295 + $0x38] sm:$0xfc]
      %v3197 = vld [vmem:[%s295 + $0x50] sm:$0x3]
      %v3198 = vld [vmem:[%s295 + $0x58] sm:$0x3]
      %v3199 = vld [vmem:[%s295 + $0x60] sm:$0xfc]
      %v3200 = vld [vmem:[%s295 + $0x68] sm:$0xfc]
      %v3201 = vld [vmem:[%s295 + $0x80] sm:$0x3]
      %v3202 = vld [vmem:[%s295 + $0x88] sm:$0x3]
      %v3203 = vld [vmem:[%s295 + $0x90] sm:$0xfc]
      %v3204 = vld [vmem:[%s295 + $0x98] sm:$0xfc]
      %v3205 = vld [vmem:[%s295 + $0xb0] sm:$0x3]
      %v3206 = vld [vmem:[%s295 + $0xb8] sm:$0x3]
      %v3207 = vld [vmem:[%s295 + $0xc0] sm:$0xfc]
      %v3208 = vld [vmem:[%s295 + $0xc8] sm:$0xfc]
      %v3209 = vld [vmem:[%s295 + $0xe0] sm:$0x3]
      %v3210 = vld [vmem:[%s295 + $0xe8] sm:$0x3]
      %v3211 = vld [vmem:[%s295 + $0xf0] sm:$0xfc]
      %v3212 = vld [vmem:[%s295 + $0xf8] sm:$0xfc]
      %v3213 = vld [vmem:[%s295 + $0x110] sm:$0x3]
      %v3214 = vld [vmem:[%s295 + $0x118] sm:$0x3]
      %v3215 = vld [vmem:[%s295 + $0x120] sm:$0xfc]
      %v3216 = vld [vmem:[%s295 + $0x128] sm:$0xfc]
      %v3217 = vld [vmem:[%s295 + $0x140] sm:$0x3]
      %v3218 = vld [vmem:[%s295 + $0x148] sm:$0x3]
      %v3219 = vld [vmem:[%s295 + $0x150] sm:$0xfc]
      %v3220 = vld [vmem:[%s295 + $0x158] sm:$0xfc]
      %v3221 = vld [vmem:[%s295 + $0x170] sm:$0x3]
      %v3222 = vld [vmem:[%s295 + $0x178] sm:$0x3]
      %v3223 = vld [vmem:[%s295 + $0x180] sm:$0xfc]
      %v3224 = vld [vmem:[%s295 + $0x188] sm:$0xfc]
      %v3225 = vld [vmem:[%s295 + $0x1a0] sm:$0x3]
      %v3226 = vld [vmem:[%s295 + $0x1a8] sm:$0x3]
      %v3227 = vld [vmem:[%s295 + $0x1b0] sm:$0xfc]
      %v3228 = vld [vmem:[%s295 + $0x1b8] sm:$0xfc]
      %v3229 = vld [vmem:[%s295 + $0x1d0] sm:$0x3]
      %v3230 = vld [vmem:[%s295 + $0x1d8] sm:$0x3]
      %v3231 = vld [vmem:[%s295 + $0x1e0] sm:$0xfc]
      %v3232 = vld [vmem:[%s295 + $0x1e8] sm:$0xfc]
      %v3233 = vld [vmem:[%s295 + $0x200] sm:$0x3]
      %v3234 = vld [vmem:[%s295 + $0x208] sm:$0x3]
      %v3235 = vld [vmem:[%s295 + $0x210] sm:$0xfc]
      %v3236 = vld [vmem:[%s295 + $0x218] sm:$0xfc]
      %v3237 = vld [vmem:[%s295 + $0x230] sm:$0x3]
      %v3238 = vld [vmem:[%s295 + $0x238] sm:$0x3]
      %v3239 = vld [vmem:[%s295 + $0x240] sm:$0xfc]
      %v3240 = vld [vmem:[%s295 + $0x248] sm:$0xfc]
      %v3241 = vld [vmem:[%s295 + $0x260] sm:$0x3]
      %v3242 = vld [vmem:[%s295 + $0x268] sm:$0x3]
      %v3243 = vld [vmem:[%s295 + $0x270] sm:$0xfc]
      %v3244 = vld [vmem:[%s295 + $0x278] sm:$0xfc]
      %v3245 = vld [vmem:[%s295 + $0x290] sm:$0x3]
      %v3246 = vld [vmem:[%s295 + $0x298] sm:$0x3]
      %v3247 = vld [vmem:[%s295 + $0x2a0] sm:$0xfc]
      %v3248 = vld [vmem:[%s295 + $0x2a8] sm:$0xfc]
      %v3249 = vld [vmem:[%s295 + $0x2c0] sm:$0x3]
      %v3250 = vld [vmem:[%s295 + $0x2c8] sm:$0x3]
      %v3251 = vld [vmem:[%s295 + $0x2d0] sm:$0xfc]
      %v3252 = vld [vmem:[%s295 + $0x2d8] sm:$0xfc]
      %v3253 = vld [vmem:[%s295 + $0x2f0] sm:$0x3]
      %v3254 = vld [vmem:[%s295 + $0x2f8] sm:$0x3]
      %v3255 = vperm.slane %v1223, 5
      %v3256 = vperm.slane %v1224, 5
      %v3257 = vmul.f32 %v3191, %v3255
      %v3258 = vmul.f32 %v3192, %v3256
      %v3259 = vmul.f32 %v2453, %v3255
      %v3260 = vmul.f32 %v2454, %v3256
      %v3261 = vmul.f32 %v3193, %v3255
      %v3262 = vmul.f32 %v3194, %v3256
      %v3263 = vmul.f32 %v3195, %v3255
      %v3264 = vmul.f32 %v3196, %v3256
      %v3265 = vmul.f32 %v2457, %v3255
      %v3266 = vmul.f32 %v2458, %v3256
      %v3267 = vmul.f32 %v3197, %v3255
      %v3268 = vmul.f32 %v3198, %v3256
      %v3269 = vmul.f32 %v3199, %v3255
      %v3270 = vmul.f32 %v3200, %v3256
      %v3271 = vmul.f32 %v2461, %v3255
      %v3272 = vmul.f32 %v2462, %v3256
      %v3273 = vmul.f32 %v3201, %v3255
      %v3274 = vmul.f32 %v3202, %v3256
      %v3275 = vmul.f32 %v3203, %v3255
      %v3276 = vmul.f32 %v3204, %v3256
      %v3277 = vmul.f32 %v2465, %v3255
      %v3278 = vmul.f32 %v2466, %v3256
      %v3279 = vmul.f32 %v3205, %v3255
      %v3280 = vmul.f32 %v3206, %v3256
      %v3281 = vmul.f32 %v3207, %v3255
      %v3282 = vmul.f32 %v3208, %v3256
      %v3283 = vmul.f32 %v2469, %v3255
      %v3284 = vmul.f32 %v2470, %v3256
      %v3285 = vmul.f32 %v3209, %v3255
      %v3286 = vmul.f32 %v3210, %v3256
      %v3287 = vmul.f32 %v3211, %v3255
      %v3288 = vmul.f32 %v3212, %v3256
      %v3289 = vmul.f32 %v2473, %v3255
      %v3290 = vmul.f32 %v2474, %v3256
      %v3291 = vmul.f32 %v3213, %v3255
      %v3292 = vmul.f32 %v3214, %v3256
      %v3293 = vmul.f32 %v3215, %v3255
      %v3294 = vmul.f32 %v3216, %v3256
      %v3295 = vmul.f32 %v2477, %v3255
      %v3296 = vmul.f32 %v2478, %v3256
      %v3297 = vmul.f32 %v3217, %v3255
      %v3298 = vmul.f32 %v3218, %v3256
      %v3299 = vmul.f32 %v3219, %v3255
      %v3300 = vmul.f32 %v3220, %v3256
      %v3301 = vmul.f32 %v2481, %v3255
      %v3302 = vmul.f32 %v2482, %v3256
      %v3303 = vmul.f32 %v3221, %v3255
      %v3304 = vmul.f32 %v3222, %v3256
      %v3305 = vmul.f32 %v3223, %v3255
      %v3306 = vmul.f32 %v3224, %v3256
      %v3307 = vmul.f32 %v2485, %v3255
      %v3308 = vmul.f32 %v2486, %v3256
      %v3309 = vmul.f32 %v3225, %v3255
      %v3310 = vmul.f32 %v3226, %v3256
      %v3311 = vmul.f32 %v3227, %v3255
      %v3312 = vmul.f32 %v3228, %v3256
      %v3313 = vmul.f32 %v2489, %v3255
      %v3314 = vmul.f32 %v2490, %v3256
      %v3315 = vmul.f32 %v3229, %v3255
      %v3316 = vmul.f32 %v3230, %v3256
      %v3317 = vmul.f32 %v3231, %v3255
      %v3318 = vmul.f32 %v3232, %v3256
      %v3319 = vmul.f32 %v2493, %v3255
      %v3320 = vmul.f32 %v2494, %v3256
      %v3321 = vmul.f32 %v3233, %v3255
      %v3322 = vmul.f32 %v3234, %v3256
      %v3323 = vmul.f32 %v3235, %v3255
      %v3324 = vmul.f32 %v3236, %v3256
      %v3325 = vmul.f32 %v2497, %v3255
      %v3326 = vmul.f32 %v2498, %v3256
      %v3327 = vmul.f32 %v3237, %v3255
      %v3328 = vmul.f32 %v3238, %v3256
      %v3329 = vmul.f32 %v3239, %v3255
      %v3330 = vmul.f32 %v3240, %v3256
      %v3331 = vmul.f32 %v2501, %v3255
      %v3332 = vmul.f32 %v2502, %v3256
      %v3333 = vmul.f32 %v3241, %v3255
      %v3334 = vmul.f32 %v3242, %v3256
      %v3335 = vmul.f32 %v3243, %v3255
      %v3336 = vmul.f32 %v3244, %v3256
      %v3337 = vmul.f32 %v2505, %v3255
      %v3338 = vmul.f32 %v2506, %v3256
      %v3339 = vmul.f32 %v3245, %v3255
      %v3340 = vmul.f32 %v3246, %v3256
      %v3341 = vmul.f32 %v3247, %v3255
      %v3342 = vmul.f32 %v3248, %v3256
      %v3343 = vmul.f32 %v2509, %v3255
      %v3344 = vmul.f32 %v2510, %v3256
      %v3345 = vmul.f32 %v3249, %v3255
      %v3346 = vmul.f32 %v3250, %v3256
      %v3347 = vmul.f32 %v3251, %v3255
      %v3348 = vmul.f32 %v3252, %v3256
      %v3349 = vmul.f32 %v2513, %v3255
      %v3350 = vmul.f32 %v2514, %v3256
      %v3351 = vmul.f32 %v3253, %v3255
      %v3352 = vmul.f32 %v3254, %v3256
      %v3449 = vrot.slane %v3257, 2
      %v3450 = vrot.slane %v3259, 2
      %v3451 = vsel %vm2162, %v3449, %v3450
      %v3452 = vrot.slane %v3258, 2
      %v3453 = vrot.slane %v3260, 2
      %v3454 = vsel %vm2162, %v3452, %v3453
      %v3455 = vrot.slane %v3261, 2
      %v3456 = vsel %vm2162, %v3450, %v3455
      %v3457 = vrot.slane %v3262, 2
      %v3458 = vsel %vm2162, %v3453, %v3457
      %v3459 = vrot.slane %v3263, 2
      %v3460 = vrot.slane %v3265, 2
      %v3461 = vsel %vm2162, %v3459, %v3460
      %v3462 = vrot.slane %v3264, 2
      %v3463 = vrot.slane %v3266, 2
      %v3464 = vsel %vm2162, %v3462, %v3463
      %v3465 = vrot.slane %v3267, 2
      %v3466 = vsel %vm2162, %v3460, %v3465
      %v3467 = vrot.slane %v3268, 2
      %v3468 = vsel %vm2162, %v3463, %v3467
      %v3469 = vrot.slane %v3269, 2
      %v3470 = vrot.slane %v3271, 2
      %v3471 = vsel %vm2162, %v3469, %v3470
      %v3472 = vrot.slane %v3270, 2
      %v3473 = vrot.slane %v3272, 2
      %v3474 = vsel %vm2162, %v3472, %v3473
      %v3475 = vrot.slane %v3273, 2
      %v3476 = vsel %vm2162, %v3470, %v3475
      %v3477 = vrot.slane %v3274, 2
      %v3478 = vsel %vm2162, %v3473, %v3477
      %v3479 = vrot.slane %v3275, 2
      %v3480 = vrot.slane %v3277, 2
      %v3481 = vsel %vm2162, %v3479, %v3480
      %v3482 = vrot.slane %v3276, 2
      %v3483 = vrot.slane %v3278, 2
      %v3484 = vsel %vm2162, %v3482, %v3483
      %v3485 = vrot.slane %v3279, 2
      %v3486 = vsel %vm2162, %v3480, %v3485
      %v3487 = vrot.slane %v3280, 2
      %v3488 = vsel %vm2162, %v3483, %v3487
      %v3489 = vrot.slane %v3281, 2
      %v3490 = vrot.slane %v3283, 2
      %v3491 = vsel %vm2162, %v3489, %v3490
      %v3492 = vrot.slane %v3282, 2
      %v3493 = vrot.slane %v3284, 2
      %v3494 = vsel %vm2162, %v3492, %v3493
      %v3495 = vrot.slane %v3285, 2
      %v3496 = vsel %vm2162, %v3490, %v3495
      %v3497 = vrot.slane %v3286, 2
      %v3498 = vsel %vm2162, %v3493, %v3497
      %v3499 = vrot.slane %v3287, 2
      %v3500 = vrot.slane %v3289, 2
      %v3501 = vsel %vm2162, %v3499, %v3500
      %v3502 = vrot.slane %v3288, 2
      %v3503 = vrot.slane %v3290, 2
      %v3504 = vsel %vm2162, %v3502, %v3503
      %v3505 = vrot.slane %v3291, 2
      %v3506 = vsel %vm2162, %v3500, %v3505
      %v3507 = vrot.slane %v3292, 2
      %v3508 = vsel %vm2162, %v3503, %v3507
      %v3509 = vrot.slane %v3293, 2
      %v3510 = vrot.slane %v3295, 2
      %v3511 = vsel %vm2162, %v3509, %v3510
      %v3512 = vrot.slane %v3294, 2
      %v3513 = vrot.slane %v3296, 2
      %v3514 = vsel %vm2162, %v3512, %v3513
      %v3515 = vrot.slane %v3297, 2
      %v3516 = vsel %vm2162, %v3510, %v3515
      %v3517 = vrot.slane %v3298, 2
      %v3518 = vsel %vm2162, %v3513, %v3517
      %v3519 = vrot.slane %v3299, 2
      %v3520 = vrot.slane %v3301, 2
      %v3521 = vsel %vm2162, %v3519, %v3520
      %v3522 = vrot.slane %v3300, 2
      %v3523 = vrot.slane %v3302, 2
      %v3524 = vsel %vm2162, %v3522, %v3523
      %v3525 = vrot.slane %v3303, 2
      %v3526 = vsel %vm2162, %v3520, %v3525
      %v3527 = vrot.slane %v3304, 2
      %v3528 = vsel %vm2162, %v3523, %v3527
      %v3529 = vrot.slane %v3305, 2
      %v3530 = vrot.slane %v3307, 2
      %v3531 = vsel %vm2162, %v3529, %v3530
      %v3532 = vrot.slane %v3306, 2
      %v3533 = vrot.slane %v3308, 2
      %v3534 = vsel %vm2162, %v3532, %v3533
      %v3535 = vrot.slane %v3309, 2
      %v3536 = vsel %vm2162, %v3530, %v3535
      %v3537 = vrot.slane %v3310, 2
      %v3538 = vsel %vm2162, %v3533, %v3537
      %v3539 = vrot.slane %v3311, 2
      %v3540 = vrot.slane %v3313, 2
      %v3541 = vsel %vm2162, %v3539, %v3540
      %v3542 = vrot.slane %v3312, 2
      %v3543 = vrot.slane %v3314, 2
      %v3544 = vsel %vm2162, %v3542, %v3543
      %v3545 = vrot.slane %v3315, 2
      %v3546 = vsel %vm2162, %v3540, %v3545
      %v3547 = vrot.slane %v3316, 2
      %v3548 = vsel %vm2162, %v3543, %v3547
      %v3549 = vrot.slane %v3317, 2
      %v3550 = vrot.slane %v3319, 2
      %v3551 = vsel %vm2162, %v3549, %v3550
      %v3552 = vrot.slane %v3318, 2
      %v3553 = vrot.slane %v3320, 2
      %v3554 = vsel %vm2162, %v3552, %v3553
      %v3555 = vrot.slane %v3321, 2
      %v3556 = vsel %vm2162, %v3550, %v3555
      %v3557 = vrot.slane %v3322, 2
      %v3558 = vsel %vm2162, %v3553, %v3557
      %v3559 = vrot.slane %v3323, 2
      %v3560 = vrot.slane %v3325, 2
      %v3561 = vsel %vm2162, %v3559, %v3560
      %v3562 = vrot.slane %v3324, 2
      %v3563 = vrot.slane %v3326, 2
      %v3564 = vsel %vm2162, %v3562, %v3563
      %v3565 = vrot.slane %v3327, 2
      %v3566 = vsel %vm2162, %v3560, %v3565
      %v3567 = vrot.slane %v3328, 2
      %v3568 = vsel %vm2162, %v3563, %v3567
      %v3569 = vrot.slane %v3329, 2
      %v3570 = vrot.slane %v3331, 2
      %v3571 = vsel %vm2162, %v3569, %v3570
      %v3572 = vrot.slane %v3330, 2
      %v3573 = vrot.slane %v3332, 2
      %v3574 = vsel %vm2162, %v3572, %v3573
      %v3575 = vrot.slane %v3333, 2
      %v3576 = vsel %vm2162, %v3570, %v3575
      %v3577 = vrot.slane %v3334, 2
      %v3578 = vsel %vm2162, %v3573, %v3577
      %v3579 = vrot.slane %v3335, 2
      %v3580 = vrot.slane %v3337, 2
      %v3581 = vsel %vm2162, %v3579, %v3580
      %v3582 = vrot.slane %v3336, 2
      %v3583 = vrot.slane %v3338, 2
      %v3584 = vsel %vm2162, %v3582, %v3583
      %v3585 = vrot.slane %v3339, 2
      %v3586 = vsel %vm2162, %v3580, %v3585
      %v3587 = vrot.slane %v3340, 2
      %v3588 = vsel %vm2162, %v3583, %v3587
      %v3589 = vrot.slane %v3341, 2
      %v3590 = vrot.slane %v3343, 2
      %v3591 = vsel %vm2162, %v3589, %v3590
      %v3592 = vrot.slane %v3342, 2
      %v3593 = vrot.slane %v3344, 2
      %v3594 = vsel %vm2162, %v3592, %v3593
      %v3595 = vrot.slane %v3345, 2
      %v3596 = vsel %vm2162, %v3590, %v3595
      %v3597 = vrot.slane %v3346, 2
      %v3598 = vsel %vm2162, %v3593, %v3597
      %v3599 = vrot.slane %v3347, 2
      %v3600 = vrot.slane %v3349, 2
      %v3601 = vsel %vm2162, %v3599, %v3600
      %v3602 = vrot.slane %v3348, 2
      %v3603 = vrot.slane %v3350, 2
      %v3604 = vsel %vm2162, %v3602, %v3603
      %v3605 = vrot.slane %v3351, 2
      %v3606 = vsel %vm2162, %v3600, %v3605
      %v3607 = vrot.slane %v3352, 2
      %v3608 = vsel %vm2162, %v3603, %v3607
      %v3673 = vadd.f32 %v3127, %v3451
      %v3674 = vadd.f32 %v3128, %v3454
      %v3675 = vadd.f32 %v3129, %v3456
      %v3676 = vadd.f32 %v3130, %v3458
      %v3677 = vadd.f32 %v3131, %v3461
      %v3678 = vadd.f32 %v3132, %v3464
      %v3679 = vadd.f32 %v3133, %v3466
      %v3680 = vadd.f32 %v3134, %v3468
      %v3681 = vadd.f32 %v3135, %v3471
      %v3682 = vadd.f32 %v3136, %v3474
      %v3683 = vadd.f32 %v3137, %v3476
      %v3684 = vadd.f32 %v3138, %v3478
      %v3685 = vadd.f32 %v3139, %v3481
      %v3686 = vadd.f32 %v3140, %v3484
      %v3687 = vadd.f32 %v3141, %v3486
      %v3688 = vadd.f32 %v3142, %v3488
      %v3689 = vadd.f32 %v3143, %v3491
      %v3690 = vadd.f32 %v3144, %v3494
      %v3691 = vadd.f32 %v3145, %v3496
      %v3692 = vadd.f32 %v3146, %v3498
      %v3693 = vadd.f32 %v3147, %v3501
      %v3694 = vadd.f32 %v3148, %v3504
      %v3695 = vadd.f32 %v3149, %v3506
      %v3696 = vadd.f32 %v3150, %v3508
      %v3697 = vadd.f32 %v3151, %v3511
      %v3698 = vadd.f32 %v3152, %v3514
      %v3699 = vadd.f32 %v3153, %v3516
      %v3700 = vadd.f32 %v3154, %v3518
      %v3701 = vadd.f32 %v3155, %v3521
      %v3702 = vadd.f32 %v3156, %v3524
      %v3703 = vadd.f32 %v3157, %v3526
      %v3704 = vadd.f32 %v3158, %v3528
      %v3705 = vadd.f32 %v3159, %v3531
      %v3706 = vadd.f32 %v3160, %v3534
      %v3707 = vadd.f32 %v3161, %v3536
      %v3708 = vadd.f32 %v3162, %v3538
      %v3709 = vadd.f32 %v3163, %v3541
      %v3710 = vadd.f32 %v3164, %v3544
      %v3711 = vadd.f32 %v3165, %v3546
      %v3712 = vadd.f32 %v3166, %v3548
      %v3713 = vadd.f32 %v3167, %v3551
      %v3714 = vadd.f32 %v3168, %v3554
      %v3715 = vadd.f32 %v3169, %v3556
      %v3716 = vadd.f32 %v3170, %v3558
      %v3717 = vadd.f32 %v3171, %v3561
      %v3718 = vadd.f32 %v3172, %v3564
      %v3719 = vadd.f32 %v3173, %v3566
      %v3720 = vadd.f32 %v3174, %v3568
      %v3721 = vadd.f32 %v3175, %v3571
      %v3722 = vadd.f32 %v3176, %v3574
      %v3723 = vadd.f32 %v3177, %v3576
      %v3724 = vadd.f32 %v3178, %v3578
      %v3725 = vadd.f32 %v3179, %v3581
      %v3726 = vadd.f32 %v3180, %v3584
      %v3727 = vadd.f32 %v3181, %v3586
      %v3728 = vadd.f32 %v3182, %v3588
      %v3729 = vadd.f32 %v3183, %v3591
      %v3730 = vadd.f32 %v3184, %v3594
      %v3731 = vadd.f32 %v3185, %v3596
      %v3732 = vadd.f32 %v3186, %v3598
      %v3733 = vadd.f32 %v3187, %v3601
      %v3734 = vadd.f32 %v3188, %v3604
      %v3735 = vadd.f32 %v3189, %v3606
      %v3736 = vadd.f32 %v3190, %v3608
      %s3737 = scalar_lea.vmem [#allocation2], 96
      %v3738 = vld [vmem:[%s3737] sm:$0xff]
      %v3739 = vld [vmem:[%s3737 + $0x8] sm:$0xff]
      %v3740 = vld [vmem:[%s3737 + $0x10] sm:$0xff]
      %v3741 = vld [vmem:[%s3737 + $0x18] sm:$0xff]
      %v3742 = vld [vmem:[%s3737 + $0x30] sm:$0xff]
      %v3743 = vld [vmem:[%s3737 + $0x38] sm:$0xff]
      %v3744 = vld [vmem:[%s3737 + $0x40] sm:$0xff]
      %v3745 = vld [vmem:[%s3737 + $0x48] sm:$0xff]
      %v3746 = vld [vmem:[%s3737 + $0x60] sm:$0xff]
      %v3747 = vld [vmem:[%s3737 + $0x68] sm:$0xff]
      %v3748 = vld [vmem:[%s3737 + $0x70] sm:$0xff]
      %v3749 = vld [vmem:[%s3737 + $0x78] sm:$0xff]
      %v3750 = vld [vmem:[%s3737 + $0x90] sm:$0xff]
      %v3751 = vld [vmem:[%s3737 + $0x98] sm:$0xff]
      %v3752 = vld [vmem:[%s3737 + $0xa0] sm:$0xff]
      %v3753 = vld [vmem:[%s3737 + $0xa8] sm:$0xff]
      %v3754 = vld [vmem:[%s3737 + $0xc0] sm:$0xff]
      %v3755 = vld [vmem:[%s3737 + $0xc8] sm:$0xff]
      %v3756 = vld [vmem:[%s3737 + $0xd0] sm:$0xff]
      %v3757 = vld [vmem:[%s3737 + $0xd8] sm:$0xff]
      %v3758 = vld [vmem:[%s3737 + $0xf0] sm:$0xff]
      %v3759 = vld [vmem:[%s3737 + $0xf8] sm:$0xff]
      %v3760 = vld [vmem:[%s3737 + $0x100] sm:$0xff]
      %v3761 = vld [vmem:[%s3737 + $0x108] sm:$0xff]
      %v3762 = vld [vmem:[%s3737 + $0x120] sm:$0xff]
      %v3763 = vld [vmem:[%s3737 + $0x128] sm:$0xff]
      %v3764 = vld [vmem:[%s3737 + $0x130] sm:$0xff]
      %v3765 = vld [vmem:[%s3737 + $0x138] sm:$0xff]
      %v3766 = vld [vmem:[%s3737 + $0x150] sm:$0xff]
      %v3767 = vld [vmem:[%s3737 + $0x158] sm:$0xff]
      %v3768 = vld [vmem:[%s3737 + $0x160] sm:$0xff]
      %v3769 = vld [vmem:[%s3737 + $0x168] sm:$0xff]
      %v3770 = vld [vmem:[%s3737 + $0x180] sm:$0xff]
      %v3771 = vld [vmem:[%s3737 + $0x188] sm:$0xff]
      %v3772 = vld [vmem:[%s3737 + $0x190] sm:$0xff]
      %v3773 = vld [vmem:[%s3737 + $0x198] sm:$0xff]
      %v3774 = vld [vmem:[%s3737 + $0x1b0] sm:$0xff]
      %v3775 = vld [vmem:[%s3737 + $0x1b8] sm:$0xff]
      %v3776 = vld [vmem:[%s3737 + $0x1c0] sm:$0xff]
      %v3777 = vld [vmem:[%s3737 + $0x1c8] sm:$0xff]
      %v3778 = vld [vmem:[%s3737 + $0x1e0] sm:$0xff]
      %v3779 = vld [vmem:[%s3737 + $0x1e8] sm:$0xff]
      %v3780 = vld [vmem:[%s3737 + $0x1f0] sm:$0xff]
      %v3781 = vld [vmem:[%s3737 + $0x1f8] sm:$0xff]
      %v3782 = vld [vmem:[%s3737 + $0x210] sm:$0xff]
      %v3783 = vld [vmem:[%s3737 + $0x218] sm:$0xff]
      %v3784 = vld [vmem:[%s3737 + $0x220] sm:$0xff]
      %v3785 = vld [vmem:[%s3737 + $0x228] sm:$0xff]
      %v3786 = vld [vmem:[%s3737 + $0x240] sm:$0xff]
      %v3787 = vld [vmem:[%s3737 + $0x248] sm:$0xff]
      %v3788 = vld [vmem:[%s3737 + $0x250] sm:$0xff]
      %v3789 = vld [vmem:[%s3737 + $0x258] sm:$0xff]
      %v3790 = vld [vmem:[%s3737 + $0x270] sm:$0xff]
      %v3791 = vld [vmem:[%s3737 + $0x278] sm:$0xff]
      %v3792 = vld [vmem:[%s3737 + $0x280] sm:$0xff]
      %v3793 = vld [vmem:[%s3737 + $0x288] sm:$0xff]
      %v3794 = vld [vmem:[%s3737 + $0x2a0] sm:$0xff]
      %v3795 = vld [vmem:[%s3737 + $0x2a8] sm:$0xff]
      %v3796 = vld [vmem:[%s3737 + $0x2b0] sm:$0xff]
      %v3797 = vld [vmem:[%s3737 + $0x2b8] sm:$0xff]
      %v3798 = vld [vmem:[%s3737 + $0x2d0] sm:$0xff]
      %v3799 = vld [vmem:[%s3737 + $0x2d8] sm:$0xff]
      %v3800 = vld [vmem:[%s3737 + $0x2e0] sm:$0xff]
      %v3801 = vld [vmem:[%s3737 + $0x2e8] sm:$0xff]
      %v3802 = vperm.slane %v1223, 6
      %v3803 = vperm.slane %v1224, 6
      %v3804 = vmul.f32 %v3738, %v3802
      %v3805 = vmul.f32 %v3739, %v3803
      %v3806 = vmul.f32 %v3740, %v3802
      %v3807 = vmul.f32 %v3741, %v3803
      %v3808 = vmul.f32 %v3742, %v3802
      %v3809 = vmul.f32 %v3743, %v3803
      %v3810 = vmul.f32 %v3744, %v3802
      %v3811 = vmul.f32 %v3745, %v3803
      %v3812 = vmul.f32 %v3746, %v3802
      %v3813 = vmul.f32 %v3747, %v3803
      %v3814 = vmul.f32 %v3748, %v3802
      %v3815 = vmul.f32 %v3749, %v3803
      %v3816 = vmul.f32 %v3750, %v3802
      %v3817 = vmul.f32 %v3751, %v3803
      %v3818 = vmul.f32 %v3752, %v3802
      %v3819 = vmul.f32 %v3753, %v3803
      %v3820 = vmul.f32 %v3754, %v3802
      %v3821 = vmul.f32 %v3755, %v3803
      %v3822 = vmul.f32 %v3756, %v3802
      %v3823 = vmul.f32 %v3757, %v3803
      %v3824 = vmul.f32 %v3758, %v3802
      %v3825 = vmul.f32 %v3759, %v3803
      %v3826 = vmul.f32 %v3760, %v3802
      %v3827 = vmul.f32 %v3761, %v3803
      %v3828 = vmul.f32 %v3762, %v3802
      %v3829 = vmul.f32 %v3763, %v3803
      %v3830 = vmul.f32 %v3764, %v3802
      %v3831 = vmul.f32 %v3765, %v3803
      %v3832 = vmul.f32 %v3766, %v3802
      %v3833 = vmul.f32 %v3767, %v3803
      %v3834 = vmul.f32 %v3768, %v3802
      %v3835 = vmul.f32 %v3769, %v3803
      %v3836 = vmul.f32 %v3770, %v3802
      %v3837 = vmul.f32 %v3771, %v3803
      %v3838 = vmul.f32 %v3772, %v3802
      %v3839 = vmul.f32 %v3773, %v3803
      %v3840 = vmul.f32 %v3774, %v3802
      %v3841 = vmul.f32 %v3775, %v3803
      %v3842 = vmul.f32 %v3776, %v3802
      %v3843 = vmul.f32 %v3777, %v3803
      %v3844 = vmul.f32 %v3778, %v3802
      %v3845 = vmul.f32 %v3779, %v3803
      %v3846 = vmul.f32 %v3780, %v3802
      %v3847 = vmul.f32 %v3781, %v3803
      %v3848 = vmul.f32 %v3782, %v3802
      %v3849 = vmul.f32 %v3783, %v3803
      %v3850 = vmul.f32 %v3784, %v3802
      %v3851 = vmul.f32 %v3785, %v3803
      %v3852 = vmul.f32 %v3786, %v3802
      %v3853 = vmul.f32 %v3787, %v3803
      %v3854 = vmul.f32 %v3788, %v3802
      %v3855 = vmul.f32 %v3789, %v3803
      %v3856 = vmul.f32 %v3790, %v3802
      %v3857 = vmul.f32 %v3791, %v3803
      %v3858 = vmul.f32 %v3792, %v3802
      %v3859 = vmul.f32 %v3793, %v3803
      %v3860 = vmul.f32 %v3794, %v3802
      %v3861 = vmul.f32 %v3795, %v3803
      %v3862 = vmul.f32 %v3796, %v3802
      %v3863 = vmul.f32 %v3797, %v3803
      %v3864 = vmul.f32 %v3798, %v3802
      %v3865 = vmul.f32 %v3799, %v3803
      %v3866 = vmul.f32 %v3800, %v3802
      %v3867 = vmul.f32 %v3801, %v3803
      %v3868 = vadd.f32 %v3673, %v3804
      %v3869 = vadd.f32 %v3674, %v3805
      %v3870 = vadd.f32 %v3675, %v3806
      %v3871 = vadd.f32 %v3676, %v3807
      %v3872 = vadd.f32 %v3677, %v3808
      %v3873 = vadd.f32 %v3678, %v3809
      %v3874 = vadd.f32 %v3679, %v3810
      %v3875 = vadd.f32 %v3680, %v3811
      %v3876 = vadd.f32 %v3681, %v3812
      %v3877 = vadd.f32 %v3682, %v3813
      %v3878 = vadd.f32 %v3683, %v3814
      %v3879 = vadd.f32 %v3684, %v3815
      %v3880 = vadd.f32 %v3685, %v3816
      %v3881 = vadd.f32 %v3686, %v3817
      %v3882 = vadd.f32 %v3687, %v3818
      %v3883 = vadd.f32 %v3688, %v3819
      %v3884 = vadd.f32 %v3689, %v3820
      %v3885 = vadd.f32 %v3690, %v3821
      %v3886 = vadd.f32 %v3691, %v3822
      %v3887 = vadd.f32 %v3692, %v3823
      %v3888 = vadd.f32 %v3693, %v3824
      %v3889 = vadd.f32 %v3694, %v3825
      %v3890 = vadd.f32 %v3695, %v3826
      %v3891 = vadd.f32 %v3696, %v3827
      %v3892 = vadd.f32 %v3697, %v3828
      %v3893 = vadd.f32 %v3698, %v3829
      %v3894 = vadd.f32 %v3699, %v3830
      %v3895 = vadd.f32 %v3700, %v3831
      %v3896 = vadd.f32 %v3701, %v3832
      %v3897 = vadd.f32 %v3702, %v3833
      %v3898 = vadd.f32 %v3703, %v3834
      %v3899 = vadd.f32 %v3704, %v3835
      %v3900 = vadd.f32 %v3705, %v3836
      %v3901 = vadd.f32 %v3706, %v3837
      %v3902 = vadd.f32 %v3707, %v3838
      %v3903 = vadd.f32 %v3708, %v3839
      %v3904 = vadd.f32 %v3709, %v3840
      %v3905 = vadd.f32 %v3710, %v3841
      %v3906 = vadd.f32 %v3711, %v3842
      %v3907 = vadd.f32 %v3712, %v3843
      %v3908 = vadd.f32 %v3713, %v3844
      %v3909 = vadd.f32 %v3714, %v3845
      %v3910 = vadd.f32 %v3715, %v3846
      %v3911 = vadd.f32 %v3716, %v3847
      %v3912 = vadd.f32 %v3717, %v3848
      %v3913 = vadd.f32 %v3718, %v3849
      %v3914 = vadd.f32 %v3719, %v3850
      %v3915 = vadd.f32 %v3720, %v3851
      %v3916 = vadd.f32 %v3721, %v3852
      %v3917 = vadd.f32 %v3722, %v3853
      %v3918 = vadd.f32 %v3723, %v3854
      %v3919 = vadd.f32 %v3724, %v3855
      %v3920 = vadd.f32 %v3725, %v3856
      %v3921 = vadd.f32 %v3726, %v3857
      %v3922 = vadd.f32 %v3727, %v3858
      %v3923 = vadd.f32 %v3728, %v3859
      %v3924 = vadd.f32 %v3729, %v3860
      %v3925 = vadd.f32 %v3730, %v3861
      %v3926 = vadd.f32 %v3731, %v3862
      %v3927 = vadd.f32 %v3732, %v3863
      %v3928 = vadd.f32 %v3733, %v3864
      %v3929 = vadd.f32 %v3734, %v3865
      %v3930 = vadd.f32 %v3735, %v3866
      %v3931 = vadd.f32 %v3736, %v3867
      %v3932 = vld [vmem:[%s3737] sm:$0xfe]
      %v3933 = vld [vmem:[%s3737 + $0x8] sm:$0xfe]
      %v3934 = vld [vmem:[%s3737 + $0x20] sm:$0x1]
      %v3935 = vld [vmem:[%s3737 + $0x28] sm:$0x1]
      %v3936 = vld [vmem:[%s3737 + $0x30] sm:$0xfe]
      %v3937 = vld [vmem:[%s3737 + $0x38] sm:$0xfe]
      %v3938 = vld [vmem:[%s3737 + $0x50] sm:$0x1]
      %v3939 = vld [vmem:[%s3737 + $0x58] sm:$0x1]
      %v3940 = vld [vmem:[%s3737 + $0x60] sm:$0xfe]
      %v3941 = vld [vmem:[%s3737 + $0x68] sm:$0xfe]
      %v3942 = vld [vmem:[%s3737 + $0x80] sm:$0x1]
      %v3943 = vld [vmem:[%s3737 + $0x88] sm:$0x1]
      %v3944 = vld [vmem:[%s3737 + $0x90] sm:$0xfe]
      %v3945 = vld [vmem:[%s3737 + $0x98] sm:$0xfe]
      %v3946 = vld [vmem:[%s3737 + $0xb0] sm:$0x1]
      %v3947 = vld [vmem:[%s3737 + $0xb8] sm:$0x1]
      %v3948 = vld [vmem:[%s3737 + $0xc0] sm:$0xfe]
      %v3949 = vld [vmem:[%s3737 + $0xc8] sm:$0xfe]
      %v3950 = vld [vmem:[%s3737 + $0xe0] sm:$0x1]
      %v3951 = vld [vmem:[%s3737 + $0xe8] sm:$0x1]
      %v3952 = vld [vmem:[%s3737 + $0xf0] sm:$0xfe]
      %v3953 = vld [vmem:[%s3737 + $0xf8] sm:$0xfe]
      %v3954 = vld [vmem:[%s3737 + $0x110] sm:$0x1]
      %v3955 = vld [vmem:[%s3737 + $0x118] sm:$0x1]
      %v3956 = vld [vmem:[%s3737 + $0x120] sm:$0xfe]
      %v3957 = vld [vmem:[%s3737 + $0x128] sm:$0xfe]
      %v3958 = vld [vmem:[%s3737 + $0x140] sm:$0x1]
      %v3959 = vld [vmem:[%s3737 + $0x148] sm:$0x1]
      %v3960 = vld [vmem:[%s3737 + $0x150] sm:$0xfe]
      %v3961 = vld [vmem:[%s3737 + $0x158] sm:$0xfe]
      %v3962 = vld [vmem:[%s3737 + $0x170] sm:$0x1]
      %v3963 = vld [vmem:[%s3737 + $0x178] sm:$0x1]
      %v3964 = vld [vmem:[%s3737 + $0x180] sm:$0xfe]
      %v3965 = vld [vmem:[%s3737 + $0x188] sm:$0xfe]
      %v3966 = vld [vmem:[%s3737 + $0x1a0] sm:$0x1]
      %v3967 = vld [vmem:[%s3737 + $0x1a8] sm:$0x1]
      %v3968 = vld [vmem:[%s3737 + $0x1b0] sm:$0xfe]
      %v3969 = vld [vmem:[%s3737 + $0x1b8] sm:$0xfe]
      %v3970 = vld [vmem:[%s3737 + $0x1d0] sm:$0x1]
      %v3971 = vld [vmem:[%s3737 + $0x1d8] sm:$0x1]
      %v3972 = vld [vmem:[%s3737 + $0x1e0] sm:$0xfe]
      %v3973 = vld [vmem:[%s3737 + $0x1e8] sm:$0xfe]
      %v3974 = vld [vmem:[%s3737 + $0x200] sm:$0x1]
      %v3975 = vld [vmem:[%s3737 + $0x208] sm:$0x1]
      %v3976 = vld [vmem:[%s3737 + $0x210] sm:$0xfe]
      %v3977 = vld [vmem:[%s3737 + $0x218] sm:$0xfe]
      %v3978 = vld [vmem:[%s3737 + $0x230] sm:$0x1]
      %v3979 = vld [vmem:[%s3737 + $0x238] sm:$0x1]
      %v3980 = vld [vmem:[%s3737 + $0x240] sm:$0xfe]
      %v3981 = vld [vmem:[%s3737 + $0x248] sm:$0xfe]
      %v3982 = vld [vmem:[%s3737 + $0x260] sm:$0x1]
      %v3983 = vld [vmem:[%s3737 + $0x268] sm:$0x1]
      %v3984 = vld [vmem:[%s3737 + $0x270] sm:$0xfe]
      %v3985 = vld [vmem:[%s3737 + $0x278] sm:$0xfe]
      %v3986 = vld [vmem:[%s3737 + $0x290] sm:$0x1]
      %v3987 = vld [vmem:[%s3737 + $0x298] sm:$0x1]
      %v3988 = vld [vmem:[%s3737 + $0x2a0] sm:$0xfe]
      %v3989 = vld [vmem:[%s3737 + $0x2a8] sm:$0xfe]
      %v3990 = vld [vmem:[%s3737 + $0x2c0] sm:$0x1]
      %v3991 = vld [vmem:[%s3737 + $0x2c8] sm:$0x1]
      %v3992 = vld [vmem:[%s3737 + $0x2d0] sm:$0xfe]
      %v3993 = vld [vmem:[%s3737 + $0x2d8] sm:$0xfe]
      %v3994 = vld [vmem:[%s3737 + $0x2f0] sm:$0x1]
      %v3995 = vld [vmem:[%s3737 + $0x2f8] sm:$0x1]
      %v3996 = vperm.slane %v1223, 7
      %v3997 = vperm.slane %v1224, 7
      %v3998 = vmul.f32 %v3932, %v3996
      %v3999 = vmul.f32 %v3933, %v3997
      %v4000 = vmul.f32 %v3740, %v3996
      %v4001 = vmul.f32 %v3741, %v3997
      %v4002 = vmul.f32 %v3934, %v3996
      %v4003 = vmul.f32 %v3935, %v3997
      %v4004 = vmul.f32 %v3936, %v3996
      %v4005 = vmul.f32 %v3937, %v3997
      %v4006 = vmul.f32 %v3744, %v3996
      %v4007 = vmul.f32 %v3745, %v3997
      %v4008 = vmul.f32 %v3938, %v3996
      %v4009 = vmul.f32 %v3939, %v3997
      %v4010 = vmul.f32 %v3940, %v3996
      %v4011 = vmul.f32 %v3941, %v3997
      %v4012 = vmul.f32 %v3748, %v3996
      %v4013 = vmul.f32 %v3749, %v3997
      %v4014 = vmul.f32 %v3942, %v3996
      %v4015 = vmul.f32 %v3943, %v3997
      %v4016 = vmul.f32 %v3944, %v3996
      %v4017 = vmul.f32 %v3945, %v3997
      %v4018 = vmul.f32 %v3752, %v3996
      %v4019 = vmul.f32 %v3753, %v3997
      %v4020 = vmul.f32 %v3946, %v3996
      %v4021 = vmul.f32 %v3947, %v3997
      %v4022 = vmul.f32 %v3948, %v3996
      %v4023 = vmul.f32 %v3949, %v3997
      %v4024 = vmul.f32 %v3756, %v3996
      %v4025 = vmul.f32 %v3757, %v3997
      %v4026 = vmul.f32 %v3950, %v3996
      %v4027 = vmul.f32 %v3951, %v3997
      %v4028 = vmul.f32 %v3952, %v3996
      %v4029 = vmul.f32 %v3953, %v3997
      %v4030 = vmul.f32 %v3760, %v3996
      %v4031 = vmul.f32 %v3761, %v3997
      %v4032 = vmul.f32 %v3954, %v3996
      %v4033 = vmul.f32 %v3955, %v3997
      %v4034 = vmul.f32 %v3956, %v3996
      %v4035 = vmul.f32 %v3957, %v3997
      %v4036 = vmul.f32 %v3764, %v3996
      %v4037 = vmul.f32 %v3765, %v3997
      %v4038 = vmul.f32 %v3958, %v3996
      %v4039 = vmul.f32 %v3959, %v3997
      %v4040 = vmul.f32 %v3960, %v3996
      %v4041 = vmul.f32 %v3961, %v3997
      %v4042 = vmul.f32 %v3768, %v3996
      %v4043 = vmul.f32 %v3769, %v3997
      %v4044 = vmul.f32 %v3962, %v3996
      %v4045 = vmul.f32 %v3963, %v3997
      %v4046 = vmul.f32 %v3964, %v3996
      %v4047 = vmul.f32 %v3965, %v3997
      %v4048 = vmul.f32 %v3772, %v3996
      %v4049 = vmul.f32 %v3773, %v3997
      %v4050 = vmul.f32 %v3966, %v3996
      %v4051 = vmul.f32 %v3967, %v3997
      %v4052 = vmul.f32 %v3968, %v3996
      %v4053 = vmul.f32 %v3969, %v3997
      %v4054 = vmul.f32 %v3776, %v3996
      %v4055 = vmul.f32 %v3777, %v3997
      %v4056 = vmul.f32 %v3970, %v3996
      %v4057 = vmul.f32 %v3971, %v3997
      %v4058 = vmul.f32 %v3972, %v3996
      %v4059 = vmul.f32 %v3973, %v3997
      %v4060 = vmul.f32 %v3780, %v3996
      %v4061 = vmul.f32 %v3781, %v3997
      %v4062 = vmul.f32 %v3974, %v3996
      %v4063 = vmul.f32 %v3975, %v3997
      %v4064 = vmul.f32 %v3976, %v3996
      %v4065 = vmul.f32 %v3977, %v3997
      %v4066 = vmul.f32 %v3784, %v3996
      %v4067 = vmul.f32 %v3785, %v3997
      %v4068 = vmul.f32 %v3978, %v3996
      %v4069 = vmul.f32 %v3979, %v3997
      %v4070 = vmul.f32 %v3980, %v3996
      %v4071 = vmul.f32 %v3981, %v3997
      %v4072 = vmul.f32 %v3788, %v3996
      %v4073 = vmul.f32 %v3789, %v3997
      %v4074 = vmul.f32 %v3982, %v3996
      %v4075 = vmul.f32 %v3983, %v3997
      %v4076 = vmul.f32 %v3984, %v3996
      %v4077 = vmul.f32 %v3985, %v3997
      %v4078 = vmul.f32 %v3792, %v3996
      %v4079 = vmul.f32 %v3793, %v3997
      %v4080 = vmul.f32 %v3986, %v3996
      %v4081 = vmul.f32 %v3987, %v3997
      %v4082 = vmul.f32 %v3988, %v3996
      %v4083 = vmul.f32 %v3989, %v3997
      %v4084 = vmul.f32 %v3796, %v3996
      %v4085 = vmul.f32 %v3797, %v3997
      %v4086 = vmul.f32 %v3990, %v3996
      %v4087 = vmul.f32 %v3991, %v3997
      %v4088 = vmul.f32 %v3992, %v3996
      %v4089 = vmul.f32 %v3993, %v3997
      %v4090 = vmul.f32 %v3800, %v3996
      %v4091 = vmul.f32 %v3801, %v3997
      %v4092 = vmul.f32 %v3994, %v3996
      %v4093 = vmul.f32 %v3995, %v3997
      %v4190 = vrot.slane %v3998, 1
      %v4191 = vrot.slane %v4000, 1
      %v4192 = vsel %vm1615, %v4190, %v4191
      %v4193 = vrot.slane %v3999, 1
      %v4194 = vrot.slane %v4001, 1
      %v4195 = vsel %vm1615, %v4193, %v4194
      %v4196 = vrot.slane %v4002, 1
      %v4197 = vsel %vm1615, %v4191, %v4196
      %v4198 = vrot.slane %v4003, 1
      %v4199 = vsel %vm1615, %v4194, %v4198
      %v4200 = vrot.slane %v4004, 1
      %v4201 = vrot.slane %v4006, 1
      %v4202 = vsel %vm1615, %v4200, %v4201
      %v4203 = vrot.slane %v4005, 1
      %v4204 = vrot.slane %v4007, 1
      %v4205 = vsel %vm1615, %v4203, %v4204
      %v4206 = vrot.slane %v4008, 1
      %v4207 = vsel %vm1615, %v4201, %v4206
      %v4208 = vrot.slane %v4009, 1
      %v4209 = vsel %vm1615, %v4204, %v4208
      %v4210 = vrot.slane %v4010, 1
      %v4211 = vrot.slane %v4012, 1
      %v4212 = vsel %vm1615, %v4210, %v4211
      %v4213 = vrot.slane %v4011, 1
      %v4214 = vrot.slane %v4013, 1
      %v4215 = vsel %vm1615, %v4213, %v4214
      %v4216 = vrot.slane %v4014, 1
      %v4217 = vsel %vm1615, %v4211, %v4216
      %v4218 = vrot.slane %v4015, 1
      %v4219 = vsel %vm1615, %v4214, %v4218
      %v4220 = vrot.slane %v4016, 1
      %v4221 = vrot.slane %v4018, 1
      %v4222 = vsel %vm1615, %v4220, %v4221
      %v4223 = vrot.slane %v4017, 1
      %v4224 = vrot.slane %v4019, 1
      %v4225 = vsel %vm1615, %v4223, %v4224
      %v4226 = vrot.slane %v4020, 1
      %v4227 = vsel %vm1615, %v4221, %v4226
      %v4228 = vrot.slane %v4021, 1
      %v4229 = vsel %vm1615, %v4224, %v4228
      %v4230 = vrot.slane %v4022, 1
      %v4231 = vrot.slane %v4024, 1
      %v4232 = vsel %vm1615, %v4230, %v4231
      %v4233 = vrot.slane %v4023, 1
      %v4234 = vrot.slane %v4025, 1
      %v4235 = vsel %vm1615, %v4233, %v4234
      %v4236 = vrot.slane %v4026, 1
      %v4237 = vsel %vm1615, %v4231, %v4236
      %v4238 = vrot.slane %v4027, 1
      %v4239 = vsel %vm1615, %v4234, %v4238
      %v4240 = vrot.slane %v4028, 1
      %v4241 = vrot.slane %v4030, 1
      %v4242 = vsel %vm1615, %v4240, %v4241
      %v4243 = vrot.slane %v4029, 1
      %v4244 = vrot.slane %v4031, 1
      %v4245 = vsel %vm1615, %v4243, %v4244
      %v4246 = vrot.slane %v4032, 1
      %v4247 = vsel %vm1615, %v4241, %v4246
      %v4248 = vrot.slane %v4033, 1
      %v4249 = vsel %vm1615, %v4244, %v4248
      %v4250 = vrot.slane %v4034, 1
      %v4251 = vrot.slane %v4036, 1
      %v4252 = vsel %vm1615, %v4250, %v4251
      %v4253 = vrot.slane %v4035, 1
      %v4254 = vrot.slane %v4037, 1
      %v4255 = vsel %vm1615, %v4253, %v4254
      %v4256 = vrot.slane %v4038, 1
      %v4257 = vsel %vm1615, %v4251, %v4256
      %v4258 = vrot.slane %v4039, 1
      %v4259 = vsel %vm1615, %v4254, %v4258
      %v4260 = vrot.slane %v4040, 1
      %v4261 = vrot.slane %v4042, 1
      %v4262 = vsel %vm1615, %v4260, %v4261
      %v4263 = vrot.slane %v4041, 1
      %v4264 = vrot.slane %v4043, 1
      %v4265 = vsel %vm1615, %v4263, %v4264
      %v4266 = vrot.slane %v4044, 1
      %v4267 = vsel %vm1615, %v4261, %v4266
      %v4268 = vrot.slane %v4045, 1
      %v4269 = vsel %vm1615, %v4264, %v4268
      %v4270 = vrot.slane %v4046, 1
      %v4271 = vrot.slane %v4048, 1
      %v4272 = vsel %vm1615, %v4270, %v4271
      %v4273 = vrot.slane %v4047, 1
      %v4274 = vrot.slane %v4049, 1
      %v4275 = vsel %vm1615, %v4273, %v4274
      %v4276 = vrot.slane %v4050, 1
      %v4277 = vsel %vm1615, %v4271, %v4276
      %v4278 = vrot.slane %v4051, 1
      %v4279 = vsel %vm1615, %v4274, %v4278
      %v4280 = vrot.slane %v4052, 1
      %v4281 = vrot.slane %v4054, 1
      %v4282 = vsel %vm1615, %v4280, %v4281
      %v4283 = vrot.slane %v4053, 1
      %v4284 = vrot.slane %v4055, 1
      %v4285 = vsel %vm1615, %v4283, %v4284
      %v4286 = vrot.slane %v4056, 1
      %v4287 = vsel %vm1615, %v4281, %v4286
      %v4288 = vrot.slane %v4057, 1
      %v4289 = vsel %vm1615, %v4284, %v4288
      %v4290 = vrot.slane %v4058, 1
      %v4291 = vrot.slane %v4060, 1
      %v4292 = vsel %vm1615, %v4290, %v4291
      %v4293 = vrot.slane %v4059, 1
      %v4294 = vrot.slane %v4061, 1
      %v4295 = vsel %vm1615, %v4293, %v4294
      %v4296 = vrot.slane %v4062, 1
      %v4297 = vsel %vm1615, %v4291, %v4296
      %v4298 = vrot.slane %v4063, 1
      %v4299 = vsel %vm1615, %v4294, %v4298
      %v4300 = vrot.slane %v4064, 1
      %v4301 = vrot.slane %v4066, 1
      %v4302 = vsel %vm1615, %v4300, %v4301
      %v4303 = vrot.slane %v4065, 1
      %v4304 = vrot.slane %v4067, 1
      %v4305 = vsel %vm1615, %v4303, %v4304
      %v4306 = vrot.slane %v4068, 1
      %v4307 = vsel %vm1615, %v4301, %v4306
      %v4308 = vrot.slane %v4069, 1
      %v4309 = vsel %vm1615, %v4304, %v4308
      %v4310 = vrot.slane %v4070, 1
      %v4311 = vrot.slane %v4072, 1
      %v4312 = vsel %vm1615, %v4310, %v4311
      %v4313 = vrot.slane %v4071, 1
      %v4314 = vrot.slane %v4073, 1
      %v4315 = vsel %vm1615, %v4313, %v4314
      %v4316 = vrot.slane %v4074, 1
      %v4317 = vsel %vm1615, %v4311, %v4316
      %v4318 = vrot.slane %v4075, 1
      %v4319 = vsel %vm1615, %v4314, %v4318
      %v4320 = vrot.slane %v4076, 1
      %v4321 = vrot.slane %v4078, 1
      %v4322 = vsel %vm1615, %v4320, %v4321
      %v4323 = vrot.slane %v4077, 1
      %v4324 = vrot.slane %v4079, 1
      %v4325 = vsel %vm1615, %v4323, %v4324
      %v4326 = vrot.slane %v4080, 1
      %v4327 = vsel %vm1615, %v4321, %v4326
      %v4328 = vrot.slane %v4081, 1
      %v4329 = vsel %vm1615, %v4324, %v4328
      %v4330 = vrot.slane %v4082, 1
      %v4331 = vrot.slane %v4084, 1
      %v4332 = vsel %vm1615, %v4330, %v4331
      %v4333 = vrot.slane %v4083, 1
      %v4334 = vrot.slane %v4085, 1
      %v4335 = vsel %vm1615, %v4333, %v4334
      %v4336 = vrot.slane %v4086, 1
      %v4337 = vsel %vm1615, %v4331, %v4336
      %v4338 = vrot.slane %v4087, 1
      %v4339 = vsel %vm1615, %v4334, %v4338
      %v4340 = vrot.slane %v4088, 1
      %v4341 = vrot.slane %v4090, 1
      %v4342 = vsel %vm1615, %v4340, %v4341
      %v4343 = vrot.slane %v4089, 1
      %v4344 = vrot.slane %v4091, 1
      %v4345 = vsel %vm1615, %v4343, %v4344
      %v4346 = vrot.slane %v4092, 1
      %v4347 = vsel %vm1615, %v4341, %v4346
      %v4348 = vrot.slane %v4093, 1
      %v4349 = vsel %vm1615, %v4344, %v4348
      %v4414 = vadd.f32 %v3868, %v4192
      %v4415 = vadd.f32 %v3869, %v4195
      %v4416 = vadd.f32 %v3870, %v4197
      %v4417 = vadd.f32 %v3871, %v4199
      %v4418 = vadd.f32 %v3872, %v4202
      %v4419 = vadd.f32 %v3873, %v4205
      %v4420 = vadd.f32 %v3874, %v4207
      %v4421 = vadd.f32 %v3875, %v4209
      %v4422 = vadd.f32 %v3876, %v4212
      %v4423 = vadd.f32 %v3877, %v4215
      %v4424 = vadd.f32 %v3878, %v4217
      %v4425 = vadd.f32 %v3879, %v4219
      %v4426 = vadd.f32 %v3880, %v4222
      %v4427 = vadd.f32 %v3881, %v4225
      %v4428 = vadd.f32 %v3882, %v4227
      %v4429 = vadd.f32 %v3883, %v4229
      %v4430 = vadd.f32 %v3884, %v4232
      %v4431 = vadd.f32 %v3885, %v4235
      %v4432 = vadd.f32 %v3886, %v4237
      %v4433 = vadd.f32 %v3887, %v4239
      %v4434 = vadd.f32 %v3888, %v4242
      %v4435 = vadd.f32 %v3889, %v4245
      %v4436 = vadd.f32 %v3890, %v4247
      %v4437 = vadd.f32 %v3891, %v4249
      %v4438 = vadd.f32 %v3892, %v4252
      %v4439 = vadd.f32 %v3893, %v4255
      %v4440 = vadd.f32 %v3894, %v4257
      %v4441 = vadd.f32 %v3895, %v4259
      %v4442 = vadd.f32 %v3896, %v4262
      %v4443 = vadd.f32 %v3897, %v4265
      %v4444 = vadd.f32 %v3898, %v4267
      %v4445 = vadd.f32 %v3899, %v4269
      %v4446 = vadd.f32 %v3900, %v4272
      %v4447 = vadd.f32 %v3901, %v4275
      %v4448 = vadd.f32 %v3902, %v4277
      %v4449 = vadd.f32 %v3903, %v4279
      %v4450 = vadd.f32 %v3904, %v4282
      %v4451 = vadd.f32 %v3905, %v4285
      %v4452 = vadd.f32 %v3906, %v4287
      %v4453 = vadd.f32 %v3907, %v4289
      %v4454 = vadd.f32 %v3908, %v4292
      %v4455 = vadd.f32 %v3909, %v4295
      %v4456 = vadd.f32 %v3910, %v4297
      %v4457 = vadd.f32 %v3911, %v4299
      %v4458 = vadd.f32 %v3912, %v4302
      %v4459 = vadd.f32 %v3913, %v4305
      %v4460 = vadd.f32 %v3914, %v4307
      %v4461 = vadd.f32 %v3915, %v4309
      %v4462 = vadd.f32 %v3916, %v4312
      %v4463 = vadd.f32 %v3917, %v4315
      %v4464 = vadd.f32 %v3918, %v4317
      %v4465 = vadd.f32 %v3919, %v4319
      %v4466 = vadd.f32 %v3920, %v4322
      %v4467 = vadd.f32 %v3921, %v4325
      %v4468 = vadd.f32 %v3922, %v4327
      %v4469 = vadd.f32 %v3923, %v4329
      %v4470 = vadd.f32 %v3924, %v4332
      %v4471 = vadd.f32 %v3925, %v4335
      %v4472 = vadd.f32 %v3926, %v4337
      %v4473 = vadd.f32 %v3927, %v4339
      %v4474 = vadd.f32 %v3928, %v4342
      %v4475 = vadd.f32 %v3929, %v4345
      %v4476 = vadd.f32 %v3930, %v4347
      %v4477 = vadd.f32 %v3931, %v4349
      %v4478 = vld [vmem:[%s3737] sm:$0xfc]
      %v4479 = vld [vmem:[%s3737 + $0x8] sm:$0xfc]
      %v4480 = vld [vmem:[%s3737 + $0x20] sm:$0x3]
      %v4481 = vld [vmem:[%s3737 + $0x28] sm:$0x3]
      %v4482 = vld [vmem:[%s3737 + $0x30] sm:$0xfc]
      %v4483 = vld [vmem:[%s3737 + $0x38] sm:$0xfc]
      %v4484 = vld [vmem:[%s3737 + $0x50] sm:$0x3]
      %v4485 = vld [vmem:[%s3737 + $0x58] sm:$0x3]
      %v4486 = vld [vmem:[%s3737 + $0x60] sm:$0xfc]
      %v4487 = vld [vmem:[%s3737 + $0x68] sm:$0xfc]
      %v4488 = vld [vmem:[%s3737 + $0x80] sm:$0x3]
      %v4489 = vld [vmem:[%s3737 + $0x88] sm:$0x3]
      %v4490 = vld [vmem:[%s3737 + $0x90] sm:$0xfc]
      %v4491 = vld [vmem:[%s3737 + $0x98] sm:$0xfc]
      %v4492 = vld [vmem:[%s3737 + $0xb0] sm:$0x3]
      %v4493 = vld [vmem:[%s3737 + $0xb8] sm:$0x3]
      %v4494 = vld [vmem:[%s3737 + $0xc0] sm:$0xfc]
      %v4495 = vld [vmem:[%s3737 + $0xc8] sm:$0xfc]
      %v4496 = vld [vmem:[%s3737 + $0xe0] sm:$0x3]
      %v4497 = vld [vmem:[%s3737 + $0xe8] sm:$0x3]
      %v4498 = vld [vmem:[%s3737 + $0xf0] sm:$0xfc]
      %v4499 = vld [vmem:[%s3737 + $0xf8] sm:$0xfc]
      %v4500 = vld [vmem:[%s3737 + $0x110] sm:$0x3]
      %v4501 = vld [vmem:[%s3737 + $0x118] sm:$0x3]
      %v4502 = vld [vmem:[%s3737 + $0x120] sm:$0xfc]
      %v4503 = vld [vmem:[%s3737 + $0x128] sm:$0xfc]
      %v4504 = vld [vmem:[%s3737 + $0x140] sm:$0x3]
      %v4505 = vld [vmem:[%s3737 + $0x148] sm:$0x3]
      %v4506 = vld [vmem:[%s3737 + $0x150] sm:$0xfc]
      %v4507 = vld [vmem:[%s3737 + $0x158] sm:$0xfc]
      %v4508 = vld [vmem:[%s3737 + $0x170] sm:$0x3]
      %v4509 = vld [vmem:[%s3737 + $0x178] sm:$0x3]
      %v4510 = vld [vmem:[%s3737 + $0x180] sm:$0xfc]
      %v4511 = vld [vmem:[%s3737 + $0x188] sm:$0xfc]
      %v4512 = vld [vmem:[%s3737 + $0x1a0] sm:$0x3]
      %v4513 = vld [vmem:[%s3737 + $0x1a8] sm:$0x3]
      %v4514 = vld [vmem:[%s3737 + $0x1b0] sm:$0xfc]
      %v4515 = vld [vmem:[%s3737 + $0x1b8] sm:$0xfc]
      %v4516 = vld [vmem:[%s3737 + $0x1d0] sm:$0x3]
      %v4517 = vld [vmem:[%s3737 + $0x1d8] sm:$0x3]
      %v4518 = vld [vmem:[%s3737 + $0x1e0] sm:$0xfc]
      %v4519 = vld [vmem:[%s3737 + $0x1e8] sm:$0xfc]
      %v4520 = vld [vmem:[%s3737 + $0x200] sm:$0x3]
      %v4521 = vld [vmem:[%s3737 + $0x208] sm:$0x3]
      %v4522 = vld [vmem:[%s3737 + $0x210] sm:$0xfc]
      %v4523 = vld [vmem:[%s3737 + $0x218] sm:$0xfc]
      %v4524 = vld [vmem:[%s3737 + $0x230] sm:$0x3]
      %v4525 = vld [vmem:[%s3737 + $0x238] sm:$0x3]
      %v4526 = vld [vmem:[%s3737 + $0x240] sm:$0xfc]
      %v4527 = vld [vmem:[%s3737 + $0x248] sm:$0xfc]
      %v4528 = vld [vmem:[%s3737 + $0x260] sm:$0x3]
      %v4529 = vld [vmem:[%s3737 + $0x268] sm:$0x3]
      %v4530 = vld [vmem:[%s3737 + $0x270] sm:$0xfc]
      %v4531 = vld [vmem:[%s3737 + $0x278] sm:$0xfc]
      %v4532 = vld [vmem:[%s3737 + $0x290] sm:$0x3]
      %v4533 = vld [vmem:[%s3737 + $0x298] sm:$0x3]
      %v4534 = vld [vmem:[%s3737 + $0x2a0] sm:$0xfc]
      %v4535 = vld [vmem:[%s3737 + $0x2a8] sm:$0xfc]
      %v4536 = vld [vmem:[%s3737 + $0x2c0] sm:$0x3]
      %v4537 = vld [vmem:[%s3737 + $0x2c8] sm:$0x3]
      %v4538 = vld [vmem:[%s3737 + $0x2d0] sm:$0xfc]
      %v4539 = vld [vmem:[%s3737 + $0x2d8] sm:$0xfc]
      %v4540 = vld [vmem:[%s3737 + $0x2f0] sm:$0x3]
      %v4541 = vld [vmem:[%s3737 + $0x2f8] sm:$0x3]
      %v4542 = vperm.slane %v1225, 0
      %v4543 = vperm.slane %v1226, 0
      %v4544 = vmul.f32 %v4478, %v4542
      %v4545 = vmul.f32 %v4479, %v4543
      %v4546 = vmul.f32 %v3740, %v4542
      %v4547 = vmul.f32 %v3741, %v4543
      %v4548 = vmul.f32 %v4480, %v4542
      %v4549 = vmul.f32 %v4481, %v4543
      %v4550 = vmul.f32 %v4482, %v4542
      %v4551 = vmul.f32 %v4483, %v4543
      %v4552 = vmul.f32 %v3744, %v4542
      %v4553 = vmul.f32 %v3745, %v4543
      %v4554 = vmul.f32 %v4484, %v4542
      %v4555 = vmul.f32 %v4485, %v4543
      %v4556 = vmul.f32 %v4486, %v4542
      %v4557 = vmul.f32 %v4487, %v4543
      %v4558 = vmul.f32 %v3748, %v4542
      %v4559 = vmul.f32 %v3749, %v4543
      %v4560 = vmul.f32 %v4488, %v4542
      %v4561 = vmul.f32 %v4489, %v4543
      %v4562 = vmul.f32 %v4490, %v4542
      %v4563 = vmul.f32 %v4491, %v4543
      %v4564 = vmul.f32 %v3752, %v4542
      %v4565 = vmul.f32 %v3753, %v4543
      %v4566 = vmul.f32 %v4492, %v4542
      %v4567 = vmul.f32 %v4493, %v4543
      %v4568 = vmul.f32 %v4494, %v4542
      %v4569 = vmul.f32 %v4495, %v4543
      %v4570 = vmul.f32 %v3756, %v4542
      %v4571 = vmul.f32 %v3757, %v4543
      %v4572 = vmul.f32 %v4496, %v4542
      %v4573 = vmul.f32 %v4497, %v4543
      %v4574 = vmul.f32 %v4498, %v4542
      %v4575 = vmul.f32 %v4499, %v4543
      %v4576 = vmul.f32 %v3760, %v4542
      %v4577 = vmul.f32 %v3761, %v4543
      %v4578 = vmul.f32 %v4500, %v4542
      %v4579 = vmul.f32 %v4501, %v4543
      %v4580 = vmul.f32 %v4502, %v4542
      %v4581 = vmul.f32 %v4503, %v4543
      %v4582 = vmul.f32 %v3764, %v4542
      %v4583 = vmul.f32 %v3765, %v4543
      %v4584 = vmul.f32 %v4504, %v4542
      %v4585 = vmul.f32 %v4505, %v4543
      %v4586 = vmul.f32 %v4506, %v4542
      %v4587 = vmul.f32 %v4507, %v4543
      %v4588 = vmul.f32 %v3768, %v4542
      %v4589 = vmul.f32 %v3769, %v4543
      %v4590 = vmul.f32 %v4508, %v4542
      %v4591 = vmul.f32 %v4509, %v4543
      %v4592 = vmul.f32 %v4510, %v4542
      %v4593 = vmul.f32 %v4511, %v4543
      %v4594 = vmul.f32 %v3772, %v4542
      %v4595 = vmul.f32 %v3773, %v4543
      %v4596 = vmul.f32 %v4512, %v4542
      %v4597 = vmul.f32 %v4513, %v4543
      %v4598 = vmul.f32 %v4514, %v4542
      %v4599 = vmul.f32 %v4515, %v4543
      %v4600 = vmul.f32 %v3776, %v4542
      %v4601 = vmul.f32 %v3777, %v4543
      %v4602 = vmul.f32 %v4516, %v4542
      %v4603 = vmul.f32 %v4517, %v4543
      %v4604 = vmul.f32 %v4518, %v4542
      %v4605 = vmul.f32 %v4519, %v4543
      %v4606 = vmul.f32 %v3780, %v4542
      %v4607 = vmul.f32 %v3781, %v4543
      %v4608 = vmul.f32 %v4520, %v4542
      %v4609 = vmul.f32 %v4521, %v4543
      %v4610 = vmul.f32 %v4522, %v4542
      %v4611 = vmul.f32 %v4523, %v4543
      %v4612 = vmul.f32 %v3784, %v4542
      %v4613 = vmul.f32 %v3785, %v4543
      %v4614 = vmul.f32 %v4524, %v4542
      %v4615 = vmul.f32 %v4525, %v4543
      %v4616 = vmul.f32 %v4526, %v4542
      %v4617 = vmul.f32 %v4527, %v4543
      %v4618 = vmul.f32 %v3788, %v4542
      %v4619 = vmul.f32 %v3789, %v4543
      %v4620 = vmul.f32 %v4528, %v4542
      %v4621 = vmul.f32 %v4529, %v4543
      %v4622 = vmul.f32 %v4530, %v4542
      %v4623 = vmul.f32 %v4531, %v4543
      %v4624 = vmul.f32 %v3792, %v4542
      %v4625 = vmul.f32 %v3793, %v4543
      %v4626 = vmul.f32 %v4532, %v4542
      %v4627 = vmul.f32 %v4533, %v4543
      %v4628 = vmul.f32 %v4534, %v4542
      %v4629 = vmul.f32 %v4535, %v4543
      %v4630 = vmul.f32 %v3796, %v4542
      %v4631 = vmul.f32 %v3797, %v4543
      %v4632 = vmul.f32 %v4536, %v4542
      %v4633 = vmul.f32 %v4537, %v4543
      %v4634 = vmul.f32 %v4538, %v4542
      %v4635 = vmul.f32 %v4539, %v4543
      %v4636 = vmul.f32 %v3800, %v4542
      %v4637 = vmul.f32 %v3801, %v4543
      %v4638 = vmul.f32 %v4540, %v4542
      %v4639 = vmul.f32 %v4541, %v4543
      %v4736 = vrot.slane %v4544, 2
      %v4737 = vrot.slane %v4546, 2
      %v4738 = vsel %vm2162, %v4736, %v4737
      %v4739 = vrot.slane %v4545, 2
      %v4740 = vrot.slane %v4547, 2
      %v4741 = vsel %vm2162, %v4739, %v4740
      %v4742 = vrot.slane %v4548, 2
      %v4743 = vsel %vm2162, %v4737, %v4742
      %v4744 = vrot.slane %v4549, 2
      %v4745 = vsel %vm2162, %v4740, %v4744
      %v4746 = vrot.slane %v4550, 2
      %v4747 = vrot.slane %v4552, 2
      %v4748 = vsel %vm2162, %v4746, %v4747
      %v4749 = vrot.slane %v4551, 2
      %v4750 = vrot.slane %v4553, 2
      %v4751 = vsel %vm2162, %v4749, %v4750
      %v4752 = vrot.slane %v4554, 2
      %v4753 = vsel %vm2162, %v4747, %v4752
      %v4754 = vrot.slane %v4555, 2
      %v4755 = vsel %vm2162, %v4750, %v4754
      %v4756 = vrot.slane %v4556, 2
      %v4757 = vrot.slane %v4558, 2
      %v4758 = vsel %vm2162, %v4756, %v4757
      %v4759 = vrot.slane %v4557, 2
      %v4760 = vrot.slane %v4559, 2
      %v4761 = vsel %vm2162, %v4759, %v4760
      %v4762 = vrot.slane %v4560, 2
      %v4763 = vsel %vm2162, %v4757, %v4762
      %v4764 = vrot.slane %v4561, 2
      %v4765 = vsel %vm2162, %v4760, %v4764
      %v4766 = vrot.slane %v4562, 2
      %v4767 = vrot.slane %v4564, 2
      %v4768 = vsel %vm2162, %v4766, %v4767
      %v4769 = vrot.slane %v4563, 2
      %v4770 = vrot.slane %v4565, 2
      %v4771 = vsel %vm2162, %v4769, %v4770
      %v4772 = vrot.slane %v4566, 2
      %v4773 = vsel %vm2162, %v4767, %v4772
      %v4774 = vrot.slane %v4567, 2
      %v4775 = vsel %vm2162, %v4770, %v4774
      %v4776 = vrot.slane %v4568, 2
      %v4777 = vrot.slane %v4570, 2
      %v4778 = vsel %vm2162, %v4776, %v4777
      %v4779 = vrot.slane %v4569, 2
      %v4780 = vrot.slane %v4571, 2
      %v4781 = vsel %vm2162, %v4779, %v4780
      %v4782 = vrot.slane %v4572, 2
      %v4783 = vsel %vm2162, %v4777, %v4782
      %v4784 = vrot.slane %v4573, 2
      %v4785 = vsel %vm2162, %v4780, %v4784
      %v4786 = vrot.slane %v4574, 2
      %v4787 = vrot.slane %v4576, 2
      %v4788 = vsel %vm2162, %v4786, %v4787
      %v4789 = vrot.slane %v4575, 2
      %v4790 = vrot.slane %v4577, 2
      %v4791 = vsel %vm2162, %v4789, %v4790
      %v4792 = vrot.slane %v4578, 2
      %v4793 = vsel %vm2162, %v4787, %v4792
      %v4794 = vrot.slane %v4579, 2
      %v4795 = vsel %vm2162, %v4790, %v4794
      %v4796 = vrot.slane %v4580, 2
      %v4797 = vrot.slane %v4582, 2
      %v4798 = vsel %vm2162, %v4796, %v4797
      %v4799 = vrot.slane %v4581, 2
      %v4800 = vrot.slane %v4583, 2
      %v4801 = vsel %vm2162, %v4799, %v4800
      %v4802 = vrot.slane %v4584, 2
      %v4803 = vsel %vm2162, %v4797, %v4802
      %v4804 = vrot.slane %v4585, 2
      %v4805 = vsel %vm2162, %v4800, %v4804
      %v4806 = vrot.slane %v4586, 2
      %v4807 = vrot.slane %v4588, 2
      %v4808 = vsel %vm2162, %v4806, %v4807
      %v4809 = vrot.slane %v4587, 2
      %v4810 = vrot.slane %v4589, 2
      %v4811 = vsel %vm2162, %v4809, %v4810
      %v4812 = vrot.slane %v4590, 2
      %v4813 = vsel %vm2162, %v4807, %v4812
      %v4814 = vrot.slane %v4591, 2
      %v4815 = vsel %vm2162, %v4810, %v4814
      %v4816 = vrot.slane %v4592, 2
      %v4817 = vrot.slane %v4594, 2
      %v4818 = vsel %vm2162, %v4816, %v4817
      %v4819 = vrot.slane %v4593, 2
      %v4820 = vrot.slane %v4595, 2
      %v4821 = vsel %vm2162, %v4819, %v4820
      %v4822 = vrot.slane %v4596, 2
      %v4823 = vsel %vm2162, %v4817, %v4822
      %v4824 = vrot.slane %v4597, 2
      %v4825 = vsel %vm2162, %v4820, %v4824
      %v4826 = vrot.slane %v4598, 2
      %v4827 = vrot.slane %v4600, 2
      %v4828 = vsel %vm2162, %v4826, %v4827
      %v4829 = vrot.slane %v4599, 2
      %v4830 = vrot.slane %v4601, 2
      %v4831 = vsel %vm2162, %v4829, %v4830
      %v4832 = vrot.slane %v4602, 2
      %v4833 = vsel %vm2162, %v4827, %v4832
      %v4834 = vrot.slane %v4603, 2
      %v4835 = vsel %vm2162, %v4830, %v4834
      %v4836 = vrot.slane %v4604, 2
      %v4837 = vrot.slane %v4606, 2
      %v4838 = vsel %vm2162, %v4836, %v4837
      %v4839 = vrot.slane %v4605, 2
      %v4840 = vrot.slane %v4607, 2
      %v4841 = vsel %vm2162, %v4839, %v4840
      %v4842 = vrot.slane %v4608, 2
      %v4843 = vsel %vm2162, %v4837, %v4842
      %v4844 = vrot.slane %v4609, 2
      %v4845 = vsel %vm2162, %v4840, %v4844
      %v4846 = vrot.slane %v4610, 2
      %v4847 = vrot.slane %v4612, 2
      %v4848 = vsel %vm2162, %v4846, %v4847
      %v4849 = vrot.slane %v4611, 2
      %v4850 = vrot.slane %v4613, 2
      %v4851 = vsel %vm2162, %v4849, %v4850
      %v4852 = vrot.slane %v4614, 2
      %v4853 = vsel %vm2162, %v4847, %v4852
      %v4854 = vrot.slane %v4615, 2
      %v4855 = vsel %vm2162, %v4850, %v4854
      %v4856 = vrot.slane %v4616, 2
      %v4857 = vrot.slane %v4618, 2
      %v4858 = vsel %vm2162, %v4856, %v4857
      %v4859 = vrot.slane %v4617, 2
      %v4860 = vrot.slane %v4619, 2
      %v4861 = vsel %vm2162, %v4859, %v4860
      %v4862 = vrot.slane %v4620, 2
      %v4863 = vsel %vm2162, %v4857, %v4862
      %v4864 = vrot.slane %v4621, 2
      %v4865 = vsel %vm2162, %v4860, %v4864
      %v4866 = vrot.slane %v4622, 2
      %v4867 = vrot.slane %v4624, 2
      %v4868 = vsel %vm2162, %v4866, %v4867
      %v4869 = vrot.slane %v4623, 2
      %v4870 = vrot.slane %v4625, 2
      %v4871 = vsel %vm2162, %v4869, %v4870
      %v4872 = vrot.slane %v4626, 2
      %v4873 = vsel %vm2162, %v4867, %v4872
      %v4874 = vrot.slane %v4627, 2
      %v4875 = vsel %vm2162, %v4870, %v4874
      %v4876 = vrot.slane %v4628, 2
      %v4877 = vrot.slane %v4630, 2
      %v4878 = vsel %vm2162, %v4876, %v4877
      %v4879 = vrot.slane %v4629, 2
      %v4880 = vrot.slane %v4631, 2
      %v4881 = vsel %vm2162, %v4879, %v4880
      %v4882 = vrot.slane %v4632, 2
      %v4883 = vsel %vm2162, %v4877, %v4882
      %v4884 = vrot.slane %v4633, 2
      %v4885 = vsel %vm2162, %v4880, %v4884
      %v4886 = vrot.slane %v4634, 2
      %v4887 = vrot.slane %v4636, 2
      %v4888 = vsel %vm2162, %v4886, %v4887
      %v4889 = vrot.slane %v4635, 2
      %v4890 = vrot.slane %v4637, 2
      %v4891 = vsel %vm2162, %v4889, %v4890
      %v4892 = vrot.slane %v4638, 2
      %v4893 = vsel %vm2162, %v4887, %v4892
      %v4894 = vrot.slane %v4639, 2
      %v4895 = vsel %vm2162, %v4890, %v4894
      %v4960 = vadd.f32 %v4414, %v4738
      %v4961 = vadd.f32 %v4415, %v4741
      %v4962 = vadd.f32 %v4416, %v4743
      %v4963 = vadd.f32 %v4417, %v4745
      %v4964 = vadd.f32 %v4418, %v4748
      %v4965 = vadd.f32 %v4419, %v4751
      %v4966 = vadd.f32 %v4420, %v4753
      %v4967 = vadd.f32 %v4421, %v4755
      %v4968 = vadd.f32 %v4422, %v4758
      %v4969 = vadd.f32 %v4423, %v4761
      %v4970 = vadd.f32 %v4424, %v4763
      %v4971 = vadd.f32 %v4425, %v4765
      %v4972 = vadd.f32 %v4426, %v4768
      %v4973 = vadd.f32 %v4427, %v4771
      %v4974 = vadd.f32 %v4428, %v4773
      %v4975 = vadd.f32 %v4429, %v4775
      %v4976 = vadd.f32 %v4430, %v4778
      %v4977 = vadd.f32 %v4431, %v4781
      %v4978 = vadd.f32 %v4432, %v4783
      %v4979 = vadd.f32 %v4433, %v4785
      %v4980 = vadd.f32 %v4434, %v4788
      %v4981 = vadd.f32 %v4435, %v4791
      %v4982 = vadd.f32 %v4436, %v4793
      %v4983 = vadd.f32 %v4437, %v4795
      %v4984 = vadd.f32 %v4438, %v4798
      %v4985 = vadd.f32 %v4439, %v4801
      %v4986 = vadd.f32 %v4440, %v4803
      %v4987 = vadd.f32 %v4441, %v4805
      %v4988 = vadd.f32 %v4442, %v4808
      %v4989 = vadd.f32 %v4443, %v4811
      %v4990 = vadd.f32 %v4444, %v4813
      %v4991 = vadd.f32 %v4445, %v4815
      %v4992 = vadd.f32 %v4446, %v4818
      %v4993 = vadd.f32 %v4447, %v4821
      %v4994 = vadd.f32 %v4448, %v4823
      %v4995 = vadd.f32 %v4449, %v4825
      %v4996 = vadd.f32 %v4450, %v4828
      %v4997 = vadd.f32 %v4451, %v4831
      %v4998 = vadd.f32 %v4452, %v4833
      %v4999 = vadd.f32 %v4453, %v4835
      %v5000 = vadd.f32 %v4454, %v4838
      %v5001 = vadd.f32 %v4455, %v4841
      %v5002 = vadd.f32 %v4456, %v4843
      %v5003 = vadd.f32 %v4457, %v4845
      %v5004 = vadd.f32 %v4458, %v4848
      %v5005 = vadd.f32 %v4459, %v4851
      %v5006 = vadd.f32 %v4460, %v4853
      %v5007 = vadd.f32 %v4461, %v4855
      %v5008 = vadd.f32 %v4462, %v4858
      %v5009 = vadd.f32 %v4463, %v4861
      %v5010 = vadd.f32 %v4464, %v4863
      %v5011 = vadd.f32 %v4465, %v4865
      %v5012 = vadd.f32 %v4466, %v4868
      %v5013 = vadd.f32 %v4467, %v4871
      %v5014 = vadd.f32 %v4468, %v4873
      %v5015 = vadd.f32 %v4469, %v4875
      %v5016 = vadd.f32 %v4470, %v4878
      %v5017 = vadd.f32 %v4471, %v4881
      %v5018 = vadd.f32 %v4472, %v4883
      %v5019 = vadd.f32 %v4473, %v4885
      %v5020 = vadd.f32 %v4474, %v4888
      %v5021 = vadd.f32 %v4475, %v4891
      %v5022 = vadd.f32 %v4476, %v4893
      %v5023 = vadd.f32 %v4477, %v4895
      %v5024 = vld [vmem:[%s4] sm:$0x3]
      %v5026 = vperm.slane %v5024, 0
      %v5027 = vperm.slane %v5024, 1
      %v5030 = vadd.f32 %v4960, %v5026
      %v5031 = vadd.f32 %v4961, %v5027
      %v5032 = vadd.f32 %v4962, %v5026
      %v5033 = vadd.f32 %v4963, %v5027
      %v5034 = vadd.f32 %v4964, %v5026
      %v5035 = vadd.f32 %v4965, %v5027
      %v5036 = vadd.f32 %v4966, %v5026
      %v5037 = vadd.f32 %v4967, %v5027
      %v5038 = vadd.f32 %v4968, %v5026
      %v5039 = vadd.f32 %v4969, %v5027
      %v5040 = vadd.f32 %v4970, %v5026
      %v5041 = vadd.f32 %v4971, %v5027
      %v5042 = vadd.f32 %v4972, %v5026
      %v5043 = vadd.f32 %v4973, %v5027
      %v5044 = vadd.f32 %v4974, %v5026
      %v5045 = vadd.f32 %v4975, %v5027
      %v5046 = vadd.f32 %v4976, %v5026
      %v5047 = vadd.f32 %v4977, %v5027
      %v5048 = vadd.f32 %v4978, %v5026
      %v5049 = vadd.f32 %v4979, %v5027
      %v5050 = vadd.f32 %v4980, %v5026
      %v5051 = vadd.f32 %v4981, %v5027
      %v5052 = vadd.f32 %v4982, %v5026
      %v5053 = vadd.f32 %v4983, %v5027
      %v5054 = vadd.f32 %v4984, %v5026
      %v5055 = vadd.f32 %v4985, %v5027
      %v5056 = vadd.f32 %v4986, %v5026
      %v5057 = vadd.f32 %v4987, %v5027
      %v5058 = vadd.f32 %v4988, %v5026
      %v5059 = vadd.f32 %v4989, %v5027
      %v5060 = vadd.f32 %v4990, %v5026
      %v5061 = vadd.f32 %v4991, %v5027
      %v5062 = vadd.f32 %v4992, %v5026
      %v5063 = vadd.f32 %v4993, %v5027
      %v5064 = vadd.f32 %v4994, %v5026
      %v5065 = vadd.f32 %v4995, %v5027
      %v5066 = vadd.f32 %v4996, %v5026
      %v5067 = vadd.f32 %v4997, %v5027
      %v5068 = vadd.f32 %v4998, %v5026
      %v5069 = vadd.f32 %v4999, %v5027
      %v5070 = vadd.f32 %v5000, %v5026
      %v5071 = vadd.f32 %v5001, %v5027
      %v5072 = vadd.f32 %v5002, %v5026
      %v5073 = vadd.f32 %v5003, %v5027
      %v5074 = vadd.f32 %v5004, %v5026
      %v5075 = vadd.f32 %v5005, %v5027
      %v5076 = vadd.f32 %v5006, %v5026
      %v5077 = vadd.f32 %v5007, %v5027
      %v5078 = vadd.f32 %v5008, %v5026
      %v5079 = vadd.f32 %v5009, %v5027
      %v5080 = vadd.f32 %v5010, %v5026
      %v5081 = vadd.f32 %v5011, %v5027
      %v5082 = vadd.f32 %v5012, %v5026
      %v5083 = vadd.f32 %v5013, %v5027
      %v5084 = vadd.f32 %v5014, %v5026
      %v5085 = vadd.f32 %v5015, %v5027
      %v5086 = vadd.f32 %v5016, %v5026
      %v5087 = vadd.f32 %v5017, %v5027
      %v5088 = vadd.f32 %v5018, %v5026
      %v5089 = vadd.f32 %v5019, %v5027
      %v5090 = vadd.f32 %v5020, %v5026
      %v5091 = vadd.f32 %v5021, %v5027
      %v5092 = vadd.f32 %v5022, %v5026
      %v5093 = vadd.f32 %v5023, %v5027
      %v5094 = vmax.f32 %v5030, 0.0
      %v5095 = vmax.f32 %v5031, 0.0
      %v5096 = vmax.f32 %v5032, 0.0
      %v5097 = vmax.f32 %v5033, 0.0
      %v5098 = vmax.f32 %v5034, 0.0
      %v5099 = vmax.f32 %v5035, 0.0
      %v5100 = vmax.f32 %v5036, 0.0
      %v5101 = vmax.f32 %v5037, 0.0
      %v5102 = vmax.f32 %v5038, 0.0
      %v5103 = vmax.f32 %v5039, 0.0
      %v5104 = vmax.f32 %v5040, 0.0
      %v5105 = vmax.f32 %v5041, 0.0
      %v5106 = vmax.f32 %v5042, 0.0
      %v5107 = vmax.f32 %v5043, 0.0
      %v5108 = vmax.f32 %v5044, 0.0
      %v5109 = vmax.f32 %v5045, 0.0
      %v5110 = vmax.f32 %v5046, 0.0
      %v5111 = vmax.f32 %v5047, 0.0
      %v5112 = vmax.f32 %v5048, 0.0
      %v5113 = vmax.f32 %v5049, 0.0
      %v5114 = vmax.f32 %v5050, 0.0
      %v5115 = vmax.f32 %v5051, 0.0
      %v5116 = vmax.f32 %v5052, 0.0
      %v5117 = vmax.f32 %v5053, 0.0
      %v5118 = vmax.f32 %v5054, 0.0
      %v5119 = vmax.f32 %v5055, 0.0
      %v5120 = vmax.f32 %v5056, 0.0
      %v5121 = vmax.f32 %v5057, 0.0
      %v5122 = vmax.f32 %v5058, 0.0
      %v5123 = vmax.f32 %v5059, 0.0
      %v5124 = vmax.f32 %v5060, 0.0
      %v5125 = vmax.f32 %v5061, 0.0
      %v5126 = vmax.f32 %v5062, 0.0
      %v5127 = vmax.f32 %v5063, 0.0
      %v5128 = vmax.f32 %v5064, 0.0
      %v5129 = vmax.f32 %v5065, 0.0
      %v5130 = vmax.f32 %v5066, 0.0
      %v5131 = vmax.f32 %v5067, 0.0
      %v5132 = vmax.f32 %v5068, 0.0
      %v5133 = vmax.f32 %v5069, 0.0
      %v5134 = vmax.f32 %v5070, 0.0
      %v5135 = vmax.f32 %v5071, 0.0
      %v5136 = vmax.f32 %v5072, 0.0
      %v5137 = vmax.f32 %v5073, 0.0
      %v5138 = vmax.f32 %v5074, 0.0
      %v5139 = vmax.f32 %v5075, 0.0
      %v5140 = vmax.f32 %v5076, 0.0
      %v5141 = vmax.f32 %v5077, 0.0
      %v5142 = vmax.f32 %v5078, 0.0
      %v5143 = vmax.f32 %v5079, 0.0
      %v5144 = vmax.f32 %v5080, 0.0
      %v5145 = vmax.f32 %v5081, 0.0
      %v5146 = vmax.f32 %v5082, 0.0
      %v5147 = vmax.f32 %v5083, 0.0
      %v5148 = vmax.f32 %v5084, 0.0
      %v5149 = vmax.f32 %v5085, 0.0
      %v5150 = vmax.f32 %v5086, 0.0
      %v5151 = vmax.f32 %v5087, 0.0
      %v5152 = vmax.f32 %v5088, 0.0
      %v5153 = vmax.f32 %v5089, 0.0
      %v5154 = vmax.f32 %v5090, 0.0
      %v5155 = vmax.f32 %v5091, 0.0
      %v5156 = vmax.f32 %v5092, 0.0
      %v5157 = vmax.f32 %v5093, 0.0
      %v5158 = vmin.f32 %v5094, 6.0
      %v5159 = vmin.f32 %v5095, 6.0
      %v5160 = vmin.f32 %v5096, 6.0
      %v5161 = vmin.f32 %v5097, 6.0
      %v5162 = vmin.f32 %v5098, 6.0
      %v5163 = vmin.f32 %v5099, 6.0
      %v5164 = vmin.f32 %v5100, 6.0
      %v5165 = vmin.f32 %v5101, 6.0
      %v5166 = vmin.f32 %v5102, 6.0
      %v5167 = vmin.f32 %v5103, 6.0
      %v5168 = vmin.f32 %v5104, 6.0
      %v5169 = vmin.f32 %v5105, 6.0
      %v5170 = vmin.f32 %v5106, 6.0
      %v5171 = vmin.f32 %v5107, 6.0
      %v5172 = vmin.f32 %v5108, 6.0
      %v5173 = vmin.f32 %v5109, 6.0
      %v5174 = vmin.f32 %v5110, 6.0
      %v5175 = vmin.f32 %v5111, 6.0
      %v5176 = vmin.f32 %v5112, 6.0
      %v5177 = vmin.f32 %v5113, 6.0
      %v5178 = vmin.f32 %v5114, 6.0
      %v5179 = vmin.f32 %v5115, 6.0
      %v5180 = vmin.f32 %v5116, 6.0
      %v5181 = vmin.f32 %v5117, 6.0
      %v5182 = vmin.f32 %v5118, 6.0
      %v5183 = vmin.f32 %v5119, 6.0
      %v5184 = vmin.f32 %v5120, 6.0
      %v5185 = vmin.f32 %v5121, 6.0
      %v5186 = vmin.f32 %v5122, 6.0
      %v5187 = vmin.f32 %v5123, 6.0
      %v5188 = vmin.f32 %v5124, 6.0
      %v5189 = vmin.f32 %v5125, 6.0
      %v5190 = vmin.f32 %v5126, 6.0
      %v5191 = vmin.f32 %v5127, 6.0
      %v5192 = vmin.f32 %v5128, 6.0
      %v5193 = vmin.f32 %v5129, 6.0
      %v5194 = vmin.f32 %v5130, 6.0
      %v5195 = vmin.f32 %v5131, 6.0
      %v5196 = vmin.f32 %v5132, 6.0
      %v5197 = vmin.f32 %v5133, 6.0
      %v5198 = vmin.f32 %v5134, 6.0
      %v5199 = vmin.f32 %v5135, 6.0
      %v5200 = vmin.f32 %v5136, 6.0
      %v5201 = vmin.f32 %v5137, 6.0
      %v5202 = vmin.f32 %v5138, 6.0
      %v5203 = vmin.f32 %v5139, 6.0
      %v5204 = vmin.f32 %v5140, 6.0
      %v5205 = vmin.f32 %v5141, 6.0
      %v5206 = vmin.f32 %v5142, 6.0
      %v5207 = vmin.f32 %v5143, 6.0
      %v5208 = vmin.f32 %v5144, 6.0
      %v5209 = vmin.f32 %v5145, 6.0
      %v5210 = vmin.f32 %v5146, 6.0
      %v5211 = vmin.f32 %v5147, 6.0
      %v5212 = vmin.f32 %v5148, 6.0
      %v5213 = vmin.f32 %v5149, 6.0
      %v5214 = vmin.f32 %v5150, 6.0
      %v5215 = vmin.f32 %v5151, 6.0
      %v5216 = vmin.f32 %v5152, 6.0
      %v5217 = vmin.f32 %v5153, 6.0
      %v5218 = vmin.f32 %v5154, 6.0
      %v5219 = vmin.f32 %v5155, 6.0
      %v5220 = vmin.f32 %v5156, 6.0
      %v5221 = vmin.f32 %v5157, 6.0
      %v5222 = vpack.c.bf16 %v5160, %v5158
      %v5223 = vpack.c.bf16 %v5161, %v5159
      %v5224 = vpack.c.bf16 %v5164, %v5162
      %v5225 = vpack.c.bf16 %v5165, %v5163
      %v5226 = vpack.c.bf16 %v5168, %v5166
      %v5227 = vpack.c.bf16 %v5169, %v5167
      %v5228 = vpack.c.bf16 %v5172, %v5170
      %v5229 = vpack.c.bf16 %v5173, %v5171
      %v5230 = vpack.c.bf16 %v5176, %v5174
      %v5231 = vpack.c.bf16 %v5177, %v5175
      %v5232 = vpack.c.bf16 %v5180, %v5178
      %v5233 = vpack.c.bf16 %v5181, %v5179
      %v5234 = vpack.c.bf16 %v5184, %v5182
      %v5235 = vpack.c.bf16 %v5185, %v5183
      %v5236 = vpack.c.bf16 %v5188, %v5186
      %v5237 = vpack.c.bf16 %v5189, %v5187
      %v5238 = vpack.c.bf16 %v5192, %v5190
      %v5239 = vpack.c.bf16 %v5193, %v5191
      %v5240 = vpack.c.bf16 %v5196, %v5194
      %v5241 = vpack.c.bf16 %v5197, %v5195
      %v5242 = vpack.c.bf16 %v5200, %v5198
      %v5243 = vpack.c.bf16 %v5201, %v5199
      %v5244 = vpack.c.bf16 %v5204, %v5202
      %v5245 = vpack.c.bf16 %v5205, %v5203
      %v5246 = vpack.c.bf16 %v5208, %v5206
      %v5247 = vpack.c.bf16 %v5209, %v5207
      %v5248 = vpack.c.bf16 %v5212, %v5210
      %v5249 = vpack.c.bf16 %v5213, %v5211
      %v5250 = vpack.c.bf16 %v5216, %v5214
      %v5251 = vpack.c.bf16 %v5217, %v5215
      %v5252 = vpack.c.bf16 %v5220, %v5218
      %v5253 = vpack.c.bf16 %v5221, %v5219
      %v5254 = vld [vmem:[%s5] sm:$0xff]
      %v5255 = vld [vmem:[%s5 + $0x8] sm:$0xff]
      %v5256 = vld [vmem:[%s5 + $0x10] sm:$0xff]
      %v5257 = vld [vmem:[%s5 + $0x18] sm:$0xff]
      %v5258 = vld [vmem:[%s6] sm:$0xff]
      %v5259 = vld [vmem:[%s6 + $0x8] sm:$0xff]
      %v5260 = vld [vmem:[%s6 + $0x10] sm:$0xff]
      %v5261 = vld [vmem:[%s6 + $0x18] sm:$0xff]
      %5263 = vset.pattern.permute.xlu0 0
      %5264 = vperm.xlu0 %5263, %v5258
      %v5265 = vpop.permute.xlu0 %5264
      %5268 = vset.pattern.permute.xlu0 0
      %5269 = vperm.xlu0 %5268, %v5259
      %v5270 = vpop.permute.xlu0 %5269
      %5273 = vset.pattern.permute.xlu0 0
      %5274 = vperm.xlu0 %5273, %v5260
      %v5275 = vpop.permute.xlu0 %5274
      %5278 = vset.pattern.permute.xlu0 0
      %5279 = vperm.xlu0 %5278, %v5261
      %v5280 = vpop.permute.xlu0 %5279
      %v5286 = vunpack.c.l.b16 %v5254
      %v5287 = vunpack.c.h.b16 %v5254
      %v5288 = vunpack.c.l.b16 %v5255
      %v5289 = vunpack.c.h.b16 %v5255
      %v5290 = vunpack.c.l.b16 %v5256
      %v5291 = vunpack.c.h.b16 %v5256
      %v5292 = vunpack.c.l.b16 %v5257
      %v5293 = vunpack.c.h.b16 %v5257
      %v5294 = vpack.c.b16 %v5288, %v5286
      %v5295 = vpack.c.b16 %v5289, %v5287
      %v5296 = vpack.c.b16 %v5292, %v5290
      %v5297 = vpack.c.b16 %v5293, %v5291
      %v5301 = vsel %vm281, %v5295, 0
      %v5304 = vsel %vm281, %v5297, 0
      %v5307 = vsel %vm281, %v5223, 0
      %v5310 = vsel %vm281, %v5225, 0
      %v5313 = vsel %vm281, %v5227, 0
      %v5316 = vsel %vm281, %v5229, 0
      %v5319 = vsel %vm281, %v5231, 0
      %v5322 = vsel %vm281, %v5233, 0
      %v5325 = vsel %vm281, %v5235, 0
      %v5328 = vsel %vm281, %v5237, 0
      %v5331 = vsel %vm281, %v5239, 0
      %v5334 = vsel %vm281, %v5241, 0
      %v5337 = vsel %vm281, %v5243, 0
      %v5340 = vsel %vm281, %v5245, 0
      %v5343 = vsel %vm281, %v5247, 0
      %v5346 = vsel %vm281, %v5249, 0
      %v5349 = vsel %vm281, %v5251, 0
      %v5352 = vsel %vm281, %v5253, 0
      %5354 = vmatpush.bf16.xpose.msra.mxu0 %v5236
      %5355 = vmatpush.bf16.xpose.msra.mxu0 %v5234
      %5356 = vmatpush.bf16.xpose.msra.mxu0 %v5232
      %5357 = vmatpush.bf16.xpose.msra.mxu0 %v5230
      %5358 = vmatpush.bf16.xpose.msra.mxu0 %v5228
      %5359 = vmatpush.bf16.xpose.msra.mxu0 %v5226
      %5360 = vmatpush.bf16.xpose.msra.mxu0 %v5224
      %5361 = vmatpush.bf16.xpose.msra.mxu0 %v5222
      %5362 = vmatmul.bf16.gmra.mxu0 %v5294
      %v5363 = vpop.f32.mrf.mxu0
      %v5364 = vadd.f32 %v5265, %v5363
      %v5365 = vpop.f32.mrf.mxu0
      %v5366 = vadd.f32 %v5270, %v5365
      %5367 = vmatmul.bf16.gmra.mxu0 %v5296
      %v5368 = vpop.f32.mrf.mxu0
      %v5369 = vadd.f32 %v5275, %v5368
      %v5370 = vpop.f32.mrf.mxu0
      %v5371 = vadd.f32 %v5280, %v5370
      %5372 = vdwg.mxu0
      %5373 = vmatpush.bf16.xpose.msra.mxu0 %v5328
      %5374 = vmatpush.bf16.xpose.msra.mxu0 %v5325
      %5375 = vmatpush.bf16.xpose.msra.mxu0 %v5322
      %5376 = vmatpush.bf16.xpose.msra.mxu0 %v5319
      %5377 = vmatpush.bf16.xpose.msra.mxu0 %v5316
      %5378 = vmatpush.bf16.xpose.msra.mxu0 %v5313
      %5379 = vmatpush.bf16.xpose.msra.mxu0 %v5310
      %5380 = vmatpush.bf16.xpose.msra.mxu0 %v5307
      %5381 = vmatmul.bf16.gmra.mxu0 %v5301
      %v5382 = vpop.f32.mrf.mxu0
      %v5383 = vadd.f32 %v5364, %v5382
      %v5384 = vpop.f32.mrf.mxu0
      %v5385 = vadd.f32 %v5366, %v5384
      %5386 = vmatmul.bf16.gmra.mxu0 %v5304
      %v5387 = vpop.f32.mrf.mxu0
      %v5388 = vadd.f32 %v5369, %v5387
      %v5389 = vpop.f32.mrf.mxu0
      %v5390 = vadd.f32 %v5371, %v5389
      %5391 = vdwg.mxu0
      %5392 = vmatpush.bf16.xpose.msra.mxu0 %v5252
      %5393 = vmatpush.bf16.xpose.msra.mxu0 %v5250
      %5394 = vmatpush.bf16.xpose.msra.mxu0 %v5248
      %5395 = vmatpush.bf16.xpose.msra.mxu0 %v5246
      %5396 = vmatpush.bf16.xpose.msra.mxu0 %v5244
      %5397 = vmatpush.bf16.xpose.msra.mxu0 %v5242
      %5398 = vmatpush.bf16.xpose.msra.mxu0 %v5240
      %5399 = vmatpush.bf16.xpose.msra.mxu0 %v5238
      %5400 = vmatmul.bf16.gmra.mxu0 %v5294
      %v5401 = vpop.f32.mrf.mxu0
      %v5402 = vadd.f32 %v5265, %v5401
      %v5403 = vpop.f32.mrf.mxu0
      %v5404 = vadd.f32 %v5270, %v5403
      %5405 = vmatmul.bf16.gmra.mxu0 %v5296
      %v5406 = vpop.f32.mrf.mxu0
      %v5407 = vadd.f32 %v5275, %v5406
      %v5408 = vpop.f32.mrf.mxu0
      %v5409 = vadd.f32 %v5280, %v5408
      %5410 = vdwg.mxu0
      %5411 = vmatpush.bf16.xpose.msra.mxu0 %v5352
      %5412 = vmatpush.bf16.xpose.msra.mxu0 %v5349
      %5413 = vmatpush.bf16.xpose.msra.mxu0 %v5346
      %5414 = vmatpush.bf16.xpose.msra.mxu0 %v5343
      %5415 = vmatpush.bf16.xpose.msra.mxu0 %v5340
      %5416 = vmatpush.bf16.xpose.msra.mxu0 %v5337
      %5417 = vmatpush.bf16.xpose.msra.mxu0 %v5334
      %5418 = vmatpush.bf16.xpose.msra.mxu0 %v5331
      %5419 = vmatmul.bf16.gmra.mxu0 %v5301
      %v5420 = vpop.f32.mrf.mxu0
      %v5421 = vadd.f32 %v5402, %v5420
      %v5422 = vpop.f32.mrf.mxu0
      %v5423 = vadd.f32 %v5404, %v5422
      %5424 = vmatmul.bf16.gmra.mxu0 %v5304
      %v5425 = vpop.f32.mrf.mxu0
      %v5426 = vadd.f32 %v5407, %v5425
      %v5427 = vpop.f32.mrf.mxu0
      %v5428 = vadd.f32 %v5409, %v5427
      %5429 = vdwg.mxu0
      %v5430 = vld [vmem:[%s273] sm:$0xff]
      %v5431 = vld [vmem:[%s273 + $0x8] sm:$0xff]
      %v5432 = vld [vmem:[%s273 + $0x10] sm:$0xff]
      %v5433 = vld [vmem:[%s273 + $0x18] sm:$0xff]
      %v5434 = vld [vmem:[%s273 + $0x20] sm:$0xff]
      %v5435 = vld [vmem:[%s273 + $0x28] sm:$0xff]
      %v5436 = vld [vmem:[%s273 + $0x30] sm:$0xff]
      %v5437 = vld [vmem:[%s273 + $0x38] sm:$0xff]
      %v5438 = vadd.f32 %v5383, %v5430
      %v5439 = vadd.f32 %v5421, %v5431
      %v5440 = vadd.f32 %v5385, %v5432
      %v5441 = vadd.f32 %v5423, %v5433
      %v5442 = vadd.f32 %v5388, %v5434
      %v5443 = vadd.f32 %v5426, %v5435
      %v5444 = vadd.f32 %v5390, %v5436
      %v5445 = vadd.f32 %v5428, %v5437
      %5446 = vst [vmem:[%s278] sm:$0xff] %v5438
      %5447 = vst [vmem:[%s278 + $0x8] sm:$0xff] %v5439
      %5448 = vst [vmem:[%s278 + $0x10] sm:$0xff] %v5440
      %5449 = vst [vmem:[%s278 + $0x18] sm:$0xff] %v5441
      %5450 = vst [vmem:[%s278 + $0x20] sm:$0xff] %v5442
      %5451 = vst [vmem:[%s278 + $0x28] sm:$0xff] %v5443
      %5452 = vst [vmem:[%s278 + $0x30] sm:$0xff] %v5444
      %5453 = vst [vmem:[%s278 + $0x38] sm:$0xff] %v5445
      %p5454 = scmp.lt.s32.totalorder %s18, 1
      %s5455 = scalar_select %p5454, %s18, 1
      %s5456 = smul.addr %s5455, 8
      %s5457 = smul.addr %s5456, 8
      %s5458 = scalar_lea.vmem %s7, %s5457
      // Predicated region
      $region49: #{mobile_bottleneck.1} parent=47 // pred_check
        %p5459 = pneg %p188
      $region50: #{mobile_bottleneck.1} parent=47 // pred_check_branch
        %5461 = sbr.rel (%p5459) target = $region52
      $region51: #{mobile_bottleneck.1} parent=47 // pred_region
        _
      $region52: #{mobile_bottleneck.1} parent=47 // pred_fallthru
        _
    $region48: #{mobile_bottleneck.1} parent=5 // pred_fallthru
      _
    %p5462 = scmp.le.s32.totalorder 2, %s13
    // Predicated region
    $region53: #{mobile_bottleneck.1} parent=5 // pred_check
      %p5463 = pneg %p5462
    $region54: #{mobile_bottleneck.1} parent=5 // pred_check_branch
      %5465 = sbr.rel (%p5463) target = $region56
    $region55: #{mobile_bottleneck.1} parent=5 // pred_region
      %s5466 = ssub.s32 %s13, 2
      // Predicated region
      $region57: #{mobile_bottleneck.1} parent=55 // pred_check
        %p5467 = pneg %p194
      $region58: #{mobile_bottleneck.1} parent=55 // pred_check_branch
        %5469 = sbr.rel (%p5467) target = $region60
      $region59: #{mobile_bottleneck.1} parent=55 // pred_region
        %p5470 = scmp.lt.s32.totalorder %s19, 1
        %s5471 = scalar_select %p5470, %s19, 1
        %s5472 = smul.addr %s5471, 8
        %s5473 = smul.addr %s5472, 8
        %s5474 = scalar_lea.vmem %s7, %s5473
      $region60: #{mobile_bottleneck.1} parent=55 // pred_fallthru
        _
    $region56: #{mobile_bottleneck.1} parent=5 // pred_fallthru
      _
  $region6: #{mobile_bottleneck.1} parent=0 // loop_footer
    %s17 = sadd.s32 1, %s13
  $region7: #{mobile_bottleneck.1} parent=0 // loop_footer_branch
    %12 = sbr.rel target = $region3
  $region8: #{mobile_bottleneck.1} parent=0 // loop_exit
    _

</llo_original>
